<compile_context>
chip_gen: v7x
topology: tpu7x:2x2x1
jax: 0.10.0
libtpu: 0.0.40
codegen_flags: <defaults>
</compile_context>

<pallas_src>
import functools

import jax
import jax.numpy as jnp
from jax.experimental import pallas as pl
from jax.experimental.pallas import tpu as pltpu

N_STATES = 4     # CartPole-v0 observation dim
N_ACTIONS = 2    # CartPole-v0 action dim
HIDDEN = 64

_MAX_TILE_B = 8192        # largest batch tile (rows) per grid step, see header
_PALLAS_MIN_BATCH = 4096  # below this, a fused XLA GEMM pair beats the kernel


def _round_up(n, m):
    return ((n + m - 1) // m) * m


def _choose_tile(bp):
    """Pick the batch tile: aim for >=4 tiles (>=2 per v7x core), cap for VMEM."""
    tb = _round_up(pl.cdiv(bp, 4), 128)
    return max(128, min(_MAX_TILE_B, tb))


def dqn_net_kernel(x_ref, w1_ref, b1_ref, w2_ref, b2_ref, o_ref):
    """Fused MLP for one batch tile, native layouts end to end.

    x_ref  : (TB, N_STATES)    input tile, batch on sublanes
    w1_ref : (HIDDEN, N_STATES)     PyTorch layout
    b1_ref : (1, HIDDEN)
    w2_ref : (N_ACTIONS, HIDDEN)    PyTorch layout
    b2_ref : (1, N_ACTIONS)
    o_ref  : (TB, N_ACTIONS)   output tile
    """
    x = x_ref[...]                                            # (TB, S)
    # fc1: contract the shared S=4 dim: (TB, S) x (H, S) -> (TB, H).
    h = jax.lax.dot_general(
        x, w1_ref[...],
        dimension_numbers=(((1,), (1,)), ((), ())),
        preferred_element_type=jnp.float32)
    h = jnp.maximum(h + b1_ref[...], 0.0)                     # bias + ReLU (f32)
    # out: (TB, H) x (A, H) -> (TB, A).
    y = jax.lax.dot_general(
        h, w2_ref[...],
        dimension_numbers=(((1,), (1,)), ((), ())),
        preferred_element_type=jnp.float32)
    o_ref[...] = (y + b2_ref[...]).astype(o_ref.dtype)


@functools.partial(jax.jit, static_argnames=("force_pallas",))
def dqn_net_forward(x, w1, b1, w2, b2, *, force_pallas=False):
    """x: (B, N_STATES) f32.  Params in PyTorch layout:
    w1 (HIDDEN, N_STATES), b1 (HIDDEN,), w2 (N_ACTIONS, HIDDEN), b2 (N_ACTIONS,).
    Returns (B, N_ACTIONS) f32.
    """
    B = x.shape[0]

    # Small-batch path (action selection / typical replay minibatches): a
    # pallas_call with 1-2 grid steps loses to a fully fused XLA GEMM pair.
    if B < _PALLAS_MIN_BATCH and not force_pallas:
        h = jnp.maximum(x @ w1.T + b1, 0.0)
        return h @ w2.T + b2

    # Large-batch path: stream x in native layout, pad only to lane granularity.
    Bp = _round_up(B, 128)
    x_p = x if Bp == B else jnp.pad(x, ((0, Bp - B), (0, 0)))
    TB = _choose_tile(Bp)
    n_tiles = pl.cdiv(Bp, TB)        # last block may be partial (masked writes)

    y = pl.pallas_call(
        dqn_net_kernel,
        out_shape=jax.ShapeDtypeStruct((Bp, N_ACTIONS), jnp.float32),
        grid=(n_tiles,),
        in_specs=[
            pl.BlockSpec((TB, N_STATES), lambda i: (i, 0)),       # streamed x tile
            pl.BlockSpec((HIDDEN, N_STATES), lambda i: (0, 0)),   # resident weights
            pl.BlockSpec((1, HIDDEN), lambda i: (0, 0)),
            pl.BlockSpec((N_ACTIONS, HIDDEN), lambda i: (0, 0)),
            pl.BlockSpec((1, N_ACTIONS), lambda i: (0, 0)),
        ],
        out_specs=pl.BlockSpec((TB, N_ACTIONS), lambda i: (i, 0)),
        compiler_params=pltpu.CompilerParams(
            dimension_semantics=("parallel",)),   # shards batch tiles over v7x TCs
    )(x_p, w1, b1.reshape(1, HIDDEN), w2, b2.reshape(1, N_ACTIONS))

    return y[:B]


def init_params(key):
    k1, k2, k3, k4 = jax.random.split(key, 4)
    # PyTorch: weight.data.normal_(0, 0.1); bias keeps default U(+-1/sqrt(fan_in)).
    w1 = 0.1 * jax.random.normal(k1, (HIDDEN, N_STATES), jnp.float32)
    b1 = jax.random.uniform(
        k2, (HIDDEN,), jnp.float32,
        minval=-1.0 / jnp.sqrt(N_STATES), maxval=1.0 / jnp.sqrt(N_STATES))
    w2 = 0.1 * jax.random.normal(k3, (N_ACTIONS, HIDDEN), jnp.float32)
    b2 = jax.random.uniform(
        k4, (N_ACTIONS,), jnp.float32,
        minval=-1.0 / jnp.sqrt(HIDDEN), maxval=1.0 / jnp.sqrt(HIDDEN))
    return w1, b1, w2, b2


def _reference(x, w1, b1, w2, b2):
    return jnp.maximum(x @ w1.T + b1, 0.0) @ w2.T + b2


if __name__ == "__main__":
    key = jax.random.PRNGKey(0)
    pkey, xkey1, xkey2 = jax.random.split(key, 3)
    w1, b1, w2, b2 = init_params(pkey)

    # 1) Large batch -> Pallas path (multi-tile, partial last block, pad-to-128).
    B_big = 4100
    x_big = jax.random.normal(xkey1, (B_big, N_STATES), jnp.float32)
    out_big = jax.block_until_ready(dqn_net_forward(x_big, w1, b1, w2, b2))
    ref_big = _reference(x_big, w1, b1, w2, b2)
    assert out_big.shape == (B_big, N_ACTIONS)
    assert jnp.allclose(out_big, ref_big, atol=1e-5, rtol=1e-5)

    # 2) Tiny batch forced through the kernel (exercises the padding/masking path).
    B_small = 2
    x_small = jax.random.normal(xkey2, (B_small, N_STATES), jnp.float32)
    out_small = jax.block_until_ready(
        dqn_net_forward(x_small, w1, b1, w2, b2, force_pallas=True))
    ref_small = _reference(x_small, w1, b1, w2, b2)
    assert out_small.shape == (B_small, N_ACTIONS)
    assert jnp.allclose(out_small, ref_small, atol=1e-5, rtol=1e-5)

    # 3) Tiny action-selection batch via the jnp fallback (default path).
    out_fb = jax.block_until_ready(dqn_net_forward(x_small, w1, b1, w2, b2))
    assert jnp.allclose(out_fb, ref_small, atol=1e-5, rtol=1e-5)

    print("KERNEL_OK")
</pallas_src>

<mosaic_0001>
module attributes {stable_mosaic.version = 11 : i64} {
  func.func @dqn_net_kernel(%arg0: i32, %arg1: memref<1152x4xf32, #tpu.memory_space<vmem>>, %arg2: memref<64x4xf32, #tpu.memory_space<vmem>>, %arg3: memref<1x64xf32, #tpu.memory_space<vmem>>, %arg4: memref<2x64xf32, #tpu.memory_space<vmem>>, %arg5: memref<1x2xf32, #tpu.memory_space<vmem>>, %arg6: memref<1152x2xf32, #tpu.memory_space<vmem>>) attributes {dimension_semantics = [#tpu.dimension_semantics<parallel>], iteration_bounds = array<i64: 4>, scalar_prefetch = 0 : i64, scratch_operands = 0 : i64, tpu.core_type = #tpu.core_type<tc>, window_params = [{transform_indices = @transform_0, window_bounds = array<i64: 1152, 4>}, {pipeline_mode = #tpu.pipeline_mode<synchronous>, transform_indices = @transform_1, window_bounds = array<i64: 64, 4>}, {pipeline_mode = #tpu.pipeline_mode<synchronous>, transform_indices = @transform_2, window_bounds = array<i64: 1, 64>}, {pipeline_mode = #tpu.pipeline_mode<synchronous>, transform_indices = @transform_3, window_bounds = array<i64: 2, 64>}, {pipeline_mode = #tpu.pipeline_mode<synchronous>, transform_indices = @transform_4, window_bounds = array<i64: 1, 2>}, {transform_indices = @transform_5, window_bounds = array<i64: 1152, 2>}]} {
    %c0 = arith.constant 0 : index
    %c0_0 = arith.constant 0 : index
    %0 = vector.load %arg1[%c0, %c0_0] : memref<1152x4xf32, #tpu.memory_space<vmem>>, vector<1152x4xf32>
    %c0_1 = arith.constant 0 : index
    %c0_2 = arith.constant 0 : index
    %1 = vector.load %arg2[%c0_1, %c0_2] : memref<64x4xf32, #tpu.memory_space<vmem>>, vector<64x4xf32>
    %cst = arith.constant dense<0.000000e+00> : vector<1152x64xf32>
    %2 = tpu.matmul %0, %1, %cst {dimension_numbers = #tpu.dot_dimension_numbers<[1], [1], [0], [0], [0, 0, 1, 0], [], []>} : vector<1152x4xf32>, vector<64x4xf32>, vector<1152x64xf32> -> vector<1152x64xf32>
    %c0_3 = arith.constant 0 : index
    %c0_4 = arith.constant 0 : index
    %3 = vector.load %arg3[%c0_3, %c0_4] : memref<1x64xf32, #tpu.memory_space<vmem>>, vector<1x64xf32>
    %4 = vector.broadcast %3 : vector<1x64xf32> to vector<1152x64xf32>
    %5 = arith.addf %2, %4 : vector<1152x64xf32>
    %cst_5 = arith.constant 0.000000e+00 : f32
    %6 = vector.broadcast %cst_5 : f32 to vector<1152x64xf32>
    %7 = arith.maximumf %5, %6 : vector<1152x64xf32>
    %c0_6 = arith.constant 0 : index
    %c0_7 = arith.constant 0 : index
    %8 = vector.load %arg4[%c0_6, %c0_7] : memref<2x64xf32, #tpu.memory_space<vmem>>, vector<2x64xf32>
    %cst_8 = arith.constant dense<0.000000e+00> : vector<1152x2xf32>
    %9 = tpu.matmul %7, %8, %cst_8 {dimension_numbers = #tpu.dot_dimension_numbers<[1], [1], [0], [0], [0, 0, 1, 0], [], []>} : vector<1152x64xf32>, vector<2x64xf32>, vector<1152x2xf32> -> vector<1152x2xf32>
    %c0_9 = arith.constant 0 : index
    %c0_10 = arith.constant 0 : index
    %10 = vector.load %arg5[%c0_9, %c0_10] : memref<1x2xf32, #tpu.memory_space<vmem>>, vector<1x2xf32>
    %11 = vector.broadcast %10 : vector<1x2xf32> to vector<1152x2xf32>
    %12 = arith.addf %9, %11 : vector<1152x2xf32>
    %c0_11 = arith.constant 0 : index
    %c0_12 = arith.constant 0 : index
    %13 = vector.load %arg6[%c0_11, %c0_12] : memref<1152x2xf32, #tpu.memory_space<vmem>>, vector<1152x2xf32>
    tpu.vector_store %arg6[%c0_11, %c0_12], %12 {strides = array<i32>} : memref<1152x2xf32, #tpu.memory_space<vmem>>, vector<1152x2xf32>,
    return
  }
  func.func @transform_0(%arg0: i32) -> (i32, i32) {
    %c0_i32 = arith.constant 0 : i32
    %c0_i32_0 = arith.constant 0 : i32
    return %arg0, %c0_i32 : i32, i32
  }
  func.func @transform_1(%arg0: i32) -> (i32, i32) {
    %c0_i32 = arith.constant 0 : i32
    %c0_i32_0 = arith.constant 0 : i32
    %c0_i32_1 = arith.constant 0 : i32
    return %c0_i32, %c0_i32_0 : i32, i32
  }
  func.func @transform_2(%arg0: i32) -> (i32, i32) {
    %c0_i32 = arith.constant 0 : i32
    %c0_i32_0 = arith.constant 0 : i32
    %c0_i32_1 = arith.constant 0 : i32
    return %c0_i32, %c0_i32_0 : i32, i32
  }
  func.func @transform_3(%arg0: i32) -> (i32, i32) {
    %c0_i32 = arith.constant 0 : i32
    %c0_i32_0 = arith.constant 0 : i32
    %c0_i32_1 = arith.constant 0 : i32
    return %c0_i32, %c0_i32_0 : i32, i32
  }
  func.func @transform_4(%arg0: i32) -> (i32, i32) {
    %c0_i32 = arith.constant 0 : i32
    %c0_i32_0 = arith.constant 0 : i32
    %c0_i32_1 = arith.constant 0 : i32
    return %c0_i32, %c0_i32_0 : i32, i32
  }
  func.func @transform_5(%arg0: i32) -> (i32, i32) {
    %c0_i32 = arith.constant 0 : i32
    %c0_i32_0 = arith.constant 0 : i32
    return %arg0, %c0_i32 : i32, i32
  }
}

</mosaic_0001>

<llo_original>
// kernel: dqn_net_forward.1
$region0: #{dqn_net_forward.1}
  #allocation0 [shape = 'u32[]', space=smem, size = 0x4, offset = 0x4, fixed_abs, tag = 'smem constant byte address 0x4 - core index']
  #allocation1 [shape = 'u32[144,128]{1,0:T(1,128)}', space=vmem, size = 0x12000, scoped, tag = 'internal scratch']
  %s0 = inlined_call_operand.vmem [shape: f32[4224,4], index: 0, kind: input, shape index: {}]
  %s1 = inlined_call_operand.vmem [shape: f32[64,4], index: 1, kind: input, shape index: {}]
  %s2 = inlined_call_operand.vmem [shape: f32[1,64], index: 2, kind: input, shape index: {}]
  %s3 = inlined_call_operand.vmem [shape: f32[2,64], index: 3, kind: input, shape index: {}]
  %s4 = inlined_call_operand.vmem [shape: f32[1,2], index: 4, kind: input, shape index: {}]
  %s5 = inlined_call_operand.vmem [shape: f32[4224,2], index: 5, kind: output, shape index: {}]
  %s6 = sld [smem:[#allocation0]]
  $region101: #{dqn_net_forward.1} parent=0
    _
  %s8 = ssub.s32 1, %s6
  %s9 = scalar_select 0, %s8, %s6
  $region1: #{dqn_net_forward.1} parent=0
    #allocation2 [shape = 'u8[1179648]{0}', space=vmem, size = 0x120000, scoped, tag = 'output window, operand 0']
    loop: start=0, step=1, limit=6
    $region2: #{dqn_net_forward.1} parent=1 // loop_pre_header
      _
    $region3: #{dqn_net_forward.1} parent=1 // loop_header
      %s11 = sphi 0, %s15
      %p12 = scmp.ge.s32.totalorder %s11, 6
      %s21 = sphi 0, %s23
      %s24 = sphi 0, %s21
      %s25 = sphi 0, %s24
      %s41 = sphi 0, %s25
      %s45 = sphi 0, %s45
      %s47 = sphi 0, %s45
      %s48 = sphi 0, %s47
      %s62 = sphi 0, %s48
      %s66 = sphi 0, %s66
      %s68 = sphi 0, %s66
      %s69 = sphi 0, %s68
      %s83 = sphi 0, %s69
      %s87 = sphi 0, %s87
      %s89 = sphi 0, %s87
      %s90 = sphi 0, %s89
      %s104 = sphi 0, %s90
      %s108 = sphi 0, %s108
      %s110 = sphi 0, %s108
      %s111 = sphi 0, %s110
      %s125 = sphi 0, %s111
      %s131 = sphi 0, %s133
      %s134 = sphi 0, %s131
      %s135 = sphi 0, %s134
      %s151 = sphi 0, %s135
    $region4: #{dqn_net_forward.1} parent=1 // loop_header_branch
      %14 = sbr.rel (%p12) target = $region8
    $region5: #{dqn_net_forward.1} parent=1 // loop_body
      %s16 = ssub.s32 %s11, 1
      %s17 = ssub.s32 %s11, 2
      %s18 = sadd.s32 %s11, 1
      %s19 = ssub.s32 %s11, %s18
      %p20 = scmp.eq.s32.totalorder %s19, 0
      %s22 = sadd.s32 %s21, 1
      %s23 = scalar_select %p20, %s21, %s22
      %p26 = pneg %p20
      %p27 = scmp.eq.s32.totalorder %s11, 3
      %p28 = por %p26, %p27
      %p29 = scmp.ne.s32.totalorder %s21, %s24
      %p30 = scmp.eq.s32.totalorder %s11, 0
      %p31 = por %p29, %p30
      %p32 = scmp.ne.s32.totalorder %s21, %s24
      %p33 = scmp.eq.s32.totalorder %s16, 3
      %p34 = por %p32, %p33
      %p35 = scmp.ne.s32.totalorder %s24, %s25
      %p36 = scmp.eq.s32.totalorder %s16, 0
      %p37 = por %p35, %p36
      %p38 = scmp.ne.s32.totalorder %s24, %s25
      %p39 = scmp.eq.s32.totalorder %s17, 3
      %p40 = por %p38, %p39
      %p42 = scmp.ne.s32.totalorder %s25, %s41
      %p43 = scmp.eq.s32.totalorder %s17, 0
      %p44 = por %p42, %p43
      %s46 = sadd.s32 %s45, 1
      %p49 = scmp.eq.s32.totalorder %s11, 3
      %p50 = scmp.ne.s32.totalorder %s45, %s47
      %p51 = scmp.eq.s32.totalorder %s11, 0
      %p52 = por %p50, %p51
      %p53 = scmp.ne.s32.totalorder %s45, %s47
      %p54 = scmp.eq.s32.totalorder %s16, 3
      %p55 = por %p53, %p54
      %p56 = scmp.ne.s32.totalorder %s47, %s48
      %p57 = scmp.eq.s32.totalorder %s16, 0
      %p58 = por %p56, %p57
      %p59 = scmp.ne.s32.totalorder %s47, %s48
      %p60 = scmp.eq.s32.totalorder %s17, 3
      %p61 = por %p59, %p60
      %p63 = scmp.ne.s32.totalorder %s48, %s62
      %p64 = scmp.eq.s32.totalorder %s17, 0
      %p65 = por %p63, %p64
      %s67 = sadd.s32 %s66, 1
      %p70 = scmp.eq.s32.totalorder %s11, 3
      %p71 = scmp.ne.s32.totalorder %s66, %s68
      %p72 = scmp.eq.s32.totalorder %s11, 0
      %p73 = por %p71, %p72
      %p74 = scmp.ne.s32.totalorder %s66, %s68
      %p75 = scmp.eq.s32.totalorder %s16, 3
      %p76 = por %p74, %p75
      %p77 = scmp.ne.s32.totalorder %s68, %s69
      %p78 = scmp.eq.s32.totalorder %s16, 0
      %p79 = por %p77, %p78
      %p80 = scmp.ne.s32.totalorder %s68, %s69
      %p81 = scmp.eq.s32.totalorder %s17, 3
      %p82 = por %p80, %p81
      %p84 = scmp.ne.s32.totalorder %s69, %s83
      %p85 = scmp.eq.s32.totalorder %s17, 0
      %p86 = por %p84, %p85
      %s88 = sadd.s32 %s87, 1
      %p91 = scmp.eq.s32.totalorder %s11, 3
      %p92 = scmp.ne.s32.totalorder %s87, %s89
      %p93 = scmp.eq.s32.totalorder %s11, 0
      %p94 = por %p92, %p93
      %p95 = scmp.ne.s32.totalorder %s87, %s89
      %p96 = scmp.eq.s32.totalorder %s16, 3
      %p97 = por %p95, %p96
      %p98 = scmp.ne.s32.totalorder %s89, %s90
      %p99 = scmp.eq.s32.totalorder %s16, 0
      %p100 = por %p98, %p99
      %p101 = scmp.ne.s32.totalorder %s89, %s90
      %p102 = scmp.eq.s32.totalorder %s17, 3
      %p103 = por %p101, %p102
      %p105 = scmp.ne.s32.totalorder %s90, %s104
      %p106 = scmp.eq.s32.totalorder %s17, 0
      %p107 = por %p105, %p106
      %s109 = sadd.s32 %s108, 1
      %p112 = scmp.eq.s32.totalorder %s11, 3
      %p113 = scmp.ne.s32.totalorder %s108, %s110
      %p114 = scmp.eq.s32.totalorder %s11, 0
      %p115 = por %p113, %p114
      %p116 = scmp.ne.s32.totalorder %s108, %s110
      %p117 = scmp.eq.s32.totalorder %s16, 3
      %p118 = por %p116, %p117
      %p119 = scmp.ne.s32.totalorder %s110, %s111
      %p120 = scmp.eq.s32.totalorder %s16, 0
      %p121 = por %p119, %p120
      %p122 = scmp.ne.s32.totalorder %s110, %s111
      %p123 = scmp.eq.s32.totalorder %s17, 3
      %p124 = por %p122, %p123
      %p126 = scmp.ne.s32.totalorder %s111, %s125
      %p127 = scmp.eq.s32.totalorder %s17, 0
      %p128 = por %p126, %p127
      %s129 = ssub.s32 %s11, %s18
      %p130 = scmp.eq.s32.totalorder %s129, 0
      %s132 = sadd.s32 %s131, 1
      %s133 = scalar_select %p130, %s131, %s132
      %p136 = pneg %p130
      %p137 = scmp.eq.s32.totalorder %s11, 3
      %p138 = por %p136, %p137
      %p139 = scmp.ne.s32.totalorder %s131, %s134
      %p140 = scmp.eq.s32.totalorder %s11, 0
      %p141 = por %p139, %p140
      %p142 = scmp.ne.s32.totalorder %s131, %s134
      %p143 = scmp.eq.s32.totalorder %s16, 3
      %p144 = por %p142, %p143
      %p145 = scmp.ne.s32.totalorder %s134, %s135
      %p146 = scmp.eq.s32.totalorder %s16, 0
      %p147 = por %p145, %p146
      %p148 = scmp.ne.s32.totalorder %s134, %s135
      %p149 = scmp.eq.s32.totalorder %s17, 3
      %p150 = por %p148, %p149
      %p152 = scmp.ne.s32.totalorder %s135, %s151
      %p153 = scmp.eq.s32.totalorder %s17, 0
      %p154 = por %p152, %p153
      %p155 = scmp.le.s32.totalorder 1, %s11
      %p156 = scmp.lt.s32.totalorder %s11, 5
      %p157 = pnand %p155, %p156
      %p158 = pneg %p157
      // Predicated region
      $region9: #{dqn_net_forward.1} parent=5 // pred_check
        _
      $region10: #{dqn_net_forward.1} parent=5 // pred_check_branch
        %160 = sbr.rel (%p157) target = $region12
      $region11: #{dqn_net_forward.1} parent=5 // pred_region
        %s161 = ssub.s32 %s11, 1
        // Predicated region
        $region13: #{dqn_net_forward.1} parent=11 // pred_check
          %p162 = pneg %p58
        $region14: #{dqn_net_forward.1} parent=11 // pred_check_branch
          %164 = sbr.rel (%p162) target = $region16
        $region15: #{dqn_net_forward.1} parent=11 // pred_region
          _
        $region16: #{dqn_net_forward.1} parent=11 // pred_fallthru
          _
        // Predicated region
        $region17: #{dqn_net_forward.1} parent=11 // pred_check
          %p165 = pneg %p79
        $region18: #{dqn_net_forward.1} parent=11 // pred_check_branch
          %167 = sbr.rel (%p165) target = $region20
        $region19: #{dqn_net_forward.1} parent=11 // pred_region
          _
        $region20: #{dqn_net_forward.1} parent=11 // pred_fallthru
          _
        // Predicated region
        $region21: #{dqn_net_forward.1} parent=11 // pred_check
          %p168 = pneg %p100
        $region22: #{dqn_net_forward.1} parent=11 // pred_check_branch
          %170 = sbr.rel (%p168) target = $region24
        $region23: #{dqn_net_forward.1} parent=11 // pred_region
          _
        $region24: #{dqn_net_forward.1} parent=11 // pred_fallthru
          _
        // Predicated region
        $region25: #{dqn_net_forward.1} parent=11 // pred_check
          %p171 = pneg %p121
        $region26: #{dqn_net_forward.1} parent=11 // pred_check_branch
          %173 = sbr.rel (%p171) target = $region28
        $region27: #{dqn_net_forward.1} parent=11 // pred_region
          _
        $region28: #{dqn_net_forward.1} parent=11 // pred_fallthru
          _
      $region12: #{dqn_net_forward.1} parent=5 // pred_fallthru
        _
      %p174 = scmp.lt.s32.totalorder %s11, 4
      // Predicated region
      $region29: #{dqn_net_forward.1} parent=5 // pred_check
        %p175 = pneg %p174
      $region30: #{dqn_net_forward.1} parent=5 // pred_check_branch
        %177 = sbr.rel (%p175) target = $region32
      $region31: #{dqn_net_forward.1} parent=5 // pred_region
        // Predicated region
        $region33: #{dqn_net_forward.1} parent=31 // pred_check
          %p178 = pneg %p31
        $region34: #{dqn_net_forward.1} parent=31 // pred_check_branch
          %180 = sbr.rel (%p178) target = $region36
        $region35: #{dqn_net_forward.1} parent=31 // pred_region
          %s181 = smul.u32 144, %s11
          %s182 = ssub.s32 528, %s181
          %p183 = scmp.lt.s32.totalorder %s182, 144
          %s184 = scalar_select %p183, %s182, 144
          %s185 = smul.u32 128, %s184
          %p186 = scmp.lt.s32.totalorder %s181, 527
          %s187 = scalar_select %p186, %s181, 527
          %s188 = smul.addr %s187, 8
          %s189 = scalar_lea.vmem %s0, %s188
          %s190 = smul.u32 144, %s11
          %s191 = ssub.s32 528, %s190
          %p192 = scmp.lt.s32.totalorder %s191, 144
          %s193 = scalar_select %p192, %s191, 144
          %s194 = smul.u32 128, %s193
        $region36: #{dqn_net_forward.1} parent=31 // pred_fallthru
          _
      $region32: #{dqn_net_forward.1} parent=5 // pred_fallthru
        _
      %p195 = scmp.le.s32.totalorder 1, %s11
      %p196 = scmp.lt.s32.totalorder %s11, 5
      %p197 = pnand %p195, %p196
      %p198 = pneg %p197
      // Predicated region
      $region37: #{dqn_net_forward.1} parent=5 // pred_check
        _
      $region38: #{dqn_net_forward.1} parent=5 // pred_check_branch
        %200 = sbr.rel (%p197) target = $region40
      $region39: #{dqn_net_forward.1} parent=5 // pred_region
        %s201 = ssub.s32 %s11, 1
        %s202 = smul.u32 144, %s16
        %s203 = ssub.s32 528, %s202
        %p204 = scmp.lt.s32.totalorder %s203, 144
        %s205 = scalar_select %p204, %s203, 144
        %s206 = smul.u32 128, %s205
        %p207 = scmp.lt.s32.totalorder %s202, 527
        %s208 = scalar_select %p207, %s202, 527
        %s209 = smul.addr %s208, 8
        %s210 = scalar_lea.vmem %s0, %s209
        %p211 = pneg %p37
        %p212 = pneg %p34
        %p213 = pneg %p58
        %p214 = pneg %p55
        %p215 = pneg %p79
        %p216 = pneg %p76
        %p217 = pneg %p100
        %p218 = pneg %p97
        %p219 = pneg %p121
        %p220 = pneg %p118
        %p221 = pneg %p147
        %p222 = pneg %p144
        %s223 = sand.u32 %s134, 1
        %s224 = sand.u32 %s134, 1
        %s225 = smul.addr %s224, 1152
        %s226 = scalar_lea.vmem [#allocation2], %s225
        %s227 = smul.u32 144, %s16
        %s228 = ssub.s32 528, %s227
        %p229 = scmp.lt.s32.totalorder %s228, 144
        %s230 = scalar_select %p229, %s228, 144
        %s231 = smul.u32 128, %s230
        %p232 = scmp.lt.s32.totalorder %s227, 527
        %s233 = scalar_select %p232, %s227, 527
        %s234 = smul.addr %s233, 8
        %s235 = scalar_lea.vmem %s0, %s234
        %s236 = smul.u32 144, %s16
        %s237 = ssub.s32 528, %s236
        %p238 = scmp.lt.s32.totalorder %s237, 144
        %s239 = scalar_select %p238, %s237, 144
        %s240 = smul.u32 128, %s239
        %s241 = smul.u32 144, %s16
        %s242 = ssub.s32 528, %s241
        %p243 = scmp.lt.s32.totalorder %s242, 144
        %s244 = scalar_select %p243, %s242, 144
        %s245 = smul.u32 128, %s244
        %v246 = vld [vmem:[%s235] sm:$0xff]
        %v247 = vld [vmem:[%s235 + $0x8] sm:$0xff]
        %v248 = vld [vmem:[%s235 + $0x10] sm:$0xff]
        %v249 = vld [vmem:[%s235 + $0x18] sm:$0xff]
        %v250 = vld [vmem:[%s235 + $0x20] sm:$0xff]
        %v251 = vld [vmem:[%s235 + $0x28] sm:$0xff]
        %v252 = vld [vmem:[%s235 + $0x30] sm:$0xff]
        %v253 = vld [vmem:[%s235 + $0x38] sm:$0xff]
        %v254 = vld [vmem:[%s235 + $0x40] sm:$0xff]
        %v255 = vld [vmem:[%s235 + $0x48] sm:$0xff]
        %v256 = vld [vmem:[%s235 + $0x50] sm:$0xff]
        %v257 = vld [vmem:[%s235 + $0x58] sm:$0xff]
        %v258 = vld [vmem:[%s235 + $0x60] sm:$0xff]
        %v259 = vld [vmem:[%s235 + $0x68] sm:$0xff]
        %v260 = vld [vmem:[%s235 + $0x70] sm:$0xff]
        %v261 = vld [vmem:[%s235 + $0x78] sm:$0xff]
        %v262 = vld [vmem:[%s235 + $0x80] sm:$0xff]
        %v263 = vld [vmem:[%s235 + $0x88] sm:$0xff]
        %v264 = vld [vmem:[%s235 + $0x90] sm:$0xff]
        %v265 = vld [vmem:[%s235 + $0x98] sm:$0xff]
        %v266 = vld [vmem:[%s235 + $0xa0] sm:$0xff]
        %v267 = vld [vmem:[%s235 + $0xa8] sm:$0xff]
        %v268 = vld [vmem:[%s235 + $0xb0] sm:$0xff]
        %v269 = vld [vmem:[%s235 + $0xb8] sm:$0xff]
        %v270 = vld [vmem:[%s235 + $0xc0] sm:$0xff]
        %v271 = vld [vmem:[%s235 + $0xc8] sm:$0xff]
        %v272 = vld [vmem:[%s235 + $0xd0] sm:$0xff]
        %v273 = vld [vmem:[%s235 + $0xd8] sm:$0xff]
        %v274 = vld [vmem:[%s235 + $0xe0] sm:$0xff]
        %v275 = vld [vmem:[%s235 + $0xe8] sm:$0xff]
        %v276 = vld [vmem:[%s235 + $0xf0] sm:$0xff]
        %v277 = vld [vmem:[%s235 + $0xf8] sm:$0xff]
        %v278 = vld [vmem:[%s235 + $0x100] sm:$0xff]
        %v279 = vld [vmem:[%s235 + $0x108] sm:$0xff]
        %v280 = vld [vmem:[%s235 + $0x110] sm:$0xff]
        %v281 = vld [vmem:[%s235 + $0x118] sm:$0xff]
        %v282 = vld [vmem:[%s235 + $0x120] sm:$0xff]
        %v283 = vld [vmem:[%s235 + $0x128] sm:$0xff]
        %v284 = vld [vmem:[%s235 + $0x130] sm:$0xff]
        %v285 = vld [vmem:[%s235 + $0x138] sm:$0xff]
        %v286 = vld [vmem:[%s235 + $0x140] sm:$0xff]
        %v287 = vld [vmem:[%s235 + $0x148] sm:$0xff]
        %v288 = vld [vmem:[%s235 + $0x150] sm:$0xff]
        %v289 = vld [vmem:[%s235 + $0x158] sm:$0xff]
        %v290 = vld [vmem:[%s235 + $0x160] sm:$0xff]
        %v291 = vld [vmem:[%s235 + $0x168] sm:$0xff]
        %v292 = vld [vmem:[%s235 + $0x170] sm:$0xff]
        %v293 = vld [vmem:[%s235 + $0x178] sm:$0xff]
        %v294 = vld [vmem:[%s235 + $0x180] sm:$0xff]
        %v295 = vld [vmem:[%s235 + $0x188] sm:$0xff]
        %v296 = vld [vmem:[%s235 + $0x190] sm:$0xff]
        %v297 = vld [vmem:[%s235 + $0x198] sm:$0xff]
        %v298 = vld [vmem:[%s235 + $0x1a0] sm:$0xff]
        %v299 = vld [vmem:[%s235 + $0x1a8] sm:$0xff]
        %v300 = vld [vmem:[%s235 + $0x1b0] sm:$0xff]
        %v301 = vld [vmem:[%s235 + $0x1b8] sm:$0xff]
        %v302 = vld [vmem:[%s235 + $0x1c0] sm:$0xff]
        %v303 = vld [vmem:[%s235 + $0x1c8] sm:$0xff]
        %v304 = vld [vmem:[%s235 + $0x1d0] sm:$0xff]
        %v305 = vld [vmem:[%s235 + $0x1d8] sm:$0xff]
        %v306 = vld [vmem:[%s235 + $0x1e0] sm:$0xff]
        %v307 = vld [vmem:[%s235 + $0x1e8] sm:$0xff]
        %v308 = vld [vmem:[%s235 + $0x1f0] sm:$0xff]
        %v309 = vld [vmem:[%s235 + $0x1f8] sm:$0xff]
        %v310 = vld [vmem:[%s235 + $0x200] sm:$0xff]
        %v311 = vld [vmem:[%s235 + $0x208] sm:$0xff]
        %v312 = vld [vmem:[%s235 + $0x210] sm:$0xff]
        %v313 = vld [vmem:[%s235 + $0x218] sm:$0xff]
        %v314 = vld [vmem:[%s235 + $0x220] sm:$0xff]
        %v315 = vld [vmem:[%s235 + $0x228] sm:$0xff]
        %v316 = vld [vmem:[%s235 + $0x230] sm:$0xff]
        %v317 = vld [vmem:[%s235 + $0x238] sm:$0xff]
        %v318 = vld [vmem:[%s235 + $0x240] sm:$0xff]
        %v319 = vld [vmem:[%s235 + $0x248] sm:$0xff]
        %v320 = vld [vmem:[%s235 + $0x250] sm:$0xff]
        %v321 = vld [vmem:[%s235 + $0x258] sm:$0xff]
        %v322 = vld [vmem:[%s235 + $0x260] sm:$0xff]
        %v323 = vld [vmem:[%s235 + $0x268] sm:$0xff]
        %v324 = vld [vmem:[%s235 + $0x270] sm:$0xff]
        %v325 = vld [vmem:[%s235 + $0x278] sm:$0xff]
        %v326 = vld [vmem:[%s235 + $0x280] sm:$0xff]
        %v327 = vld [vmem:[%s235 + $0x288] sm:$0xff]
        %v328 = vld [vmem:[%s235 + $0x290] sm:$0xff]
        %v329 = vld [vmem:[%s235 + $0x298] sm:$0xff]
        %v330 = vld [vmem:[%s235 + $0x2a0] sm:$0xff]
        %v331 = vld [vmem:[%s235 + $0x2a8] sm:$0xff]
        %v332 = vld [vmem:[%s235 + $0x2b0] sm:$0xff]
        %v333 = vld [vmem:[%s235 + $0x2b8] sm:$0xff]
        %v334 = vld [vmem:[%s235 + $0x2c0] sm:$0xff]
        %v335 = vld [vmem:[%s235 + $0x2c8] sm:$0xff]
        %v336 = vld [vmem:[%s235 + $0x2d0] sm:$0xff]
        %v337 = vld [vmem:[%s235 + $0x2d8] sm:$0xff]
        %v338 = vld [vmem:[%s235 + $0x2e0] sm:$0xff]
        %v339 = vld [vmem:[%s235 + $0x2e8] sm:$0xff]
        %v340 = vld [vmem:[%s235 + $0x2f0] sm:$0xff]
        %v341 = vld [vmem:[%s235 + $0x2f8] sm:$0xff]
        %v342 = vld [vmem:[%s235 + $0x300] sm:$0xff]
        %v343 = vld [vmem:[%s235 + $0x308] sm:$0xff]
        %v344 = vld [vmem:[%s235 + $0x310] sm:$0xff]
        %v345 = vld [vmem:[%s235 + $0x318] sm:$0xff]
        %v346 = vld [vmem:[%s235 + $0x320] sm:$0xff]
        %v347 = vld [vmem:[%s235 + $0x328] sm:$0xff]
        %v348 = vld [vmem:[%s235 + $0x330] sm:$0xff]
        %v349 = vld [vmem:[%s235 + $0x338] sm:$0xff]
        %v350 = vld [vmem:[%s235 + $0x340] sm:$0xff]
        %v351 = vld [vmem:[%s235 + $0x348] sm:$0xff]
        %v352 = vld [vmem:[%s235 + $0x350] sm:$0xff]
        %v353 = vld [vmem:[%s235 + $0x358] sm:$0xff]
        %v354 = vld [vmem:[%s235 + $0x360] sm:$0xff]
        %v355 = vld [vmem:[%s235 + $0x368] sm:$0xff]
        %v356 = vld [vmem:[%s235 + $0x370] sm:$0xff]
        %v357 = vld [vmem:[%s235 + $0x378] sm:$0xff]
        %v358 = vld [vmem:[%s235 + $0x380] sm:$0xff]
        %v359 = vld [vmem:[%s235 + $0x388] sm:$0xff]
        %v360 = vld [vmem:[%s235 + $0x390] sm:$0xff]
        %v361 = vld [vmem:[%s235 + $0x398] sm:$0xff]
        %v362 = vld [vmem:[%s235 + $0x3a0] sm:$0xff]
        %v363 = vld [vmem:[%s235 + $0x3a8] sm:$0xff]
        %v364 = vld [vmem:[%s235 + $0x3b0] sm:$0xff]
        %v365 = vld [vmem:[%s235 + $0x3b8] sm:$0xff]
        %v366 = vld [vmem:[%s235 + $0x3c0] sm:$0xff]
        %v367 = vld [vmem:[%s235 + $0x3c8] sm:$0xff]
        %v368 = vld [vmem:[%s235 + $0x3d0] sm:$0xff]
        %v369 = vld [vmem:[%s235 + $0x3d8] sm:$0xff]
        %v370 = vld [vmem:[%s235 + $0x3e0] sm:$0xff]
        %v371 = vld [vmem:[%s235 + $0x3e8] sm:$0xff]
        %v372 = vld [vmem:[%s235 + $0x3f0] sm:$0xff]
        %v373 = vld [vmem:[%s235 + $0x3f8] sm:$0xff]
        %v374 = vld [vmem:[%s235 + $0x400] sm:$0xff]
        %v375 = vld [vmem:[%s235 + $0x408] sm:$0xff]
        %v376 = vld [vmem:[%s235 + $0x410] sm:$0xff]
        %v377 = vld [vmem:[%s235 + $0x418] sm:$0xff]
        %v378 = vld [vmem:[%s235 + $0x420] sm:$0xff]
        %v379 = vld [vmem:[%s235 + $0x428] sm:$0xff]
        %v380 = vld [vmem:[%s235 + $0x430] sm:$0xff]
        %v381 = vld [vmem:[%s235 + $0x438] sm:$0xff]
        %v382 = vld [vmem:[%s235 + $0x440] sm:$0xff]
        %v383 = vld [vmem:[%s235 + $0x448] sm:$0xff]
        %v384 = vld [vmem:[%s235 + $0x450] sm:$0xff]
        %v385 = vld [vmem:[%s235 + $0x458] sm:$0xff]
        %v386 = vld [vmem:[%s235 + $0x460] sm:$0xff]
        %v387 = vld [vmem:[%s235 + $0x468] sm:$0xff]
        %v388 = vld [vmem:[%s235 + $0x470] sm:$0xff]
        %v389 = vld [vmem:[%s235 + $0x478] sm:$0xff]
        %v390 = vld [vmem:[%s1] sm:$0xff]
        %v391 = vld [vmem:[%s1 + $0x8] sm:$0xff]
        %v392 = vld [vmem:[%s1 + $0x10] sm:$0xff]
        %v393 = vld [vmem:[%s1 + $0x18] sm:$0xff]
        %v394 = vld [vmem:[%s1 + $0x20] sm:$0xff]
        %v395 = vld [vmem:[%s1 + $0x28] sm:$0xff]
        %v396 = vld [vmem:[%s1 + $0x30] sm:$0xff]
        %v397 = vld [vmem:[%s1 + $0x38] sm:$0xff]
        %v398 = vld [vmem:[%s2] sm:$0x1]
        %v400 = vlaneseq
        %v401 = vshrl.u32 %v400, 7
        %v402 = vsub.s32 0, %v401
        %v403 = vrot.slane %v398, %v402
        %vm405 = vcmask 31744
        %v407 = vsel %vm405, %v246, 0
        %v410 = vsel %vm405, %v247, 0
        %v413 = vsel %vm405, %v248, 0
        %v416 = vsel %vm405, %v249, 0
        %v419 = vsel %vm405, %v250, 0
        %v422 = vsel %vm405, %v251, 0
        %v425 = vsel %vm405, %v252, 0
        %v428 = vsel %vm405, %v253, 0
        %v431 = vsel %vm405, %v254, 0
        %v434 = vsel %vm405, %v255, 0
        %v437 = vsel %vm405, %v256, 0
        %v440 = vsel %vm405, %v257, 0
        %v443 = vsel %vm405, %v258, 0
        %v446 = vsel %vm405, %v259, 0
        %v449 = vsel %vm405, %v260, 0
        %v452 = vsel %vm405, %v261, 0
        %v455 = vsel %vm405, %v262, 0
        %v458 = vsel %vm405, %v263, 0
        %v461 = vsel %vm405, %v264, 0
        %v464 = vsel %vm405, %v265, 0
        %v467 = vsel %vm405, %v266, 0
        %v470 = vsel %vm405, %v267, 0
        %v473 = vsel %vm405, %v268, 0
        %v476 = vsel %vm405, %v269, 0
        %v479 = vsel %vm405, %v270, 0
        %v482 = vsel %vm405, %v271, 0
        %v485 = vsel %vm405, %v272, 0
        %v488 = vsel %vm405, %v273, 0
        %v491 = vsel %vm405, %v274, 0
        %v494 = vsel %vm405, %v275, 0
        %v497 = vsel %vm405, %v276, 0
        %v500 = vsel %vm405, %v277, 0
        %v503 = vsel %vm405, %v278, 0
        %v506 = vsel %vm405, %v279, 0
        %v509 = vsel %vm405, %v280, 0
        %v512 = vsel %vm405, %v281, 0
        %v515 = vsel %vm405, %v282, 0
        %v518 = vsel %vm405, %v283, 0
        %v521 = vsel %vm405, %v284, 0
        %v524 = vsel %vm405, %v285, 0
        %v527 = vsel %vm405, %v286, 0
        %v530 = vsel %vm405, %v287, 0
        %v533 = vsel %vm405, %v288, 0
        %v536 = vsel %vm405, %v289, 0
        %v539 = vsel %vm405, %v290, 0
        %v542 = vsel %vm405, %v291, 0
        %v545 = vsel %vm405, %v292, 0
        %v548 = vsel %vm405, %v293, 0
        %v551 = vsel %vm405, %v294, 0
        %v554 = vsel %vm405, %v295, 0
        %v557 = vsel %vm405, %v296, 0
        %v560 = vsel %vm405, %v297, 0
        %v563 = vsel %vm405, %v298, 0
        %v566 = vsel %vm405, %v299, 0
        %v569 = vsel %vm405, %v300, 0
        %v572 = vsel %vm405, %v301, 0
        %v575 = vsel %vm405, %v302, 0
        %v578 = vsel %vm405, %v303, 0
        %v581 = vsel %vm405, %v304, 0
        %v584 = vsel %vm405, %v305, 0
        %v587 = vsel %vm405, %v306, 0
        %v590 = vsel %vm405, %v307, 0
        %v593 = vsel %vm405, %v308, 0
        %v596 = vsel %vm405, %v309, 0
        %v599 = vsel %vm405, %v310, 0
        %v602 = vsel %vm405, %v311, 0
        %v605 = vsel %vm405, %v312, 0
        %v608 = vsel %vm405, %v313, 0
        %v611 = vsel %vm405, %v314, 0
        %v614 = vsel %vm405, %v315, 0
        %v617 = vsel %vm405, %v316, 0
        %v620 = vsel %vm405, %v317, 0
        %v623 = vsel %vm405, %v318, 0
        %v626 = vsel %vm405, %v319, 0
        %v629 = vsel %vm405, %v320, 0
        %v632 = vsel %vm405, %v321, 0
        %v635 = vsel %vm405, %v322, 0
        %v638 = vsel %vm405, %v323, 0
        %v641 = vsel %vm405, %v324, 0
        %v644 = vsel %vm405, %v325, 0
        %v647 = vsel %vm405, %v326, 0
        %v650 = vsel %vm405, %v327, 0
        %v653 = vsel %vm405, %v328, 0
        %v656 = vsel %vm405, %v329, 0
        %v659 = vsel %vm405, %v330, 0
        %v662 = vsel %vm405, %v331, 0
        %v665 = vsel %vm405, %v332, 0
        %v668 = vsel %vm405, %v333, 0
        %v671 = vsel %vm405, %v334, 0
        %v674 = vsel %vm405, %v335, 0
        %v677 = vsel %vm405, %v336, 0
        %v680 = vsel %vm405, %v337, 0
        %v683 = vsel %vm405, %v338, 0
        %v686 = vsel %vm405, %v339, 0
        %v689 = vsel %vm405, %v340, 0
        %v692 = vsel %vm405, %v341, 0
        %v695 = vsel %vm405, %v342, 0
        %v698 = vsel %vm405, %v343, 0
        %v701 = vsel %vm405, %v344, 0
        %v704 = vsel %vm405, %v345, 0
        %v707 = vsel %vm405, %v346, 0
        %v710 = vsel %vm405, %v347, 0
        %v713 = vsel %vm405, %v348, 0
        %v716 = vsel %vm405, %v349, 0
        %v719 = vsel %vm405, %v350, 0
        %v722 = vsel %vm405, %v351, 0
        %v725 = vsel %vm405, %v352, 0
        %v728 = vsel %vm405, %v353, 0
        %v731 = vsel %vm405, %v354, 0
        %v734 = vsel %vm405, %v355, 0
        %v737 = vsel %vm405, %v356, 0
        %v740 = vsel %vm405, %v357, 0
        %v743 = vsel %vm405, %v358, 0
        %v746 = vsel %vm405, %v359, 0
        %v749 = vsel %vm405, %v360, 0
        %v752 = vsel %vm405, %v361, 0
        %v755 = vsel %vm405, %v362, 0
        %v758 = vsel %vm405, %v363, 0
        %v761 = vsel %vm405, %v364, 0
        %v764 = vsel %vm405, %v365, 0
        %v767 = vsel %vm405, %v366, 0
        %v770 = vsel %vm405, %v367, 0
        %v773 = vsel %vm405, %v368, 0
        %v776 = vsel %vm405, %v369, 0
        %v779 = vsel %vm405, %v370, 0
        %v782 = vsel %vm405, %v371, 0
        %v785 = vsel %vm405, %v372, 0
        %v788 = vsel %vm405, %v373, 0
        %v791 = vsel %vm405, %v374, 0
        %v794 = vsel %vm405, %v375, 0
        %v797 = vsel %vm405, %v376, 0
        %v800 = vsel %vm405, %v377, 0
        %v803 = vsel %vm405, %v378, 0
        %v806 = vsel %vm405, %v379, 0
        %v809 = vsel %vm405, %v380, 0
        %v812 = vsel %vm405, %v381, 0
        %v815 = vsel %vm405, %v382, 0
        %v818 = vsel %vm405, %v383, 0
        %v821 = vsel %vm405, %v384, 0
        %v824 = vsel %vm405, %v385, 0
        %v827 = vsel %vm405, %v386, 0
        %v830 = vsel %vm405, %v387, 0
        %v833 = vsel %vm405, %v388, 0
        %v836 = vsel %vm405, %v389, 0
        %v839 = vsel %vm405, %v390, 0
        %v842 = vsel %vm405, %v391, 0
        %v845 = vsel %vm405, %v392, 0
        %v848 = vsel %vm405, %v393, 0
        %v851 = vsel %vm405, %v394, 0
        %v854 = vsel %vm405, %v395, 0
        %v857 = vsel %vm405, %v396, 0
        %v860 = vsel %vm405, %v397, 0
        %862 = vmatprep.subr.mxu0 0.0
        %863 = vmatpush1.xpose.msra.mxu0 %v839
        %864 = vmatprep.subr.mxu0 0.0
        %865 = vmatpush1.xpose.msra.mxu0 %v842
        %866 = vmatprep.subr.mxu0 0.0
        %867 = vmatpush1.xpose.msra.mxu0 %v845
        %868 = vmatprep.subr.mxu0 0.0
        %869 = vmatpush1.xpose.msra.mxu0 %v848
        %870 = vmatprep.subr.mxu0 0.0
        %871 = vmatpush1.xpose.msra.mxu0 %v851
        %872 = vmatprep.subr.mxu0 0.0
        %873 = vmatpush1.xpose.msra.mxu0 %v854
        %874 = vmatprep.subr.mxu0 0.0
        %875 = vmatpush1.xpose.msra.mxu0 %v857
        %876 = vmatprep.subr.mxu0 0.0
        %877 = vmatpush1.xpose.msra.mxu0 %v860
        %878 = vmatprep.subr.mxu0 0.0
        %879 = vmatpush1.xpose.msra.mxu0 0.0
        %880 = vmatprep.subr.mxu0 0.0
        %881 = vmatpush1.xpose.msra.mxu0 0.0
        %882 = vmatprep.subr.mxu0 0.0
        %883 = vmatpush1.xpose.msra.mxu0 0.0
        %884 = vmatprep.subr.mxu0 0.0
        %885 = vmatpush1.xpose.msra.mxu0 0.0
        %886 = vmatprep.subr.mxu0 0.0
        %887 = vmatpush1.xpose.msra.mxu0 0.0
        %888 = vmatprep.subr.mxu0 0.0
        %889 = vmatpush1.xpose.msra.mxu0 0.0
        %890 = vmatprep.subr.mxu0 0.0
        %891 = vmatpush1.xpose.msra.mxu0 0.0
        %892 = vmatprep.subr.mxu0 0.0
        %893 = vmatpush1.xpose.msra.mxu0 0.0
        %894 = vmatprep.subr.mxu0 0.0
        %895 = vmatpush1.xpose.msra.mxu0 0.0
        %896 = vmatprep.subr.mxu0 0.0
        %897 = vmatpush1.xpose.msra.mxu0 0.0
        %898 = vmatprep.subr.mxu0 0.0
        %899 = vmatpush1.xpose.msra.mxu0 0.0
        %900 = vmatprep.subr.mxu0 0.0
        %901 = vmatpush1.xpose.msra.mxu0 0.0
        %902 = vmatprep.subr.mxu0 0.0
        %903 = vmatpush1.xpose.msra.mxu0 0.0
        %904 = vmatprep.subr.mxu0 0.0
        %905 = vmatpush1.xpose.msra.mxu0 0.0
        %906 = vmatprep.subr.mxu0 0.0
        %907 = vmatpush1.xpose.msra.mxu0 0.0
        %908 = vmatprep.subr.mxu0 0.0
        %909 = vmatpush1.xpose.msra.mxu0 0.0
        %910 = vmatprep.subr.mxu0 0.0
        %911 = vmatpush1.xpose.msra.mxu0 0.0
        %912 = vmatprep.subr.mxu0 0.0
        %913 = vmatpush1.xpose.msra.mxu0 0.0
        %914 = vmatprep.subr.mxu0 0.0
        %915 = vmatpush1.xpose.msra.mxu0 0.0
        %916 = vmatprep.subr.mxu0 0.0
        %917 = vmatpush1.xpose.msra.mxu0 0.0
        %918 = vmatprep.subr.mxu0 0.0
        %919 = vmatpush1.xpose.msra.mxu0 0.0
        %920 = vmatprep.subr.mxu0 0.0
        %921 = vmatpush1.xpose.msra.mxu0 0.0
        %922 = vmatprep.subr.mxu0 0.0
        %923 = vmatpush1.xpose.msra.mxu0 0.0
        %924 = vmatprep.subr.mxu0 0.0
        %925 = vmatpush1.xpose.msra.mxu0 0.0
        %926 = vmatprep.mubr.f32.mxu0 0.0
        %927 = vmatmul.mubr.f32.gmra.mrb[0].mxu0 %v407
        %v928 = vpop.f32.mrb[0].mxu0
        %v929 = vadd.f32 %v403, %v928
        %v930 = vpop.f32.mrb[0].mxu0
        %931 = vmatprep.mubr.f32.mxu0 0.0
        %932 = vmatmul.mubr.f32.gmra.mrb[0].mxu0 %v410
        %v933 = vpop.f32.mrb[0].mxu0
        %v934 = vadd.f32 %v403, %v933
        %v935 = vpop.f32.mrb[0].mxu0
        %936 = vmatprep.mubr.f32.mxu0 0.0
        %937 = vmatmul.mubr.f32.gmra.mrb[0].mxu0 %v413
        %v938 = vpop.f32.mrb[0].mxu0
        %v939 = vadd.f32 %v403, %v938
        %v940 = vpop.f32.mrb[0].mxu0
        %941 = vmatprep.mubr.f32.mxu0 0.0
        %942 = vmatmul.mubr.f32.gmra.mrb[0].mxu0 %v416
        %v943 = vpop.f32.mrb[0].mxu0
        %v944 = vadd.f32 %v403, %v943
        %v945 = vpop.f32.mrb[0].mxu0
        %946 = vmatprep.mubr.f32.mxu0 0.0
        %947 = vmatmul.mubr.f32.gmra.mrb[0].mxu0 %v419
        %v948 = vpop.f32.mrb[0].mxu0
        %v949 = vadd.f32 %v403, %v948
        %v950 = vpop.f32.mrb[0].mxu0
        %951 = vmatprep.mubr.f32.mxu0 0.0
        %952 = vmatmul.mubr.f32.gmra.mrb[0].mxu0 %v422
        %v953 = vpop.f32.mrb[0].mxu0
        %v954 = vadd.f32 %v403, %v953
        %v955 = vpop.f32.mrb[0].mxu0
        %956 = vmatprep.mubr.f32.mxu0 0.0
        %957 = vmatmul.mubr.f32.gmra.mrb[0].mxu0 %v425
        %v958 = vpop.f32.mrb[0].mxu0
        %v959 = vadd.f32 %v403, %v958
        %v960 = vpop.f32.mrb[0].mxu0
        %961 = vmatprep.mubr.f32.mxu0 0.0
        %962 = vmatmul.mubr.f32.gmra.mrb[0].mxu0 %v428
        %v963 = vpop.f32.mrb[0].mxu0
        %v964 = vadd.f32 %v403, %v963
        %v965 = vpop.f32.mrb[0].mxu0
        %966 = vmatprep.mubr.f32.mxu0 0.0
        %967 = vmatmul.mubr.f32.gmra.mrb[0].mxu0 %v431
        %v968 = vpop.f32.mrb[0].mxu0
        %v969 = vadd.f32 %v403, %v968
        %v970 = vpop.f32.mrb[0].mxu0
        %971 = vmatprep.mubr.f32.mxu0 0.0
        %972 = vmatmul.mubr.f32.gmra.mrb[0].mxu0 %v434
        %v973 = vpop.f32.mrb[0].mxu0
        %v974 = vadd.f32 %v403, %v973
        %v975 = vpop.f32.mrb[0].mxu0
        %976 = vmatprep.mubr.f32.mxu0 0.0
        %977 = vmatmul.mubr.f32.gmra.mrb[0].mxu0 %v437
        %v978 = vpop.f32.mrb[0].mxu0
        %v979 = vadd.f32 %v403, %v978
        %v980 = vpop.f32.mrb[0].mxu0
        %981 = vmatprep.mubr.f32.mxu0 0.0
        %982 = vmatmul.mubr.f32.gmra.mrb[0].mxu0 %v440
        %v983 = vpop.f32.mrb[0].mxu0
        %v984 = vadd.f32 %v403, %v983
        %v985 = vpop.f32.mrb[0].mxu0
        %986 = vmatprep.mubr.f32.mxu0 0.0
        %987 = vmatmul.mubr.f32.gmra.mrb[0].mxu0 %v443
        %v988 = vpop.f32.mrb[0].mxu0
        %v989 = vadd.f32 %v403, %v988
        %v990 = vpop.f32.mrb[0].mxu0
        %991 = vmatprep.mubr.f32.mxu0 0.0
        %992 = vmatmul.mubr.f32.gmra.mrb[0].mxu0 %v446
        %v993 = vpop.f32.mrb[0].mxu0
        %v994 = vadd.f32 %v403, %v993
        %v995 = vpop.f32.mrb[0].mxu0
        %996 = vmatprep.mubr.f32.mxu0 0.0
        %997 = vmatmul.mubr.f32.gmra.mrb[0].mxu0 %v449
        %v998 = vpop.f32.mrb[0].mxu0
        %v999 = vadd.f32 %v403, %v998
        %v1000 = vpop.f32.mrb[0].mxu0
        %1001 = vmatprep.mubr.f32.mxu0 0.0
        %1002 = vmatmul.mubr.f32.gmra.mrb[0].mxu0 %v452
        %v1003 = vpop.f32.mrb[0].mxu0
        %v1004 = vadd.f32 %v403, %v1003
        %v1005 = vpop.f32.mrb[0].mxu0
        %1006 = vmatprep.mubr.f32.mxu0 0.0
        %1007 = vmatmul.mubr.f32.gmra.mrb[0].mxu0 %v455
        %v1008 = vpop.f32.mrb[0].mxu0
        %v1009 = vadd.f32 %v403, %v1008
        %v1010 = vpop.f32.mrb[0].mxu0
        %1011 = vmatprep.mubr.f32.mxu0 0.0
        %1012 = vmatmul.mubr.f32.gmra.mrb[0].mxu0 %v458
        %v1013 = vpop.f32.mrb[0].mxu0
        %v1014 = vadd.f32 %v403, %v1013
        %v1015 = vpop.f32.mrb[0].mxu0
        %1016 = vmatprep.mubr.f32.mxu0 0.0
        %1017 = vmatmul.mubr.f32.gmra.mrb[0].mxu0 %v461
        %v1018 = vpop.f32.mrb[0].mxu0
        %v1019 = vadd.f32 %v403, %v1018
        %v1020 = vpop.f32.mrb[0].mxu0
        %1021 = vmatprep.mubr.f32.mxu0 0.0
        %1022 = vmatmul.mubr.f32.gmra.mrb[0].mxu0 %v464
        %v1023 = vpop.f32.mrb[0].mxu0
        %v1024 = vadd.f32 %v403, %v1023
        %v1025 = vpop.f32.mrb[0].mxu0
        %1026 = vmatprep.mubr.f32.mxu0 0.0
        %1027 = vmatmul.mubr.f32.gmra.mrb[0].mxu0 %v467
        %v1028 = vpop.f32.mrb[0].mxu0
        %v1029 = vadd.f32 %v403, %v1028
        %v1030 = vpop.f32.mrb[0].mxu0
        %1031 = vmatprep.mubr.f32.mxu0 0.0
        %1032 = vmatmul.mubr.f32.gmra.mrb[0].mxu0 %v470
        %v1033 = vpop.f32.mrb[0].mxu0
        %v1034 = vadd.f32 %v403, %v1033
        %v1035 = vpop.f32.mrb[0].mxu0
        %1036 = vmatprep.mubr.f32.mxu0 0.0
        %1037 = vmatmul.mubr.f32.gmra.mrb[0].mxu0 %v473
        %v1038 = vpop.f32.mrb[0].mxu0
        %v1039 = vadd.f32 %v403, %v1038
        %v1040 = vpop.f32.mrb[0].mxu0
        %1041 = vmatprep.mubr.f32.mxu0 0.0
        %1042 = vmatmul.mubr.f32.gmra.mrb[0].mxu0 %v476
        %v1043 = vpop.f32.mrb[0].mxu0
        %v1044 = vadd.f32 %v403, %v1043
        %v1045 = vpop.f32.mrb[0].mxu0
        %1046 = vmatprep.mubr.f32.mxu0 0.0
        %1047 = vmatmul.mubr.f32.gmra.mrb[0].mxu0 %v479
        %v1048 = vpop.f32.mrb[0].mxu0
        %v1049 = vadd.f32 %v403, %v1048
        %v1050 = vpop.f32.mrb[0].mxu0
        %1051 = vmatprep.mubr.f32.mxu0 0.0
        %1052 = vmatmul.mubr.f32.gmra.mrb[0].mxu0 %v482
        %v1053 = vpop.f32.mrb[0].mxu0
        %v1054 = vadd.f32 %v403, %v1053
        %v1055 = vpop.f32.mrb[0].mxu0
        %1056 = vmatprep.mubr.f32.mxu0 0.0
        %1057 = vmatmul.mubr.f32.gmra.mrb[0].mxu0 %v485
        %v1058 = vpop.f32.mrb[0].mxu0
        %v1059 = vadd.f32 %v403, %v1058
        %v1060 = vpop.f32.mrb[0].mxu0
        %1061 = vmatprep.mubr.f32.mxu0 0.0
        %1062 = vmatmul.mubr.f32.gmra.mrb[0].mxu0 %v488
        %v1063 = vpop.f32.mrb[0].mxu0
        %v1064 = vadd.f32 %v403, %v1063
        %v1065 = vpop.f32.mrb[0].mxu0
        %1066 = vmatprep.mubr.f32.mxu0 0.0
        %1067 = vmatmul.mubr.f32.gmra.mrb[0].mxu0 %v491
        %v1068 = vpop.f32.mrb[0].mxu0
        %v1069 = vadd.f32 %v403, %v1068
        %v1070 = vpop.f32.mrb[0].mxu0
        %1071 = vmatprep.mubr.f32.mxu0 0.0
        %1072 = vmatmul.mubr.f32.gmra.mrb[0].mxu0 %v494
        %v1073 = vpop.f32.mrb[0].mxu0
        %v1074 = vadd.f32 %v403, %v1073
        %v1075 = vpop.f32.mrb[0].mxu0
        %1076 = vmatprep.mubr.f32.mxu0 0.0
        %1077 = vmatmul.mubr.f32.gmra.mrb[0].mxu0 %v497
        %v1078 = vpop.f32.mrb[0].mxu0
        %v1079 = vadd.f32 %v403, %v1078
        %v1080 = vpop.f32.mrb[0].mxu0
        %1081 = vmatprep.mubr.f32.mxu0 0.0
        %1082 = vmatmul.mubr.f32.gmra.mrb[0].mxu0 %v500
        %v1083 = vpop.f32.mrb[0].mxu0
        %v1084 = vadd.f32 %v403, %v1083
        %v1085 = vpop.f32.mrb[0].mxu0
        %1086 = vmatprep.mubr.f32.mxu0 0.0
        %1087 = vmatmul.mubr.f32.gmra.mrb[0].mxu0 %v503
        %v1088 = vpop.f32.mrb[0].mxu0
        %v1089 = vadd.f32 %v403, %v1088
        %v1090 = vpop.f32.mrb[0].mxu0
        %1091 = vmatprep.mubr.f32.mxu0 0.0
        %1092 = vmatmul.mubr.f32.gmra.mrb[0].mxu0 %v506
        %v1093 = vpop.f32.mrb[0].mxu0
        %v1094 = vadd.f32 %v403, %v1093
        %v1095 = vpop.f32.mrb[0].mxu0
        %1096 = vmatprep.mubr.f32.mxu0 0.0
        %1097 = vmatmul.mubr.f32.gmra.mrb[0].mxu0 %v509
        %v1098 = vpop.f32.mrb[0].mxu0
        %v1099 = vadd.f32 %v403, %v1098
        %v1100 = vpop.f32.mrb[0].mxu0
        %1101 = vmatprep.mubr.f32.mxu0 0.0
        %1102 = vmatmul.mubr.f32.gmra.mrb[0].mxu0 %v512
        %v1103 = vpop.f32.mrb[0].mxu0
        %v1104 = vadd.f32 %v403, %v1103
        %v1105 = vpop.f32.mrb[0].mxu0
        %1106 = vmatprep.mubr.f32.mxu0 0.0
        %1107 = vmatmul.mubr.f32.gmra.mrb[0].mxu0 %v515
        %v1108 = vpop.f32.mrb[0].mxu0
        %v1109 = vadd.f32 %v403, %v1108
        %v1110 = vpop.f32.mrb[0].mxu0
        %1111 = vmatprep.mubr.f32.mxu0 0.0
        %1112 = vmatmul.mubr.f32.gmra.mrb[0].mxu0 %v518
        %v1113 = vpop.f32.mrb[0].mxu0
        %v1114 = vadd.f32 %v403, %v1113
        %v1115 = vpop.f32.mrb[0].mxu0
        %1116 = vmatprep.mubr.f32.mxu0 0.0
        %1117 = vmatmul.mubr.f32.gmra.mrb[0].mxu0 %v521
        %v1118 = vpop.f32.mrb[0].mxu0
        %v1119 = vadd.f32 %v403, %v1118
        %v1120 = vpop.f32.mrb[0].mxu0
        %1121 = vmatprep.mubr.f32.mxu0 0.0
        %1122 = vmatmul.mubr.f32.gmra.mrb[0].mxu0 %v524
        %v1123 = vpop.f32.mrb[0].mxu0
        %v1124 = vadd.f32 %v403, %v1123
        %v1125 = vpop.f32.mrb[0].mxu0
        %1126 = vmatprep.mubr.f32.mxu0 0.0
        %1127 = vmatmul.mubr.f32.gmra.mrb[0].mxu0 %v527
        %v1128 = vpop.f32.mrb[0].mxu0
        %v1129 = vadd.f32 %v403, %v1128
        %v1130 = vpop.f32.mrb[0].mxu0
        %1131 = vmatprep.mubr.f32.mxu0 0.0
        %1132 = vmatmul.mubr.f32.gmra.mrb[0].mxu0 %v530
        %v1133 = vpop.f32.mrb[0].mxu0
        %v1134 = vadd.f32 %v403, %v1133
        %v1135 = vpop.f32.mrb[0].mxu0
        %1136 = vmatprep.mubr.f32.mxu0 0.0
        %1137 = vmatmul.mubr.f32.gmra.mrb[0].mxu0 %v533
        %v1138 = vpop.f32.mrb[0].mxu0
        %v1139 = vadd.f32 %v403, %v1138
        %v1140 = vpop.f32.mrb[0].mxu0
        %1141 = vmatprep.mubr.f32.mxu0 0.0
        %1142 = vmatmul.mubr.f32.gmra.mrb[0].mxu0 %v536
        %v1143 = vpop.f32.mrb[0].mxu0
        %v1144 = vadd.f32 %v403, %v1143
        %v1145 = vpop.f32.mrb[0].mxu0
        %1146 = vmatprep.mubr.f32.mxu0 0.0
        %1147 = vmatmul.mubr.f32.gmra.mrb[0].mxu0 %v539
        %v1148 = vpop.f32.mrb[0].mxu0
        %v1149 = vadd.f32 %v403, %v1148
        %v1150 = vpop.f32.mrb[0].mxu0
        %1151 = vmatprep.mubr.f32.mxu0 0.0
        %1152 = vmatmul.mubr.f32.gmra.mrb[0].mxu0 %v542
        %v1153 = vpop.f32.mrb[0].mxu0
        %v1154 = vadd.f32 %v403, %v1153
        %v1155 = vpop.f32.mrb[0].mxu0
        %1156 = vmatprep.mubr.f32.mxu0 0.0
        %1157 = vmatmul.mubr.f32.gmra.mrb[0].mxu0 %v545
        %v1158 = vpop.f32.mrb[0].mxu0
        %v1159 = vadd.f32 %v403, %v1158
        %v1160 = vpop.f32.mrb[0].mxu0
        %1161 = vmatprep.mubr.f32.mxu0 0.0
        %1162 = vmatmul.mubr.f32.gmra.mrb[0].mxu0 %v548
        %v1163 = vpop.f32.mrb[0].mxu0
        %v1164 = vadd.f32 %v403, %v1163
        %v1165 = vpop.f32.mrb[0].mxu0
        %1166 = vmatprep.mubr.f32.mxu0 0.0
        %1167 = vmatmul.mubr.f32.gmra.mrb[0].mxu0 %v551
        %v1168 = vpop.f32.mrb[0].mxu0
        %v1169 = vadd.f32 %v403, %v1168
        %v1170 = vpop.f32.mrb[0].mxu0
        %1171 = vmatprep.mubr.f32.mxu0 0.0
        %1172 = vmatmul.mubr.f32.gmra.mrb[0].mxu0 %v554
        %v1173 = vpop.f32.mrb[0].mxu0
        %v1174 = vadd.f32 %v403, %v1173
        %v1175 = vpop.f32.mrb[0].mxu0
        %1176 = vmatprep.mubr.f32.mxu0 0.0
        %1177 = vmatmul.mubr.f32.gmra.mrb[0].mxu0 %v557
        %v1178 = vpop.f32.mrb[0].mxu0
        %v1179 = vadd.f32 %v403, %v1178
        %v1180 = vpop.f32.mrb[0].mxu0
        %1181 = vmatprep.mubr.f32.mxu0 0.0
        %1182 = vmatmul.mubr.f32.gmra.mrb[0].mxu0 %v560
        %v1183 = vpop.f32.mrb[0].mxu0
        %v1184 = vadd.f32 %v403, %v1183
        %v1185 = vpop.f32.mrb[0].mxu0
        %1186 = vmatprep.mubr.f32.mxu0 0.0
        %1187 = vmatmul.mubr.f32.gmra.mrb[0].mxu0 %v563
        %v1188 = vpop.f32.mrb[0].mxu0
        %v1189 = vadd.f32 %v403, %v1188
        %v1190 = vpop.f32.mrb[0].mxu0
        %1191 = vmatprep.mubr.f32.mxu0 0.0
        %1192 = vmatmul.mubr.f32.gmra.mrb[0].mxu0 %v566
        %v1193 = vpop.f32.mrb[0].mxu0
        %v1194 = vadd.f32 %v403, %v1193
        %v1195 = vpop.f32.mrb[0].mxu0
        %1196 = vmatprep.mubr.f32.mxu0 0.0
        %1197 = vmatmul.mubr.f32.gmra.mrb[0].mxu0 %v569
        %v1198 = vpop.f32.mrb[0].mxu0
        %v1199 = vadd.f32 %v403, %v1198
        %v1200 = vpop.f32.mrb[0].mxu0
        %1201 = vmatprep.mubr.f32.mxu0 0.0
        %1202 = vmatmul.mubr.f32.gmra.mrb[0].mxu0 %v572
        %v1203 = vpop.f32.mrb[0].mxu0
        %v1204 = vadd.f32 %v403, %v1203
        %v1205 = vpop.f32.mrb[0].mxu0
        %1206 = vmatprep.mubr.f32.mxu0 0.0
        %1207 = vmatmul.mubr.f32.gmra.mrb[0].mxu0 %v575
        %v1208 = vpop.f32.mrb[0].mxu0
        %v1209 = vadd.f32 %v403, %v1208
        %v1210 = vpop.f32.mrb[0].mxu0
        %1211 = vmatprep.mubr.f32.mxu0 0.0
        %1212 = vmatmul.mubr.f32.gmra.mrb[0].mxu0 %v578
        %v1213 = vpop.f32.mrb[0].mxu0
        %v1214 = vadd.f32 %v403, %v1213
        %v1215 = vpop.f32.mrb[0].mxu0
        %1216 = vmatprep.mubr.f32.mxu0 0.0
        %1217 = vmatmul.mubr.f32.gmra.mrb[0].mxu0 %v581
        %v1218 = vpop.f32.mrb[0].mxu0
        %v1219 = vadd.f32 %v403, %v1218
        %v1220 = vpop.f32.mrb[0].mxu0
        %1221 = vmatprep.mubr.f32.mxu0 0.0
        %1222 = vmatmul.mubr.f32.gmra.mrb[0].mxu0 %v584
        %v1223 = vpop.f32.mrb[0].mxu0
        %v1224 = vadd.f32 %v403, %v1223
        %v1225 = vpop.f32.mrb[0].mxu0
        %1226 = vmatprep.mubr.f32.mxu0 0.0
        %1227 = vmatmul.mubr.f32.gmra.mrb[0].mxu0 %v587
        %v1228 = vpop.f32.mrb[0].mxu0
        %v1229 = vadd.f32 %v403, %v1228
        %v1230 = vpop.f32.mrb[0].mxu0
        %1231 = vmatprep.mubr.f32.mxu0 0.0
        %1232 = vmatmul.mubr.f32.gmra.mrb[0].mxu0 %v590
        %v1233 = vpop.f32.mrb[0].mxu0
        %v1234 = vadd.f32 %v403, %v1233
        %v1235 = vpop.f32.mrb[0].mxu0
        %1236 = vmatprep.mubr.f32.mxu0 0.0
        %1237 = vmatmul.mubr.f32.gmra.mrb[0].mxu0 %v593
        %v1238 = vpop.f32.mrb[0].mxu0
        %v1239 = vadd.f32 %v403, %v1238
        %v1240 = vpop.f32.mrb[0].mxu0
        %1241 = vmatprep.mubr.f32.mxu0 0.0
        %1242 = vmatmul.mubr.f32.gmra.mrb[0].mxu0 %v596
        %v1243 = vpop.f32.mrb[0].mxu0
        %v1244 = vadd.f32 %v403, %v1243
        %v1245 = vpop.f32.mrb[0].mxu0
        %1246 = vmatprep.mubr.f32.mxu0 0.0
        %1247 = vmatmul.mubr.f32.gmra.mrb[0].mxu0 %v599
        %v1248 = vpop.f32.mrb[0].mxu0
        %v1249 = vadd.f32 %v403, %v1248
        %v1250 = vpop.f32.mrb[0].mxu0
        %1251 = vmatprep.mubr.f32.mxu0 0.0
        %1252 = vmatmul.mubr.f32.gmra.mrb[0].mxu0 %v602
        %v1253 = vpop.f32.mrb[0].mxu0
        %v1254 = vadd.f32 %v403, %v1253
        %v1255 = vpop.f32.mrb[0].mxu0
        %1256 = vmatprep.mubr.f32.mxu0 0.0
        %1257 = vmatmul.mubr.f32.gmra.mrb[0].mxu0 %v605
        %v1258 = vpop.f32.mrb[0].mxu0
        %v1259 = vadd.f32 %v403, %v1258
        %v1260 = vpop.f32.mrb[0].mxu0
        %1261 = vmatprep.mubr.f32.mxu0 0.0
        %1262 = vmatmul.mubr.f32.gmra.mrb[0].mxu0 %v608
        %v1263 = vpop.f32.mrb[0].mxu0
        %v1264 = vadd.f32 %v403, %v1263
        %v1265 = vpop.f32.mrb[0].mxu0
        %1266 = vmatprep.mubr.f32.mxu0 0.0
        %1267 = vmatmul.mubr.f32.gmra.mrb[0].mxu0 %v611
        %v1268 = vpop.f32.mrb[0].mxu0
        %v1269 = vadd.f32 %v403, %v1268
        %v1270 = vpop.f32.mrb[0].mxu0
        %1271 = vmatprep.mubr.f32.mxu0 0.0
        %1272 = vmatmul.mubr.f32.gmra.mrb[0].mxu0 %v614
        %v1273 = vpop.f32.mrb[0].mxu0
        %v1274 = vadd.f32 %v403, %v1273
        %v1275 = vpop.f32.mrb[0].mxu0
        %1276 = vmatprep.mubr.f32.mxu0 0.0
        %1277 = vmatmul.mubr.f32.gmra.mrb[0].mxu0 %v617
        %v1278 = vpop.f32.mrb[0].mxu0
        %v1279 = vadd.f32 %v403, %v1278
        %v1280 = vpop.f32.mrb[0].mxu0
        %1281 = vmatprep.mubr.f32.mxu0 0.0
        %1282 = vmatmul.mubr.f32.gmra.mrb[0].mxu0 %v620
        %v1283 = vpop.f32.mrb[0].mxu0
        %v1284 = vadd.f32 %v403, %v1283
        %v1285 = vpop.f32.mrb[0].mxu0
        %1286 = vmatprep.mubr.f32.mxu0 0.0
        %1287 = vmatmul.mubr.f32.gmra.mrb[0].mxu0 %v623
        %v1288 = vpop.f32.mrb[0].mxu0
        %v1289 = vadd.f32 %v403, %v1288
        %v1290 = vpop.f32.mrb[0].mxu0
        %1291 = vmatprep.mubr.f32.mxu0 0.0
        %1292 = vmatmul.mubr.f32.gmra.mrb[0].mxu0 %v626
        %v1293 = vpop.f32.mrb[0].mxu0
        %v1294 = vadd.f32 %v403, %v1293
        %v1295 = vpop.f32.mrb[0].mxu0
        %1296 = vmatprep.mubr.f32.mxu0 0.0
        %1297 = vmatmul.mubr.f32.gmra.mrb[0].mxu0 %v629
        %v1298 = vpop.f32.mrb[0].mxu0
        %v1299 = vadd.f32 %v403, %v1298
        %v1300 = vpop.f32.mrb[0].mxu0
        %1301 = vmatprep.mubr.f32.mxu0 0.0
        %1302 = vmatmul.mubr.f32.gmra.mrb[0].mxu0 %v632
        %v1303 = vpop.f32.mrb[0].mxu0
        %v1304 = vadd.f32 %v403, %v1303
        %v1305 = vpop.f32.mrb[0].mxu0
        %1306 = vmatprep.mubr.f32.mxu0 0.0
        %1307 = vmatmul.mubr.f32.gmra.mrb[0].mxu0 %v635
        %v1308 = vpop.f32.mrb[0].mxu0
        %v1309 = vadd.f32 %v403, %v1308
        %v1310 = vpop.f32.mrb[0].mxu0
        %1311 = vmatprep.mubr.f32.mxu0 0.0
        %1312 = vmatmul.mubr.f32.gmra.mrb[0].mxu0 %v638
        %v1313 = vpop.f32.mrb[0].mxu0
        %v1314 = vadd.f32 %v403, %v1313
        %v1315 = vpop.f32.mrb[0].mxu0
        %1316 = vmatprep.mubr.f32.mxu0 0.0
        %1317 = vmatmul.mubr.f32.gmra.mrb[0].mxu0 %v641
        %v1318 = vpop.f32.mrb[0].mxu0
        %v1319 = vadd.f32 %v403, %v1318
        %v1320 = vpop.f32.mrb[0].mxu0
        %1321 = vmatprep.mubr.f32.mxu0 0.0
        %1322 = vmatmul.mubr.f32.gmra.mrb[0].mxu0 %v644
        %v1323 = vpop.f32.mrb[0].mxu0
        %v1324 = vadd.f32 %v403, %v1323
        %v1325 = vpop.f32.mrb[0].mxu0
        %1326 = vmatprep.mubr.f32.mxu0 0.0
        %1327 = vmatmul.mubr.f32.gmra.mrb[0].mxu0 %v647
        %v1328 = vpop.f32.mrb[0].mxu0
        %v1329 = vadd.f32 %v403, %v1328
        %v1330 = vpop.f32.mrb[0].mxu0
        %1331 = vmatprep.mubr.f32.mxu0 0.0
        %1332 = vmatmul.mubr.f32.gmra.mrb[0].mxu0 %v650
        %v1333 = vpop.f32.mrb[0].mxu0
        %v1334 = vadd.f32 %v403, %v1333
        %v1335 = vpop.f32.mrb[0].mxu0
        %1336 = vmatprep.mubr.f32.mxu0 0.0
        %1337 = vmatmul.mubr.f32.gmra.mrb[0].mxu0 %v653
        %v1338 = vpop.f32.mrb[0].mxu0
        %v1339 = vadd.f32 %v403, %v1338
        %v1340 = vpop.f32.mrb[0].mxu0
        %1341 = vmatprep.mubr.f32.mxu0 0.0
        %1342 = vmatmul.mubr.f32.gmra.mrb[0].mxu0 %v656
        %v1343 = vpop.f32.mrb[0].mxu0
        %v1344 = vadd.f32 %v403, %v1343
        %v1345 = vpop.f32.mrb[0].mxu0
        %1346 = vmatprep.mubr.f32.mxu0 0.0
        %1347 = vmatmul.mubr.f32.gmra.mrb[0].mxu0 %v659
        %v1348 = vpop.f32.mrb[0].mxu0
        %v1349 = vadd.f32 %v403, %v1348
        %v1350 = vpop.f32.mrb[0].mxu0
        %1351 = vmatprep.mubr.f32.mxu0 0.0
        %1352 = vmatmul.mubr.f32.gmra.mrb[0].mxu0 %v662
        %v1353 = vpop.f32.mrb[0].mxu0
        %v1354 = vadd.f32 %v403, %v1353
        %v1355 = vpop.f32.mrb[0].mxu0
        %1356 = vmatprep.mubr.f32.mxu0 0.0
        %1357 = vmatmul.mubr.f32.gmra.mrb[0].mxu0 %v665
        %v1358 = vpop.f32.mrb[0].mxu0
        %v1359 = vadd.f32 %v403, %v1358
        %v1360 = vpop.f32.mrb[0].mxu0
        %1361 = vmatprep.mubr.f32.mxu0 0.0
        %1362 = vmatmul.mubr.f32.gmra.mrb[0].mxu0 %v668
        %v1363 = vpop.f32.mrb[0].mxu0
        %v1364 = vadd.f32 %v403, %v1363
        %v1365 = vpop.f32.mrb[0].mxu0
        %1366 = vmatprep.mubr.f32.mxu0 0.0
        %1367 = vmatmul.mubr.f32.gmra.mrb[0].mxu0 %v671
        %v1368 = vpop.f32.mrb[0].mxu0
        %v1369 = vadd.f32 %v403, %v1368
        %v1370 = vpop.f32.mrb[0].mxu0
        %1371 = vmatprep.mubr.f32.mxu0 0.0
        %1372 = vmatmul.mubr.f32.gmra.mrb[0].mxu0 %v674
        %v1373 = vpop.f32.mrb[0].mxu0
        %v1374 = vadd.f32 %v403, %v1373
        %v1375 = vpop.f32.mrb[0].mxu0
        %1376 = vmatprep.mubr.f32.mxu0 0.0
        %1377 = vmatmul.mubr.f32.gmra.mrb[0].mxu0 %v677
        %v1378 = vpop.f32.mrb[0].mxu0
        %v1379 = vadd.f32 %v403, %v1378
        %v1380 = vpop.f32.mrb[0].mxu0
        %1381 = vmatprep.mubr.f32.mxu0 0.0
        %1382 = vmatmul.mubr.f32.gmra.mrb[0].mxu0 %v680
        %v1383 = vpop.f32.mrb[0].mxu0
        %v1384 = vadd.f32 %v403, %v1383
        %v1385 = vpop.f32.mrb[0].mxu0
        %1386 = vmatprep.mubr.f32.mxu0 0.0
        %1387 = vmatmul.mubr.f32.gmra.mrb[0].mxu0 %v683
        %v1388 = vpop.f32.mrb[0].mxu0
        %v1389 = vadd.f32 %v403, %v1388
        %v1390 = vpop.f32.mrb[0].mxu0
        %1391 = vmatprep.mubr.f32.mxu0 0.0
        %1392 = vmatmul.mubr.f32.gmra.mrb[0].mxu0 %v686
        %v1393 = vpop.f32.mrb[0].mxu0
        %v1394 = vadd.f32 %v403, %v1393
        %v1395 = vpop.f32.mrb[0].mxu0
        %1396 = vmatprep.mubr.f32.mxu0 0.0
        %1397 = vmatmul.mubr.f32.gmra.mrb[0].mxu0 %v689
        %v1398 = vpop.f32.mrb[0].mxu0
        %v1399 = vadd.f32 %v403, %v1398
        %v1400 = vpop.f32.mrb[0].mxu0
        %1401 = vmatprep.mubr.f32.mxu0 0.0
        %1402 = vmatmul.mubr.f32.gmra.mrb[0].mxu0 %v692
        %v1403 = vpop.f32.mrb[0].mxu0
        %v1404 = vadd.f32 %v403, %v1403
        %v1405 = vpop.f32.mrb[0].mxu0
        %1406 = vmatprep.mubr.f32.mxu0 0.0
        %1407 = vmatmul.mubr.f32.gmra.mrb[0].mxu0 %v695
        %v1408 = vpop.f32.mrb[0].mxu0
        %v1409 = vadd.f32 %v403, %v1408
        %v1410 = vpop.f32.mrb[0].mxu0
        %1411 = vmatprep.mubr.f32.mxu0 0.0
        %1412 = vmatmul.mubr.f32.gmra.mrb[0].mxu0 %v698
        %v1413 = vpop.f32.mrb[0].mxu0
        %v1414 = vadd.f32 %v403, %v1413
        %v1415 = vpop.f32.mrb[0].mxu0
        %1416 = vmatprep.mubr.f32.mxu0 0.0
        %1417 = vmatmul.mubr.f32.gmra.mrb[0].mxu0 %v701
        %v1418 = vpop.f32.mrb[0].mxu0
        %v1419 = vadd.f32 %v403, %v1418
        %v1420 = vpop.f32.mrb[0].mxu0
        %1421 = vmatprep.mubr.f32.mxu0 0.0
        %1422 = vmatmul.mubr.f32.gmra.mrb[0].mxu0 %v704
        %v1423 = vpop.f32.mrb[0].mxu0
        %v1424 = vadd.f32 %v403, %v1423
        %v1425 = vpop.f32.mrb[0].mxu0
        %1426 = vmatprep.mubr.f32.mxu0 0.0
        %1427 = vmatmul.mubr.f32.gmra.mrb[0].mxu0 %v707
        %v1428 = vpop.f32.mrb[0].mxu0
        %v1429 = vadd.f32 %v403, %v1428
        %v1430 = vpop.f32.mrb[0].mxu0
        %1431 = vmatprep.mubr.f32.mxu0 0.0
        %1432 = vmatmul.mubr.f32.gmra.mrb[0].mxu0 %v710
        %v1433 = vpop.f32.mrb[0].mxu0
        %v1434 = vadd.f32 %v403, %v1433
        %v1435 = vpop.f32.mrb[0].mxu0
        %1436 = vmatprep.mubr.f32.mxu0 0.0
        %1437 = vmatmul.mubr.f32.gmra.mrb[0].mxu0 %v713
        %v1438 = vpop.f32.mrb[0].mxu0
        %v1439 = vadd.f32 %v403, %v1438
        %v1440 = vpop.f32.mrb[0].mxu0
        %1441 = vmatprep.mubr.f32.mxu0 0.0
        %1442 = vmatmul.mubr.f32.gmra.mrb[0].mxu0 %v716
        %v1443 = vpop.f32.mrb[0].mxu0
        %v1444 = vadd.f32 %v403, %v1443
        %v1445 = vpop.f32.mrb[0].mxu0
        %1446 = vmatprep.mubr.f32.mxu0 0.0
        %1447 = vmatmul.mubr.f32.gmra.mrb[0].mxu0 %v719
        %v1448 = vpop.f32.mrb[0].mxu0
        %v1449 = vadd.f32 %v403, %v1448
        %v1450 = vpop.f32.mrb[0].mxu0
        %1451 = vmatprep.mubr.f32.mxu0 0.0
        %1452 = vmatmul.mubr.f32.gmra.mrb[0].mxu0 %v722
        %v1453 = vpop.f32.mrb[0].mxu0
        %v1454 = vadd.f32 %v403, %v1453
        %v1455 = vpop.f32.mrb[0].mxu0
        %1456 = vmatprep.mubr.f32.mxu0 0.0
        %1457 = vmatmul.mubr.f32.gmra.mrb[0].mxu0 %v725
        %v1458 = vpop.f32.mrb[0].mxu0
        %v1459 = vadd.f32 %v403, %v1458
        %v1460 = vpop.f32.mrb[0].mxu0
        %1461 = vmatprep.mubr.f32.mxu0 0.0
        %1462 = vmatmul.mubr.f32.gmra.mrb[0].mxu0 %v728
        %v1463 = vpop.f32.mrb[0].mxu0
        %v1464 = vadd.f32 %v403, %v1463
        %v1465 = vpop.f32.mrb[0].mxu0
        %1466 = vmatprep.mubr.f32.mxu0 0.0
        %1467 = vmatmul.mubr.f32.gmra.mrb[0].mxu0 %v731
        %v1468 = vpop.f32.mrb[0].mxu0
        %v1469 = vadd.f32 %v403, %v1468
        %v1470 = vpop.f32.mrb[0].mxu0
        %1471 = vmatprep.mubr.f32.mxu0 0.0
        %1472 = vmatmul.mubr.f32.gmra.mrb[0].mxu0 %v734
        %v1473 = vpop.f32.mrb[0].mxu0
        %v1474 = vadd.f32 %v403, %v1473
        %v1475 = vpop.f32.mrb[0].mxu0
        %1476 = vmatprep.mubr.f32.mxu0 0.0
        %1477 = vmatmul.mubr.f32.gmra.mrb[0].mxu0 %v737
        %v1478 = vpop.f32.mrb[0].mxu0
        %v1479 = vadd.f32 %v403, %v1478
        %v1480 = vpop.f32.mrb[0].mxu0
        %1481 = vmatprep.mubr.f32.mxu0 0.0
        %1482 = vmatmul.mubr.f32.gmra.mrb[0].mxu0 %v740
        %v1483 = vpop.f32.mrb[0].mxu0
        %v1484 = vadd.f32 %v403, %v1483
        %v1485 = vpop.f32.mrb[0].mxu0
        %1486 = vmatprep.mubr.f32.mxu0 0.0
        %1487 = vmatmul.mubr.f32.gmra.mrb[0].mxu0 %v743
        %v1488 = vpop.f32.mrb[0].mxu0
        %v1489 = vadd.f32 %v403, %v1488
        %v1490 = vpop.f32.mrb[0].mxu0
        %1491 = vmatprep.mubr.f32.mxu0 0.0
        %1492 = vmatmul.mubr.f32.gmra.mrb[0].mxu0 %v746
        %v1493 = vpop.f32.mrb[0].mxu0
        %v1494 = vadd.f32 %v403, %v1493
        %v1495 = vpop.f32.mrb[0].mxu0
        %1496 = vmatprep.mubr.f32.mxu0 0.0
        %1497 = vmatmul.mubr.f32.gmra.mrb[0].mxu0 %v749
        %v1498 = vpop.f32.mrb[0].mxu0
        %v1499 = vadd.f32 %v403, %v1498
        %v1500 = vpop.f32.mrb[0].mxu0
        %1501 = vmatprep.mubr.f32.mxu0 0.0
        %1502 = vmatmul.mubr.f32.gmra.mrb[0].mxu0 %v752
        %v1503 = vpop.f32.mrb[0].mxu0
        %v1504 = vadd.f32 %v403, %v1503
        %v1505 = vpop.f32.mrb[0].mxu0
        %1506 = vmatprep.mubr.f32.mxu0 0.0
        %1507 = vmatmul.mubr.f32.gmra.mrb[0].mxu0 %v755
        %v1508 = vpop.f32.mrb[0].mxu0
        %v1509 = vadd.f32 %v403, %v1508
        %v1510 = vpop.f32.mrb[0].mxu0
        %1511 = vmatprep.mubr.f32.mxu0 0.0
        %1512 = vmatmul.mubr.f32.gmra.mrb[0].mxu0 %v758
        %v1513 = vpop.f32.mrb[0].mxu0
        %v1514 = vadd.f32 %v403, %v1513
        %v1515 = vpop.f32.mrb[0].mxu0
        %1516 = vmatprep.mubr.f32.mxu0 0.0
        %1517 = vmatmul.mubr.f32.gmra.mrb[0].mxu0 %v761
        %v1518 = vpop.f32.mrb[0].mxu0
        %v1519 = vadd.f32 %v403, %v1518
        %v1520 = vpop.f32.mrb[0].mxu0
        %1521 = vmatprep.mubr.f32.mxu0 0.0
        %1522 = vmatmul.mubr.f32.gmra.mrb[0].mxu0 %v764
        %v1523 = vpop.f32.mrb[0].mxu0
        %v1524 = vadd.f32 %v403, %v1523
        %v1525 = vpop.f32.mrb[0].mxu0
        %1526 = vmatprep.mubr.f32.mxu0 0.0
        %1527 = vmatmul.mubr.f32.gmra.mrb[0].mxu0 %v767
        %v1528 = vpop.f32.mrb[0].mxu0
        %v1529 = vadd.f32 %v403, %v1528
        %v1530 = vpop.f32.mrb[0].mxu0
        %1531 = vmatprep.mubr.f32.mxu0 0.0
        %1532 = vmatmul.mubr.f32.gmra.mrb[0].mxu0 %v770
        %v1533 = vpop.f32.mrb[0].mxu0
        %v1534 = vadd.f32 %v403, %v1533
        %v1535 = vpop.f32.mrb[0].mxu0
        %1536 = vmatprep.mubr.f32.mxu0 0.0
        %1537 = vmatmul.mubr.f32.gmra.mrb[0].mxu0 %v773
        %v1538 = vpop.f32.mrb[0].mxu0
        %v1539 = vadd.f32 %v403, %v1538
        %v1540 = vpop.f32.mrb[0].mxu0
        %1541 = vmatprep.mubr.f32.mxu0 0.0
        %1542 = vmatmul.mubr.f32.gmra.mrb[0].mxu0 %v776
        %v1543 = vpop.f32.mrb[0].mxu0
        %v1544 = vadd.f32 %v403, %v1543
        %v1545 = vpop.f32.mrb[0].mxu0
        %1546 = vmatprep.mubr.f32.mxu0 0.0
        %1547 = vmatmul.mubr.f32.gmra.mrb[0].mxu0 %v779
        %v1548 = vpop.f32.mrb[0].mxu0
        %v1549 = vadd.f32 %v403, %v1548
        %v1550 = vpop.f32.mrb[0].mxu0
        %1551 = vmatprep.mubr.f32.mxu0 0.0
        %1552 = vmatmul.mubr.f32.gmra.mrb[0].mxu0 %v782
        %v1553 = vpop.f32.mrb[0].mxu0
        %v1554 = vadd.f32 %v403, %v1553
        %v1555 = vpop.f32.mrb[0].mxu0
        %1556 = vmatprep.mubr.f32.mxu0 0.0
        %1557 = vmatmul.mubr.f32.gmra.mrb[0].mxu0 %v785
        %v1558 = vpop.f32.mrb[0].mxu0
        %v1559 = vadd.f32 %v403, %v1558
        %v1560 = vpop.f32.mrb[0].mxu0
        %1561 = vmatprep.mubr.f32.mxu0 0.0
        %1562 = vmatmul.mubr.f32.gmra.mrb[0].mxu0 %v788
        %v1563 = vpop.f32.mrb[0].mxu0
        %v1564 = vadd.f32 %v403, %v1563
        %v1565 = vpop.f32.mrb[0].mxu0
        %1566 = vmatprep.mubr.f32.mxu0 0.0
        %1567 = vmatmul.mubr.f32.gmra.mrb[0].mxu0 %v791
        %v1568 = vpop.f32.mrb[0].mxu0
        %v1569 = vadd.f32 %v403, %v1568
        %v1570 = vpop.f32.mrb[0].mxu0
        %1571 = vmatprep.mubr.f32.mxu0 0.0
        %1572 = vmatmul.mubr.f32.gmra.mrb[0].mxu0 %v794
        %v1573 = vpop.f32.mrb[0].mxu0
        %v1574 = vadd.f32 %v403, %v1573
        %v1575 = vpop.f32.mrb[0].mxu0
        %1576 = vmatprep.mubr.f32.mxu0 0.0
        %1577 = vmatmul.mubr.f32.gmra.mrb[0].mxu0 %v797
        %v1578 = vpop.f32.mrb[0].mxu0
        %v1579 = vadd.f32 %v403, %v1578
        %v1580 = vpop.f32.mrb[0].mxu0
        %1581 = vmatprep.mubr.f32.mxu0 0.0
        %1582 = vmatmul.mubr.f32.gmra.mrb[0].mxu0 %v800
        %v1583 = vpop.f32.mrb[0].mxu0
        %v1584 = vadd.f32 %v403, %v1583
        %v1585 = vpop.f32.mrb[0].mxu0
        %1586 = vmatprep.mubr.f32.mxu0 0.0
        %1587 = vmatmul.mubr.f32.gmra.mrb[0].mxu0 %v803
        %v1588 = vpop.f32.mrb[0].mxu0
        %v1589 = vadd.f32 %v403, %v1588
        %v1590 = vpop.f32.mrb[0].mxu0
        %1591 = vmatprep.mubr.f32.mxu0 0.0
        %1592 = vmatmul.mubr.f32.gmra.mrb[0].mxu0 %v806
        %v1593 = vpop.f32.mrb[0].mxu0
        %v1594 = vadd.f32 %v403, %v1593
        %v1595 = vpop.f32.mrb[0].mxu0
        %1596 = vmatprep.mubr.f32.mxu0 0.0
        %1597 = vmatmul.mubr.f32.gmra.mrb[0].mxu0 %v809
        %v1598 = vpop.f32.mrb[0].mxu0
        %v1599 = vadd.f32 %v403, %v1598
        %v1600 = vpop.f32.mrb[0].mxu0
        %1601 = vmatprep.mubr.f32.mxu0 0.0
        %1602 = vmatmul.mubr.f32.gmra.mrb[0].mxu0 %v812
        %v1603 = vpop.f32.mrb[0].mxu0
        %v1604 = vadd.f32 %v403, %v1603
        %v1605 = vpop.f32.mrb[0].mxu0
        %1606 = vmatprep.mubr.f32.mxu0 0.0
        %1607 = vmatmul.mubr.f32.gmra.mrb[0].mxu0 %v815
        %v1608 = vpop.f32.mrb[0].mxu0
        %v1609 = vadd.f32 %v403, %v1608
        %v1610 = vpop.f32.mrb[0].mxu0
        %1611 = vmatprep.mubr.f32.mxu0 0.0
        %1612 = vmatmul.mubr.f32.gmra.mrb[0].mxu0 %v818
        %v1613 = vpop.f32.mrb[0].mxu0
        %v1614 = vadd.f32 %v403, %v1613
        %v1615 = vpop.f32.mrb[0].mxu0
        %1616 = vmatprep.mubr.f32.mxu0 0.0
        %1617 = vmatmul.mubr.f32.gmra.mrb[0].mxu0 %v821
        %v1618 = vpop.f32.mrb[0].mxu0
        %v1619 = vadd.f32 %v403, %v1618
        %v1620 = vpop.f32.mrb[0].mxu0
        %1621 = vmatprep.mubr.f32.mxu0 0.0
        %1622 = vmatmul.mubr.f32.gmra.mrb[0].mxu0 %v824
        %v1623 = vpop.f32.mrb[0].mxu0
        %v1624 = vadd.f32 %v403, %v1623
        %v1625 = vpop.f32.mrb[0].mxu0
        %1626 = vmatprep.mubr.f32.mxu0 0.0
        %1627 = vmatmul.mubr.f32.gmra.mrb[0].mxu0 %v827
        %v1628 = vpop.f32.mrb[0].mxu0
        %v1629 = vadd.f32 %v403, %v1628
        %v1630 = vpop.f32.mrb[0].mxu0
        %1631 = vmatprep.mubr.f32.mxu0 0.0
        %1632 = vmatmul.mubr.f32.gmra.mrb[0].mxu0 %v830
        %v1633 = vpop.f32.mrb[0].mxu0
        %v1634 = vadd.f32 %v403, %v1633
        %v1635 = vpop.f32.mrb[0].mxu0
        %1636 = vmatprep.mubr.f32.mxu0 0.0
        %1637 = vmatmul.mubr.f32.gmra.mrb[0].mxu0 %v833
        %v1638 = vpop.f32.mrb[0].mxu0
        %v1639 = vadd.f32 %v403, %v1638
        %v1640 = vpop.f32.mrb[0].mxu0
        %1641 = vmatprep.mubr.f32.mxu0 0.0
        %1642 = vmatmul.mubr.f32.gmra.mrb[0].mxu0 %v836
        %v1643 = vpop.f32.mrb[0].mxu0
        %v1644 = vadd.f32 %v403, %v1643
        %v1645 = vpop.f32.mrb[0].mxu0
        %1646 = vdwg.mxu0
        %v1647 = vmax.f32 %v929, 0.0
        %v1648 = vmax.f32 %v934, 0.0
        %v1649 = vmax.f32 %v939, 0.0
        %v1650 = vmax.f32 %v944, 0.0
        %v1651 = vmax.f32 %v949, 0.0
        %v1652 = vmax.f32 %v954, 0.0
        %v1653 = vmax.f32 %v959, 0.0
        %v1654 = vmax.f32 %v964, 0.0
        %v1655 = vmax.f32 %v969, 0.0
        %v1656 = vmax.f32 %v974, 0.0
        %v1657 = vmax.f32 %v979, 0.0
        %v1658 = vmax.f32 %v984, 0.0
        %v1659 = vmax.f32 %v989, 0.0
        %v1660 = vmax.f32 %v994, 0.0
        %v1661 = vmax.f32 %v999, 0.0
        %v1662 = vmax.f32 %v1004, 0.0
        %v1663 = vmax.f32 %v1009, 0.0
        %v1664 = vmax.f32 %v1014, 0.0
        %v1665 = vmax.f32 %v1019, 0.0
        %v1666 = vmax.f32 %v1024, 0.0
        %v1667 = vmax.f32 %v1029, 0.0
        %v1668 = vmax.f32 %v1034, 0.0
        %v1669 = vmax.f32 %v1039, 0.0
        %v1670 = vmax.f32 %v1044, 0.0
        %v1671 = vmax.f32 %v1049, 0.0
        %v1672 = vmax.f32 %v1054, 0.0
        %v1673 = vmax.f32 %v1059, 0.0
        %v1674 = vmax.f32 %v1064, 0.0
        %v1675 = vmax.f32 %v1069, 0.0
        %v1676 = vmax.f32 %v1074, 0.0
        %v1677 = vmax.f32 %v1079, 0.0
        %v1678 = vmax.f32 %v1084, 0.0
        %v1679 = vmax.f32 %v1089, 0.0
        %v1680 = vmax.f32 %v1094, 0.0
        %v1681 = vmax.f32 %v1099, 0.0
        %v1682 = vmax.f32 %v1104, 0.0
        %v1683 = vmax.f32 %v1109, 0.0
        %v1684 = vmax.f32 %v1114, 0.0
        %v1685 = vmax.f32 %v1119, 0.0
        %v1686 = vmax.f32 %v1124, 0.0
        %v1687 = vmax.f32 %v1129, 0.0
        %v1688 = vmax.f32 %v1134, 0.0
        %v1689 = vmax.f32 %v1139, 0.0
        %v1690 = vmax.f32 %v1144, 0.0
        %v1691 = vmax.f32 %v1149, 0.0
        %v1692 = vmax.f32 %v1154, 0.0
        %v1693 = vmax.f32 %v1159, 0.0
        %v1694 = vmax.f32 %v1164, 0.0
        %v1695 = vmax.f32 %v1169, 0.0
        %v1696 = vmax.f32 %v1174, 0.0
        %v1697 = vmax.f32 %v1179, 0.0
        %v1698 = vmax.f32 %v1184, 0.0
        %v1699 = vmax.f32 %v1189, 0.0
        %v1700 = vmax.f32 %v1194, 0.0
        %v1701 = vmax.f32 %v1199, 0.0
        %v1702 = vmax.f32 %v1204, 0.0
        %v1703 = vmax.f32 %v1209, 0.0
        %v1704 = vmax.f32 %v1214, 0.0
        %v1705 = vmax.f32 %v1219, 0.0
        %v1706 = vmax.f32 %v1224, 0.0
        %v1707 = vmax.f32 %v1229, 0.0
        %v1708 = vmax.f32 %v1234, 0.0
        %v1709 = vmax.f32 %v1239, 0.0
        %v1710 = vmax.f32 %v1244, 0.0
        %v1711 = vmax.f32 %v1249, 0.0
        %v1712 = vmax.f32 %v1254, 0.0
        %v1713 = vmax.f32 %v1259, 0.0
        %v1714 = vmax.f32 %v1264, 0.0
        %v1715 = vmax.f32 %v1269, 0.0
        %v1716 = vmax.f32 %v1274, 0.0
        %v1717 = vmax.f32 %v1279, 0.0
        %v1718 = vmax.f32 %v1284, 0.0
        %v1719 = vmax.f32 %v1289, 0.0
        %v1720 = vmax.f32 %v1294, 0.0
        %v1721 = vmax.f32 %v1299, 0.0
        %v1722 = vmax.f32 %v1304, 0.0
        %v1723 = vmax.f32 %v1309, 0.0
        %v1724 = vmax.f32 %v1314, 0.0
        %v1725 = vmax.f32 %v1319, 0.0
        %v1726 = vmax.f32 %v1324, 0.0
        %v1727 = vmax.f32 %v1329, 0.0
        %v1728 = vmax.f32 %v1334, 0.0
        %v1729 = vmax.f32 %v1339, 0.0
        %v1730 = vmax.f32 %v1344, 0.0
        %v1731 = vmax.f32 %v1349, 0.0
        %v1732 = vmax.f32 %v1354, 0.0
        %v1733 = vmax.f32 %v1359, 0.0
        %v1734 = vmax.f32 %v1364, 0.0
        %v1735 = vmax.f32 %v1369, 0.0
        %v1736 = vmax.f32 %v1374, 0.0
        %v1737 = vmax.f32 %v1379, 0.0
        %v1738 = vmax.f32 %v1384, 0.0
        %v1739 = vmax.f32 %v1389, 0.0
        %v1740 = vmax.f32 %v1394, 0.0
        %v1741 = vmax.f32 %v1399, 0.0
        %v1742 = vmax.f32 %v1404, 0.0
        %v1743 = vmax.f32 %v1409, 0.0
        %v1744 = vmax.f32 %v1414, 0.0
        %v1745 = vmax.f32 %v1419, 0.0
        %v1746 = vmax.f32 %v1424, 0.0
        %v1747 = vmax.f32 %v1429, 0.0
        %v1748 = vmax.f32 %v1434, 0.0
        %v1749 = vmax.f32 %v1439, 0.0
        %v1750 = vmax.f32 %v1444, 0.0
        %v1751 = vmax.f32 %v1449, 0.0
        %v1752 = vmax.f32 %v1454, 0.0
        %v1753 = vmax.f32 %v1459, 0.0
        %v1754 = vmax.f32 %v1464, 0.0
        %v1755 = vmax.f32 %v1469, 0.0
        %v1756 = vmax.f32 %v1474, 0.0
        %v1757 = vmax.f32 %v1479, 0.0
        %v1758 = vmax.f32 %v1484, 0.0
        %v1759 = vmax.f32 %v1489, 0.0
        %v1760 = vmax.f32 %v1494, 0.0
        %v1761 = vmax.f32 %v1499, 0.0
        %v1762 = vmax.f32 %v1504, 0.0
        %v1763 = vmax.f32 %v1509, 0.0
        %v1764 = vmax.f32 %v1514, 0.0
        %v1765 = vmax.f32 %v1519, 0.0
        %v1766 = vmax.f32 %v1524, 0.0
        %v1767 = vmax.f32 %v1529, 0.0
        %v1768 = vmax.f32 %v1534, 0.0
        %v1769 = vmax.f32 %v1539, 0.0
        %v1770 = vmax.f32 %v1544, 0.0
        %v1771 = vmax.f32 %v1549, 0.0
        %v1772 = vmax.f32 %v1554, 0.0
        %v1773 = vmax.f32 %v1559, 0.0
        %v1774 = vmax.f32 %v1564, 0.0
        %v1775 = vmax.f32 %v1569, 0.0
        %v1776 = vmax.f32 %v1574, 0.0
        %v1777 = vmax.f32 %v1579, 0.0
        %v1778 = vmax.f32 %v1584, 0.0
        %v1779 = vmax.f32 %v1589, 0.0
        %v1780 = vmax.f32 %v1594, 0.0
        %v1781 = vmax.f32 %v1599, 0.0
        %v1782 = vmax.f32 %v1604, 0.0
        %v1783 = vmax.f32 %v1609, 0.0
        %v1784 = vmax.f32 %v1614, 0.0
        %v1785 = vmax.f32 %v1619, 0.0
        %v1786 = vmax.f32 %v1624, 0.0
        %v1787 = vmax.f32 %v1629, 0.0
        %v1788 = vmax.f32 %v1634, 0.0
        %v1789 = vmax.f32 %v1639, 0.0
        %v1790 = vmax.f32 %v1644, 0.0
        %v1791 = vld [vmem:[%s3] sm:$0x3]
        %v1792 = vld [vmem:[%s4] sm:$0x1]
        %v1794 = vlaneseq
        %v1795 = vshrl.u32 %v1794, 7
        %v1796 = vsub.s32 0, %v1795
        %v1797 = vrot.slane %v1792, %v1796
        %vm1799 = vcmask 523264
        %v1801 = vsel %vm1799, %v1647, 0
        %v1804 = vsel %vm1799, %v1648, 0
        %v1807 = vsel %vm1799, %v1649, 0
        %v1810 = vsel %vm1799, %v1650, 0
        %v1813 = vsel %vm1799, %v1651, 0
        %v1816 = vsel %vm1799, %v1652, 0
        %v1819 = vsel %vm1799, %v1653, 0
        %v1822 = vsel %vm1799, %v1654, 0
        %v1825 = vsel %vm1799, %v1655, 0
        %v1828 = vsel %vm1799, %v1656, 0
        %v1831 = vsel %vm1799, %v1657, 0
        %v1834 = vsel %vm1799, %v1658, 0
        %v1837 = vsel %vm1799, %v1659, 0
        %v1840 = vsel %vm1799, %v1660, 0
        %v1843 = vsel %vm1799, %v1661, 0
        %v1846 = vsel %vm1799, %v1662, 0
        %v1849 = vsel %vm1799, %v1663, 0
        %v1852 = vsel %vm1799, %v1664, 0
        %v1855 = vsel %vm1799, %v1665, 0
        %v1858 = vsel %vm1799, %v1666, 0
        %v1861 = vsel %vm1799, %v1667, 0
        %v1864 = vsel %vm1799, %v1668, 0
        %v1867 = vsel %vm1799, %v1669, 0
        %v1870 = vsel %vm1799, %v1670, 0
        %v1873 = vsel %vm1799, %v1671, 0
        %v1876 = vsel %vm1799, %v1672, 0
        %v1879 = vsel %vm1799, %v1673, 0
        %v1882 = vsel %vm1799, %v1674, 0
        %v1885 = vsel %vm1799, %v1675, 0
        %v1888 = vsel %vm1799, %v1676, 0
        %v1891 = vsel %vm1799, %v1677, 0
        %v1894 = vsel %vm1799, %v1678, 0
        %v1897 = vsel %vm1799, %v1679, 0
        %v1900 = vsel %vm1799, %v1680, 0
        %v1903 = vsel %vm1799, %v1681, 0
        %v1906 = vsel %vm1799, %v1682, 0
        %v1909 = vsel %vm1799, %v1683, 0
        %v1912 = vsel %vm1799, %v1684, 0
        %v1915 = vsel %vm1799, %v1685, 0
        %v1918 = vsel %vm1799, %v1686, 0
        %v1921 = vsel %vm1799, %v1687, 0
        %v1924 = vsel %vm1799, %v1688, 0
        %v1927 = vsel %vm1799, %v1689, 0
        %v1930 = vsel %vm1799, %v1690, 0
        %v1933 = vsel %vm1799, %v1691, 0
        %v1936 = vsel %vm1799, %v1692, 0
        %v1939 = vsel %vm1799, %v1693, 0
        %v1942 = vsel %vm1799, %v1694, 0
        %v1945 = vsel %vm1799, %v1695, 0
        %v1948 = vsel %vm1799, %v1696, 0
        %v1951 = vsel %vm1799, %v1697, 0
        %v1954 = vsel %vm1799, %v1698, 0
        %v1957 = vsel %vm1799, %v1699, 0
        %v1960 = vsel %vm1799, %v1700, 0
        %v1963 = vsel %vm1799, %v1701, 0
        %v1966 = vsel %vm1799, %v1702, 0
        %v1969 = vsel %vm1799, %v1703, 0
        %v1972 = vsel %vm1799, %v1704, 0
        %v1975 = vsel %vm1799, %v1705, 0
        %v1978 = vsel %vm1799, %v1706, 0
        %v1981 = vsel %vm1799, %v1707, 0
        %v1984 = vsel %vm1799, %v1708, 0
        %v1987 = vsel %vm1799, %v1709, 0
        %v1990 = vsel %vm1799, %v1710, 0
        %v1993 = vsel %vm1799, %v1711, 0
        %v1996 = vsel %vm1799, %v1712, 0
        %v1999 = vsel %vm1799, %v1713, 0
        %v2002 = vsel %vm1799, %v1714, 0
        %v2005 = vsel %vm1799, %v1715, 0
        %v2008 = vsel %vm1799, %v1716, 0
        %v2011 = vsel %vm1799, %v1717, 0
        %v2014 = vsel %vm1799, %v1718, 0
        %v2017 = vsel %vm1799, %v1719, 0
        %v2020 = vsel %vm1799, %v1720, 0
        %v2023 = vsel %vm1799, %v1721, 0
        %v2026 = vsel %vm1799, %v1722, 0
        %v2029 = vsel %vm1799, %v1723, 0
        %v2032 = vsel %vm1799, %v1724, 0
        %v2035 = vsel %vm1799, %v1725, 0
        %v2038 = vsel %vm1799, %v1726, 0
        %v2041 = vsel %vm1799, %v1727, 0
        %v2044 = vsel %vm1799, %v1728, 0
        %v2047 = vsel %vm1799, %v1729, 0
        %v2050 = vsel %vm1799, %v1730, 0
        %v2053 = vsel %vm1799, %v1731, 0
        %v2056 = vsel %vm1799, %v1732, 0
        %v2059 = vsel %vm1799, %v1733, 0
        %v2062 = vsel %vm1799, %v1734, 0
        %v2065 = vsel %vm1799, %v1735, 0
        %v2068 = vsel %vm1799, %v1736, 0
        %v2071 = vsel %vm1799, %v1737, 0
        %v2074 = vsel %vm1799, %v1738, 0
        %v2077 = vsel %vm1799, %v1739, 0
        %v2080 = vsel %vm1799, %v1740, 0
        %v2083 = vsel %vm1799, %v1741, 0
        %v2086 = vsel %vm1799, %v1742, 0
        %v2089 = vsel %vm1799, %v1743, 0
        %v2092 = vsel %vm1799, %v1744, 0
        %v2095 = vsel %vm1799, %v1745, 0
        %v2098 = vsel %vm1799, %v1746, 0
        %v2101 = vsel %vm1799, %v1747, 0
        %v2104 = vsel %vm1799, %v1748, 0
        %v2107 = vsel %vm1799, %v1749, 0
        %v2110 = vsel %vm1799, %v1750, 0
        %v2113 = vsel %vm1799, %v1751, 0
        %v2116 = vsel %vm1799, %v1752, 0
        %v2119 = vsel %vm1799, %v1753, 0
        %v2122 = vsel %vm1799, %v1754, 0
        %v2125 = vsel %vm1799, %v1755, 0
        %v2128 = vsel %vm1799, %v1756, 0
        %v2131 = vsel %vm1799, %v1757, 0
        %v2134 = vsel %vm1799, %v1758, 0
        %v2137 = vsel %vm1799, %v1759, 0
        %v2140 = vsel %vm1799, %v1760, 0
        %v2143 = vsel %vm1799, %v1761, 0
        %v2146 = vsel %vm1799, %v1762, 0
        %v2149 = vsel %vm1799, %v1763, 0
        %v2152 = vsel %vm1799, %v1764, 0
        %v2155 = vsel %vm1799, %v1765, 0
        %v2158 = vsel %vm1799, %v1766, 0
        %v2161 = vsel %vm1799, %v1767, 0
        %v2164 = vsel %vm1799, %v1768, 0
        %v2167 = vsel %vm1799, %v1769, 0
        %v2170 = vsel %vm1799, %v1770, 0
        %v2173 = vsel %vm1799, %v1771, 0
        %v2176 = vsel %vm1799, %v1772, 0
        %v2179 = vsel %vm1799, %v1773, 0
        %v2182 = vsel %vm1799, %v1774, 0
        %v2185 = vsel %vm1799, %v1775, 0
        %v2188 = vsel %vm1799, %v1776, 0
        %v2191 = vsel %vm1799, %v1777, 0
        %v2194 = vsel %vm1799, %v1778, 0
        %v2197 = vsel %vm1799, %v1779, 0
        %v2200 = vsel %vm1799, %v1780, 0
        %v2203 = vsel %vm1799, %v1781, 0
        %v2206 = vsel %vm1799, %v1782, 0
        %v2209 = vsel %vm1799, %v1783, 0
        %v2212 = vsel %vm1799, %v1784, 0
        %v2215 = vsel %vm1799, %v1785, 0
        %v2218 = vsel %vm1799, %v1786, 0
        %v2221 = vsel %vm1799, %v1787, 0
        %v2224 = vsel %vm1799, %v1788, 0
        %v2227 = vsel %vm1799, %v1789, 0
        %v2230 = vsel %vm1799, %v1790, 0
        %v2233 = vsel %vm1799, %v1791, 0
        %2235 = vmatprep.subr.mxu0 0.0
        %2236 = vmatpush1.xpose.msra.mxu0 %v2233
        %2237 = vmatprep.subr.mxu0 0.0
        %2238 = vmatpush1.xpose.msra.mxu0 0.0
        %2239 = vmatprep.subr.mxu0 0.0
        %2240 = vmatpush1.xpose.msra.mxu0 0.0
        %2241 = vmatprep.subr.mxu0 0.0
        %2242 = vmatpush1.xpose.msra.mxu0 0.0
        %2243 = vmatprep.subr.mxu0 0.0
        %2244 = vmatpush1.xpose.msra.mxu0 0.0
        %2245 = vmatprep.subr.mxu0 0.0
        %2246 = vmatpush1.xpose.msra.mxu0 0.0
        %2247 = vmatprep.subr.mxu0 0.0
        %2248 = vmatpush1.xpose.msra.mxu0 0.0
        %2249 = vmatprep.subr.mxu0 0.0
        %2250 = vmatpush1.xpose.msra.mxu0 0.0
        %2251 = vmatprep.subr.mxu0 0.0
        %2252 = vmatpush1.xpose.msra.mxu0 0.0
        %2253 = vmatprep.subr.mxu0 0.0
        %2254 = vmatpush1.xpose.msra.mxu0 0.0
        %2255 = vmatprep.subr.mxu0 0.0
        %2256 = vmatpush1.xpose.msra.mxu0 0.0
        %2257 = vmatprep.subr.mxu0 0.0
        %2258 = vmatpush1.xpose.msra.mxu0 0.0
        %2259 = vmatprep.subr.mxu0 0.0
        %2260 = vmatpush1.xpose.msra.mxu0 0.0
        %2261 = vmatprep.subr.mxu0 0.0
        %2262 = vmatpush1.xpose.msra.mxu0 0.0
        %2263 = vmatprep.subr.mxu0 0.0
        %2264 = vmatpush1.xpose.msra.mxu0 0.0
        %2265 = vmatprep.subr.mxu0 0.0
        %2266 = vmatpush1.xpose.msra.mxu0 0.0
        %2267 = vmatprep.subr.mxu0 0.0
        %2268 = vmatpush1.xpose.msra.mxu0 0.0
        %2269 = vmatprep.subr.mxu0 0.0
        %2270 = vmatpush1.xpose.msra.mxu0 0.0
        %2271 = vmatprep.subr.mxu0 0.0
        %2272 = vmatpush1.xpose.msra.mxu0 0.0
        %2273 = vmatprep.subr.mxu0 0.0
        %2274 = vmatpush1.xpose.msra.mxu0 0.0
        %2275 = vmatprep.subr.mxu0 0.0
        %2276 = vmatpush1.xpose.msra.mxu0 0.0
        %2277 = vmatprep.subr.mxu0 0.0
        %2278 = vmatpush1.xpose.msra.mxu0 0.0
        %2279 = vmatprep.subr.mxu0 0.0
        %2280 = vmatpush1.xpose.msra.mxu0 0.0
        %2281 = vmatprep.subr.mxu0 0.0
        %2282 = vmatpush1.xpose.msra.mxu0 0.0
        %2283 = vmatprep.subr.mxu0 0.0
        %2284 = vmatpush1.xpose.msra.mxu0 0.0
        %2285 = vmatprep.subr.mxu0 0.0
        %2286 = vmatpush1.xpose.msra.mxu0 0.0
        %2287 = vmatprep.subr.mxu0 0.0
        %2288 = vmatpush1.xpose.msra.mxu0 0.0
        %2289 = vmatprep.subr.mxu0 0.0
        %2290 = vmatpush1.xpose.msra.mxu0 0.0
        %2291 = vmatprep.subr.mxu0 0.0
        %2292 = vmatpush1.xpose.msra.mxu0 0.0
        %2293 = vmatprep.subr.mxu0 0.0
        %2294 = vmatpush1.xpose.msra.mxu0 0.0
        %2295 = vmatprep.subr.mxu0 0.0
        %2296 = vmatpush1.xpose.msra.mxu0 0.0
        %2297 = vmatprep.subr.mxu0 0.0
        %2298 = vmatpush1.xpose.msra.mxu0 0.0
        %2299 = vmatprep.mubr.f32.mxu0 0.0
        %2300 = vmatmul.mubr.f32.gmra.mrb[0].mxu0 %v1801
        %v2301 = vpop.f32.mrb[0].mxu0
        %v2302 = vadd.f32 %v1797, %v2301
        %v2303 = vpop.f32.mrb[0].mxu0
        %2304 = vmatprep.mubr.f32.mxu0 0.0
        %2305 = vmatmul.mubr.f32.gmra.mrb[0].mxu0 %v1804
        %v2306 = vpop.f32.mrb[0].mxu0
        %v2307 = vadd.f32 %v1797, %v2306
        %v2308 = vpop.f32.mrb[0].mxu0
        %2309 = vmatprep.mubr.f32.mxu0 0.0
        %2310 = vmatmul.mubr.f32.gmra.mrb[0].mxu0 %v1807
        %v2311 = vpop.f32.mrb[0].mxu0
        %v2312 = vadd.f32 %v1797, %v2311
        %v2313 = vpop.f32.mrb[0].mxu0
        %2314 = vmatprep.mubr.f32.mxu0 0.0
        %2315 = vmatmul.mubr.f32.gmra.mrb[0].mxu0 %v1810
        %v2316 = vpop.f32.mrb[0].mxu0
        %v2317 = vadd.f32 %v1797, %v2316
        %v2318 = vpop.f32.mrb[0].mxu0
        %2319 = vmatprep.mubr.f32.mxu0 0.0
        %2320 = vmatmul.mubr.f32.gmra.mrb[0].mxu0 %v1813
        %v2321 = vpop.f32.mrb[0].mxu0
        %v2322 = vadd.f32 %v1797, %v2321
        %v2323 = vpop.f32.mrb[0].mxu0
        %2324 = vmatprep.mubr.f32.mxu0 0.0
        %2325 = vmatmul.mubr.f32.gmra.mrb[0].mxu0 %v1816
        %v2326 = vpop.f32.mrb[0].mxu0
        %v2327 = vadd.f32 %v1797, %v2326
        %v2328 = vpop.f32.mrb[0].mxu0
        %2329 = vmatprep.mubr.f32.mxu0 0.0
        %2330 = vmatmul.mubr.f32.gmra.mrb[0].mxu0 %v1819
        %v2331 = vpop.f32.mrb[0].mxu0
        %v2332 = vadd.f32 %v1797, %v2331
        %v2333 = vpop.f32.mrb[0].mxu0
        %2334 = vmatprep.mubr.f32.mxu0 0.0
        %2335 = vmatmul.mubr.f32.gmra.mrb[0].mxu0 %v1822
        %v2336 = vpop.f32.mrb[0].mxu0
        %v2337 = vadd.f32 %v1797, %v2336
        %v2338 = vpop.f32.mrb[0].mxu0
        %2339 = vmatprep.mubr.f32.mxu0 0.0
        %2340 = vmatmul.mubr.f32.gmra.mrb[0].mxu0 %v1825
        %v2341 = vpop.f32.mrb[0].mxu0
        %v2342 = vadd.f32 %v1797, %v2341
        %v2343 = vpop.f32.mrb[0].mxu0
        %2344 = vmatprep.mubr.f32.mxu0 0.0
        %2345 = vmatmul.mubr.f32.gmra.mrb[0].mxu0 %v1828
        %v2346 = vpop.f32.mrb[0].mxu0
        %v2347 = vadd.f32 %v1797, %v2346
        %v2348 = vpop.f32.mrb[0].mxu0
        %2349 = vmatprep.mubr.f32.mxu0 0.0
        %2350 = vmatmul.mubr.f32.gmra.mrb[0].mxu0 %v1831
        %v2351 = vpop.f32.mrb[0].mxu0
        %v2352 = vadd.f32 %v1797, %v2351
        %v2353 = vpop.f32.mrb[0].mxu0
        %2354 = vmatprep.mubr.f32.mxu0 0.0
        %2355 = vmatmul.mubr.f32.gmra.mrb[0].mxu0 %v1834
        %v2356 = vpop.f32.mrb[0].mxu0
        %v2357 = vadd.f32 %v1797, %v2356
        %v2358 = vpop.f32.mrb[0].mxu0
        %2359 = vmatprep.mubr.f32.mxu0 0.0
        %2360 = vmatmul.mubr.f32.gmra.mrb[0].mxu0 %v1837
        %v2361 = vpop.f32.mrb[0].mxu0
        %v2362 = vadd.f32 %v1797, %v2361
        %v2363 = vpop.f32.mrb[0].mxu0
        %2364 = vmatprep.mubr.f32.mxu0 0.0
        %2365 = vmatmul.mubr.f32.gmra.mrb[0].mxu0 %v1840
        %v2366 = vpop.f32.mrb[0].mxu0
        %v2367 = vadd.f32 %v1797, %v2366
        %v2368 = vpop.f32.mrb[0].mxu0
        %2369 = vmatprep.mubr.f32.mxu0 0.0
        %2370 = vmatmul.mubr.f32.gmra.mrb[0].mxu0 %v1843
        %v2371 = vpop.f32.mrb[0].mxu0
        %v2372 = vadd.f32 %v1797, %v2371
        %v2373 = vpop.f32.mrb[0].mxu0
        %2374 = vmatprep.mubr.f32.mxu0 0.0
        %2375 = vmatmul.mubr.f32.gmra.mrb[0].mxu0 %v1846
        %v2376 = vpop.f32.mrb[0].mxu0
        %v2377 = vadd.f32 %v1797, %v2376
        %v2378 = vpop.f32.mrb[0].mxu0
        %2379 = vmatprep.mubr.f32.mxu0 0.0
        %2380 = vmatmul.mubr.f32.gmra.mrb[0].mxu0 %v1849
        %v2381 = vpop.f32.mrb[0].mxu0
        %v2382 = vadd.f32 %v1797, %v2381
        %v2383 = vpop.f32.mrb[0].mxu0
        %2384 = vmatprep.mubr.f32.mxu0 0.0
        %2385 = vmatmul.mubr.f32.gmra.mrb[0].mxu0 %v1852
        %v2386 = vpop.f32.mrb[0].mxu0
        %v2387 = vadd.f32 %v1797, %v2386
        %v2388 = vpop.f32.mrb[0].mxu0
        %2389 = vmatprep.mubr.f32.mxu0 0.0
        %2390 = vmatmul.mubr.f32.gmra.mrb[0].mxu0 %v1855
        %v2391 = vpop.f32.mrb[0].mxu0
        %v2392 = vadd.f32 %v1797, %v2391
        %v2393 = vpop.f32.mrb[0].mxu0
        %2394 = vmatprep.mubr.f32.mxu0 0.0
        %2395 = vmatmul.mubr.f32.gmra.mrb[0].mxu0 %v1858
        %v2396 = vpop.f32.mrb[0].mxu0
        %v2397 = vadd.f32 %v1797, %v2396
        %v2398 = vpop.f32.mrb[0].mxu0
        %2399 = vmatprep.mubr.f32.mxu0 0.0
        %2400 = vmatmul.mubr.f32.gmra.mrb[0].mxu0 %v1861
        %v2401 = vpop.f32.mrb[0].mxu0
        %v2402 = vadd.f32 %v1797, %v2401
        %v2403 = vpop.f32.mrb[0].mxu0
        %2404 = vmatprep.mubr.f32.mxu0 0.0
        %2405 = vmatmul.mubr.f32.gmra.mrb[0].mxu0 %v1864
        %v2406 = vpop.f32.mrb[0].mxu0
        %v2407 = vadd.f32 %v1797, %v2406
        %v2408 = vpop.f32.mrb[0].mxu0
        %2409 = vmatprep.mubr.f32.mxu0 0.0
        %2410 = vmatmul.mubr.f32.gmra.mrb[0].mxu0 %v1867
        %v2411 = vpop.f32.mrb[0].mxu0
        %v2412 = vadd.f32 %v1797, %v2411
        %v2413 = vpop.f32.mrb[0].mxu0
        %2414 = vmatprep.mubr.f32.mxu0 0.0
        %2415 = vmatmul.mubr.f32.gmra.mrb[0].mxu0 %v1870
        %v2416 = vpop.f32.mrb[0].mxu0
        %v2417 = vadd.f32 %v1797, %v2416
        %v2418 = vpop.f32.mrb[0].mxu0
        %2419 = vmatprep.mubr.f32.mxu0 0.0
        %2420 = vmatmul.mubr.f32.gmra.mrb[0].mxu0 %v1873
        %v2421 = vpop.f32.mrb[0].mxu0
        %v2422 = vadd.f32 %v1797, %v2421
        %v2423 = vpop.f32.mrb[0].mxu0
        %2424 = vmatprep.mubr.f32.mxu0 0.0
        %2425 = vmatmul.mubr.f32.gmra.mrb[0].mxu0 %v1876
        %v2426 = vpop.f32.mrb[0].mxu0
        %v2427 = vadd.f32 %v1797, %v2426
        %v2428 = vpop.f32.mrb[0].mxu0
        %2429 = vmatprep.mubr.f32.mxu0 0.0
        %2430 = vmatmul.mubr.f32.gmra.mrb[0].mxu0 %v1879
        %v2431 = vpop.f32.mrb[0].mxu0
        %v2432 = vadd.f32 %v1797, %v2431
        %v2433 = vpop.f32.mrb[0].mxu0
        %2434 = vmatprep.mubr.f32.mxu0 0.0
        %2435 = vmatmul.mubr.f32.gmra.mrb[0].mxu0 %v1882
        %v2436 = vpop.f32.mrb[0].mxu0
        %v2437 = vadd.f32 %v1797, %v2436
        %v2438 = vpop.f32.mrb[0].mxu0
        %2439 = vmatprep.mubr.f32.mxu0 0.0
        %2440 = vmatmul.mubr.f32.gmra.mrb[0].mxu0 %v1885
        %v2441 = vpop.f32.mrb[0].mxu0
        %v2442 = vadd.f32 %v1797, %v2441
        %v2443 = vpop.f32.mrb[0].mxu0
        %2444 = vmatprep.mubr.f32.mxu0 0.0
        %2445 = vmatmul.mubr.f32.gmra.mrb[0].mxu0 %v1888
        %v2446 = vpop.f32.mrb[0].mxu0
        %v2447 = vadd.f32 %v1797, %v2446
        %v2448 = vpop.f32.mrb[0].mxu0
        %2449 = vmatprep.mubr.f32.mxu0 0.0
        %2450 = vmatmul.mubr.f32.gmra.mrb[0].mxu0 %v1891
        %v2451 = vpop.f32.mrb[0].mxu0
        %v2452 = vadd.f32 %v1797, %v2451
        %v2453 = vpop.f32.mrb[0].mxu0
        %2454 = vmatprep.mubr.f32.mxu0 0.0
        %2455 = vmatmul.mubr.f32.gmra.mrb[0].mxu0 %v1894
        %v2456 = vpop.f32.mrb[0].mxu0
        %v2457 = vadd.f32 %v1797, %v2456
        %v2458 = vpop.f32.mrb[0].mxu0
        %2459 = vmatprep.mubr.f32.mxu0 0.0
        %2460 = vmatmul.mubr.f32.gmra.mrb[0].mxu0 %v1897
        %v2461 = vpop.f32.mrb[0].mxu0
        %v2462 = vadd.f32 %v1797, %v2461
        %v2463 = vpop.f32.mrb[0].mxu0
        %2464 = vmatprep.mubr.f32.mxu0 0.0
        %2465 = vmatmul.mubr.f32.gmra.mrb[0].mxu0 %v1900
        %v2466 = vpop.f32.mrb[0].mxu0
        %v2467 = vadd.f32 %v1797, %v2466
        %v2468 = vpop.f32.mrb[0].mxu0
        %2469 = vmatprep.mubr.f32.mxu0 0.0
        %2470 = vmatmul.mubr.f32.gmra.mrb[0].mxu0 %v1903
        %v2471 = vpop.f32.mrb[0].mxu0
        %v2472 = vadd.f32 %v1797, %v2471
        %v2473 = vpop.f32.mrb[0].mxu0
        %2474 = vmatprep.mubr.f32.mxu0 0.0
        %2475 = vmatmul.mubr.f32.gmra.mrb[0].mxu0 %v1906
        %v2476 = vpop.f32.mrb[0].mxu0
        %v2477 = vadd.f32 %v1797, %v2476
        %v2478 = vpop.f32.mrb[0].mxu0
        %2479 = vmatprep.mubr.f32.mxu0 0.0
        %2480 = vmatmul.mubr.f32.gmra.mrb[0].mxu0 %v1909
        %v2481 = vpop.f32.mrb[0].mxu0
        %v2482 = vadd.f32 %v1797, %v2481
        %v2483 = vpop.f32.mrb[0].mxu0
        %2484 = vmatprep.mubr.f32.mxu0 0.0
        %2485 = vmatmul.mubr.f32.gmra.mrb[0].mxu0 %v1912
        %v2486 = vpop.f32.mrb[0].mxu0
        %v2487 = vadd.f32 %v1797, %v2486
        %v2488 = vpop.f32.mrb[0].mxu0
        %2489 = vmatprep.mubr.f32.mxu0 0.0
        %2490 = vmatmul.mubr.f32.gmra.mrb[0].mxu0 %v1915
        %v2491 = vpop.f32.mrb[0].mxu0
        %v2492 = vadd.f32 %v1797, %v2491
        %v2493 = vpop.f32.mrb[0].mxu0
        %2494 = vmatprep.mubr.f32.mxu0 0.0
        %2495 = vmatmul.mubr.f32.gmra.mrb[0].mxu0 %v1918
        %v2496 = vpop.f32.mrb[0].mxu0
        %v2497 = vadd.f32 %v1797, %v2496
        %v2498 = vpop.f32.mrb[0].mxu0
        %2499 = vmatprep.mubr.f32.mxu0 0.0
        %2500 = vmatmul.mubr.f32.gmra.mrb[0].mxu0 %v1921
        %v2501 = vpop.f32.mrb[0].mxu0
        %v2502 = vadd.f32 %v1797, %v2501
        %v2503 = vpop.f32.mrb[0].mxu0
        %2504 = vmatprep.mubr.f32.mxu0 0.0
        %2505 = vmatmul.mubr.f32.gmra.mrb[0].mxu0 %v1924
        %v2506 = vpop.f32.mrb[0].mxu0
        %v2507 = vadd.f32 %v1797, %v2506
        %v2508 = vpop.f32.mrb[0].mxu0
        %2509 = vmatprep.mubr.f32.mxu0 0.0
        %2510 = vmatmul.mubr.f32.gmra.mrb[0].mxu0 %v1927
        %v2511 = vpop.f32.mrb[0].mxu0
        %v2512 = vadd.f32 %v1797, %v2511
        %v2513 = vpop.f32.mrb[0].mxu0
        %2514 = vmatprep.mubr.f32.mxu0 0.0
        %2515 = vmatmul.mubr.f32.gmra.mrb[0].mxu0 %v1930
        %v2516 = vpop.f32.mrb[0].mxu0
        %v2517 = vadd.f32 %v1797, %v2516
        %v2518 = vpop.f32.mrb[0].mxu0
        %2519 = vmatprep.mubr.f32.mxu0 0.0
        %2520 = vmatmul.mubr.f32.gmra.mrb[0].mxu0 %v1933
        %v2521 = vpop.f32.mrb[0].mxu0
        %v2522 = vadd.f32 %v1797, %v2521
        %v2523 = vpop.f32.mrb[0].mxu0
        %2524 = vmatprep.mubr.f32.mxu0 0.0
        %2525 = vmatmul.mubr.f32.gmra.mrb[0].mxu0 %v1936
        %v2526 = vpop.f32.mrb[0].mxu0
        %v2527 = vadd.f32 %v1797, %v2526
        %v2528 = vpop.f32.mrb[0].mxu0
        %2529 = vmatprep.mubr.f32.mxu0 0.0
        %2530 = vmatmul.mubr.f32.gmra.mrb[0].mxu0 %v1939
        %v2531 = vpop.f32.mrb[0].mxu0
        %v2532 = vadd.f32 %v1797, %v2531
        %v2533 = vpop.f32.mrb[0].mxu0
        %2534 = vmatprep.mubr.f32.mxu0 0.0
        %2535 = vmatmul.mubr.f32.gmra.mrb[0].mxu0 %v1942
        %v2536 = vpop.f32.mrb[0].mxu0
        %v2537 = vadd.f32 %v1797, %v2536
        %v2538 = vpop.f32.mrb[0].mxu0
        %2539 = vmatprep.mubr.f32.mxu0 0.0
        %2540 = vmatmul.mubr.f32.gmra.mrb[0].mxu0 %v1945
        %v2541 = vpop.f32.mrb[0].mxu0
        %v2542 = vadd.f32 %v1797, %v2541
        %v2543 = vpop.f32.mrb[0].mxu0
        %2544 = vmatprep.mubr.f32.mxu0 0.0
        %2545 = vmatmul.mubr.f32.gmra.mrb[0].mxu0 %v1948
        %v2546 = vpop.f32.mrb[0].mxu0
        %v2547 = vadd.f32 %v1797, %v2546
        %v2548 = vpop.f32.mrb[0].mxu0
        %2549 = vmatprep.mubr.f32.mxu0 0.0
        %2550 = vmatmul.mubr.f32.gmra.mrb[0].mxu0 %v1951
        %v2551 = vpop.f32.mrb[0].mxu0
        %v2552 = vadd.f32 %v1797, %v2551
        %v2553 = vpop.f32.mrb[0].mxu0
        %2554 = vmatprep.mubr.f32.mxu0 0.0
        %2555 = vmatmul.mubr.f32.gmra.mrb[0].mxu0 %v1954
        %v2556 = vpop.f32.mrb[0].mxu0
        %v2557 = vadd.f32 %v1797, %v2556
        %v2558 = vpop.f32.mrb[0].mxu0
        %2559 = vmatprep.mubr.f32.mxu0 0.0
        %2560 = vmatmul.mubr.f32.gmra.mrb[0].mxu0 %v1957
        %v2561 = vpop.f32.mrb[0].mxu0
        %v2562 = vadd.f32 %v1797, %v2561
        %v2563 = vpop.f32.mrb[0].mxu0
        %2564 = vmatprep.mubr.f32.mxu0 0.0
        %2565 = vmatmul.mubr.f32.gmra.mrb[0].mxu0 %v1960
        %v2566 = vpop.f32.mrb[0].mxu0
        %v2567 = vadd.f32 %v1797, %v2566
        %v2568 = vpop.f32.mrb[0].mxu0
        %2569 = vmatprep.mubr.f32.mxu0 0.0
        %2570 = vmatmul.mubr.f32.gmra.mrb[0].mxu0 %v1963
        %v2571 = vpop.f32.mrb[0].mxu0
        %v2572 = vadd.f32 %v1797, %v2571
        %v2573 = vpop.f32.mrb[0].mxu0
        %2574 = vmatprep.mubr.f32.mxu0 0.0
        %2575 = vmatmul.mubr.f32.gmra.mrb[0].mxu0 %v1966
        %v2576 = vpop.f32.mrb[0].mxu0
        %v2577 = vadd.f32 %v1797, %v2576
        %v2578 = vpop.f32.mrb[0].mxu0
        %2579 = vmatprep.mubr.f32.mxu0 0.0
        %2580 = vmatmul.mubr.f32.gmra.mrb[0].mxu0 %v1969
        %v2581 = vpop.f32.mrb[0].mxu0
        %v2582 = vadd.f32 %v1797, %v2581
        %v2583 = vpop.f32.mrb[0].mxu0
        %2584 = vmatprep.mubr.f32.mxu0 0.0
        %2585 = vmatmul.mubr.f32.gmra.mrb[0].mxu0 %v1972
        %v2586 = vpop.f32.mrb[0].mxu0
        %v2587 = vadd.f32 %v1797, %v2586
        %v2588 = vpop.f32.mrb[0].mxu0
        %2589 = vmatprep.mubr.f32.mxu0 0.0
        %2590 = vmatmul.mubr.f32.gmra.mrb[0].mxu0 %v1975
        %v2591 = vpop.f32.mrb[0].mxu0
        %v2592 = vadd.f32 %v1797, %v2591
        %v2593 = vpop.f32.mrb[0].mxu0
        %2594 = vmatprep.mubr.f32.mxu0 0.0
        %2595 = vmatmul.mubr.f32.gmra.mrb[0].mxu0 %v1978
        %v2596 = vpop.f32.mrb[0].mxu0
        %v2597 = vadd.f32 %v1797, %v2596
        %v2598 = vpop.f32.mrb[0].mxu0
        %2599 = vmatprep.mubr.f32.mxu0 0.0
        %2600 = vmatmul.mubr.f32.gmra.mrb[0].mxu0 %v1981
        %v2601 = vpop.f32.mrb[0].mxu0
        %v2602 = vadd.f32 %v1797, %v2601
        %v2603 = vpop.f32.mrb[0].mxu0
        %2604 = vmatprep.mubr.f32.mxu0 0.0
        %2605 = vmatmul.mubr.f32.gmra.mrb[0].mxu0 %v1984
        %v2606 = vpop.f32.mrb[0].mxu0
        %v2607 = vadd.f32 %v1797, %v2606
        %v2608 = vpop.f32.mrb[0].mxu0
        %2609 = vmatprep.mubr.f32.mxu0 0.0
        %2610 = vmatmul.mubr.f32.gmra.mrb[0].mxu0 %v1987
        %v2611 = vpop.f32.mrb[0].mxu0
        %v2612 = vadd.f32 %v1797, %v2611
        %v2613 = vpop.f32.mrb[0].mxu0
        %2614 = vmatprep.mubr.f32.mxu0 0.0
        %2615 = vmatmul.mubr.f32.gmra.mrb[0].mxu0 %v1990
        %v2616 = vpop.f32.mrb[0].mxu0
        %v2617 = vadd.f32 %v1797, %v2616
        %v2618 = vpop.f32.mrb[0].mxu0
        %2619 = vmatprep.mubr.f32.mxu0 0.0
        %2620 = vmatmul.mubr.f32.gmra.mrb[0].mxu0 %v1993
        %v2621 = vpop.f32.mrb[0].mxu0
        %v2622 = vadd.f32 %v1797, %v2621
        %v2623 = vpop.f32.mrb[0].mxu0
        %2624 = vmatprep.mubr.f32.mxu0 0.0
        %2625 = vmatmul.mubr.f32.gmra.mrb[0].mxu0 %v1996
        %v2626 = vpop.f32.mrb[0].mxu0
        %v2627 = vadd.f32 %v1797, %v2626
        %v2628 = vpop.f32.mrb[0].mxu0
        %2629 = vmatprep.mubr.f32.mxu0 0.0
        %2630 = vmatmul.mubr.f32.gmra.mrb[0].mxu0 %v1999
        %v2631 = vpop.f32.mrb[0].mxu0
        %v2632 = vadd.f32 %v1797, %v2631
        %v2633 = vpop.f32.mrb[0].mxu0
        %2634 = vmatprep.mubr.f32.mxu0 0.0
        %2635 = vmatmul.mubr.f32.gmra.mrb[0].mxu0 %v2002
        %v2636 = vpop.f32.mrb[0].mxu0
        %v2637 = vadd.f32 %v1797, %v2636
        %v2638 = vpop.f32.mrb[0].mxu0
        %2639 = vmatprep.mubr.f32.mxu0 0.0
        %2640 = vmatmul.mubr.f32.gmra.mrb[0].mxu0 %v2005
        %v2641 = vpop.f32.mrb[0].mxu0
        %v2642 = vadd.f32 %v1797, %v2641
        %v2643 = vpop.f32.mrb[0].mxu0
        %2644 = vmatprep.mubr.f32.mxu0 0.0
        %2645 = vmatmul.mubr.f32.gmra.mrb[0].mxu0 %v2008
        %v2646 = vpop.f32.mrb[0].mxu0
        %v2647 = vadd.f32 %v1797, %v2646
        %v2648 = vpop.f32.mrb[0].mxu0
        %2649 = vmatprep.mubr.f32.mxu0 0.0
        %2650 = vmatmul.mubr.f32.gmra.mrb[0].mxu0 %v2011
        %v2651 = vpop.f32.mrb[0].mxu0
        %v2652 = vadd.f32 %v1797, %v2651
        %v2653 = vpop.f32.mrb[0].mxu0
        %2654 = vmatprep.mubr.f32.mxu0 0.0
        %2655 = vmatmul.mubr.f32.gmra.mrb[0].mxu0 %v2014
        %v2656 = vpop.f32.mrb[0].mxu0
        %v2657 = vadd.f32 %v1797, %v2656
        %v2658 = vpop.f32.mrb[0].mxu0
        %2659 = vmatprep.mubr.f32.mxu0 0.0
        %2660 = vmatmul.mubr.f32.gmra.mrb[0].mxu0 %v2017
        %v2661 = vpop.f32.mrb[0].mxu0
        %v2662 = vadd.f32 %v1797, %v2661
        %v2663 = vpop.f32.mrb[0].mxu0
        %2664 = vmatprep.mubr.f32.mxu0 0.0
        %2665 = vmatmul.mubr.f32.gmra.mrb[0].mxu0 %v2020
        %v2666 = vpop.f32.mrb[0].mxu0
        %v2667 = vadd.f32 %v1797, %v2666
        %v2668 = vpop.f32.mrb[0].mxu0
        %2669 = vmatprep.mubr.f32.mxu0 0.0
        %2670 = vmatmul.mubr.f32.gmra.mrb[0].mxu0 %v2023
        %v2671 = vpop.f32.mrb[0].mxu0
        %v2672 = vadd.f32 %v1797, %v2671
        %v2673 = vpop.f32.mrb[0].mxu0
        %2674 = vmatprep.mubr.f32.mxu0 0.0
        %2675 = vmatmul.mubr.f32.gmra.mrb[0].mxu0 %v2026
        %v2676 = vpop.f32.mrb[0].mxu0
        %v2677 = vadd.f32 %v1797, %v2676
        %v2678 = vpop.f32.mrb[0].mxu0
        %2679 = vmatprep.mubr.f32.mxu0 0.0
        %2680 = vmatmul.mubr.f32.gmra.mrb[0].mxu0 %v2029
        %v2681 = vpop.f32.mrb[0].mxu0
        %v2682 = vadd.f32 %v1797, %v2681
        %v2683 = vpop.f32.mrb[0].mxu0
        %2684 = vmatprep.mubr.f32.mxu0 0.0
        %2685 = vmatmul.mubr.f32.gmra.mrb[0].mxu0 %v2032
        %v2686 = vpop.f32.mrb[0].mxu0
        %v2687 = vadd.f32 %v1797, %v2686
        %v2688 = vpop.f32.mrb[0].mxu0
        %2689 = vmatprep.mubr.f32.mxu0 0.0
        %2690 = vmatmul.mubr.f32.gmra.mrb[0].mxu0 %v2035
        %v2691 = vpop.f32.mrb[0].mxu0
        %v2692 = vadd.f32 %v1797, %v2691
        %v2693 = vpop.f32.mrb[0].mxu0
        %2694 = vmatprep.mubr.f32.mxu0 0.0
        %2695 = vmatmul.mubr.f32.gmra.mrb[0].mxu0 %v2038
        %v2696 = vpop.f32.mrb[0].mxu0
        %v2697 = vadd.f32 %v1797, %v2696
        %v2698 = vpop.f32.mrb[0].mxu0
        %2699 = vmatprep.mubr.f32.mxu0 0.0
        %2700 = vmatmul.mubr.f32.gmra.mrb[0].mxu0 %v2041
        %v2701 = vpop.f32.mrb[0].mxu0
        %v2702 = vadd.f32 %v1797, %v2701
        %v2703 = vpop.f32.mrb[0].mxu0
        %2704 = vmatprep.mubr.f32.mxu0 0.0
        %2705 = vmatmul.mubr.f32.gmra.mrb[0].mxu0 %v2044
        %v2706 = vpop.f32.mrb[0].mxu0
        %v2707 = vadd.f32 %v1797, %v2706
        %v2708 = vpop.f32.mrb[0].mxu0
        %2709 = vmatprep.mubr.f32.mxu0 0.0
        %2710 = vmatmul.mubr.f32.gmra.mrb[0].mxu0 %v2047
        %v2711 = vpop.f32.mrb[0].mxu0
        %v2712 = vadd.f32 %v1797, %v2711
        %v2713 = vpop.f32.mrb[0].mxu0
        %2714 = vmatprep.mubr.f32.mxu0 0.0
        %2715 = vmatmul.mubr.f32.gmra.mrb[0].mxu0 %v2050
        %v2716 = vpop.f32.mrb[0].mxu0
        %v2717 = vadd.f32 %v1797, %v2716
        %v2718 = vpop.f32.mrb[0].mxu0
        %2719 = vmatprep.mubr.f32.mxu0 0.0
        %2720 = vmatmul.mubr.f32.gmra.mrb[0].mxu0 %v2053
        %v2721 = vpop.f32.mrb[0].mxu0
        %v2722 = vadd.f32 %v1797, %v2721
        %v2723 = vpop.f32.mrb[0].mxu0
        %2724 = vmatprep.mubr.f32.mxu0 0.0
        %2725 = vmatmul.mubr.f32.gmra.mrb[0].mxu0 %v2056
        %v2726 = vpop.f32.mrb[0].mxu0
        %v2727 = vadd.f32 %v1797, %v2726
        %v2728 = vpop.f32.mrb[0].mxu0
        %2729 = vmatprep.mubr.f32.mxu0 0.0
        %2730 = vmatmul.mubr.f32.gmra.mrb[0].mxu0 %v2059
        %v2731 = vpop.f32.mrb[0].mxu0
        %v2732 = vadd.f32 %v1797, %v2731
        %v2733 = vpop.f32.mrb[0].mxu0
        %2734 = vmatprep.mubr.f32.mxu0 0.0
        %2735 = vmatmul.mubr.f32.gmra.mrb[0].mxu0 %v2062
        %v2736 = vpop.f32.mrb[0].mxu0
        %v2737 = vadd.f32 %v1797, %v2736
        %v2738 = vpop.f32.mrb[0].mxu0
        %2739 = vmatprep.mubr.f32.mxu0 0.0
        %2740 = vmatmul.mubr.f32.gmra.mrb[0].mxu0 %v2065
        %v2741 = vpop.f32.mrb[0].mxu0
        %v2742 = vadd.f32 %v1797, %v2741
        %v2743 = vpop.f32.mrb[0].mxu0
        %2744 = vmatprep.mubr.f32.mxu0 0.0
        %2745 = vmatmul.mubr.f32.gmra.mrb[0].mxu0 %v2068
        %v2746 = vpop.f32.mrb[0].mxu0
        %v2747 = vadd.f32 %v1797, %v2746
        %v2748 = vpop.f32.mrb[0].mxu0
        %2749 = vmatprep.mubr.f32.mxu0 0.0
        %2750 = vmatmul.mubr.f32.gmra.mrb[0].mxu0 %v2071
        %v2751 = vpop.f32.mrb[0].mxu0
        %v2752 = vadd.f32 %v1797, %v2751
        %v2753 = vpop.f32.mrb[0].mxu0
        %2754 = vmatprep.mubr.f32.mxu0 0.0
        %2755 = vmatmul.mubr.f32.gmra.mrb[0].mxu0 %v2074
        %v2756 = vpop.f32.mrb[0].mxu0
        %v2757 = vadd.f32 %v1797, %v2756
        %v2758 = vpop.f32.mrb[0].mxu0
        %2759 = vmatprep.mubr.f32.mxu0 0.0
        %2760 = vmatmul.mubr.f32.gmra.mrb[0].mxu0 %v2077
        %v2761 = vpop.f32.mrb[0].mxu0
        %v2762 = vadd.f32 %v1797, %v2761
        %v2763 = vpop.f32.mrb[0].mxu0
        %2764 = vmatprep.mubr.f32.mxu0 0.0
        %2765 = vmatmul.mubr.f32.gmra.mrb[0].mxu0 %v2080
        %v2766 = vpop.f32.mrb[0].mxu0
        %v2767 = vadd.f32 %v1797, %v2766
        %v2768 = vpop.f32.mrb[0].mxu0
        %2769 = vmatprep.mubr.f32.mxu0 0.0
        %2770 = vmatmul.mubr.f32.gmra.mrb[0].mxu0 %v2083
        %v2771 = vpop.f32.mrb[0].mxu0
        %v2772 = vadd.f32 %v1797, %v2771
        %v2773 = vpop.f32.mrb[0].mxu0
        %2774 = vmatprep.mubr.f32.mxu0 0.0
        %2775 = vmatmul.mubr.f32.gmra.mrb[0].mxu0 %v2086
        %v2776 = vpop.f32.mrb[0].mxu0
        %v2777 = vadd.f32 %v1797, %v2776
        %v2778 = vpop.f32.mrb[0].mxu0
        %2779 = vmatprep.mubr.f32.mxu0 0.0
        %2780 = vmatmul.mubr.f32.gmra.mrb[0].mxu0 %v2089
        %v2781 = vpop.f32.mrb[0].mxu0
        %v2782 = vadd.f32 %v1797, %v2781
        %v2783 = vpop.f32.mrb[0].mxu0
        %2784 = vmatprep.mubr.f32.mxu0 0.0
        %2785 = vmatmul.mubr.f32.gmra.mrb[0].mxu0 %v2092
        %v2786 = vpop.f32.mrb[0].mxu0
        %v2787 = vadd.f32 %v1797, %v2786
        %v2788 = vpop.f32.mrb[0].mxu0
        %2789 = vmatprep.mubr.f32.mxu0 0.0
        %2790 = vmatmul.mubr.f32.gmra.mrb[0].mxu0 %v2095
        %v2791 = vpop.f32.mrb[0].mxu0
        %v2792 = vadd.f32 %v1797, %v2791
        %v2793 = vpop.f32.mrb[0].mxu0
        %2794 = vmatprep.mubr.f32.mxu0 0.0
        %2795 = vmatmul.mubr.f32.gmra.mrb[0].mxu0 %v2098
        %v2796 = vpop.f32.mrb[0].mxu0
        %v2797 = vadd.f32 %v1797, %v2796
        %v2798 = vpop.f32.mrb[0].mxu0
        %2799 = vmatprep.mubr.f32.mxu0 0.0
        %2800 = vmatmul.mubr.f32.gmra.mrb[0].mxu0 %v2101
        %v2801 = vpop.f32.mrb[0].mxu0
        %v2802 = vadd.f32 %v1797, %v2801
        %v2803 = vpop.f32.mrb[0].mxu0
        %2804 = vmatprep.mubr.f32.mxu0 0.0
        %2805 = vmatmul.mubr.f32.gmra.mrb[0].mxu0 %v2104
        %v2806 = vpop.f32.mrb[0].mxu0
        %v2807 = vadd.f32 %v1797, %v2806
        %v2808 = vpop.f32.mrb[0].mxu0
        %2809 = vmatprep.mubr.f32.mxu0 0.0
        %2810 = vmatmul.mubr.f32.gmra.mrb[0].mxu0 %v2107
        %v2811 = vpop.f32.mrb[0].mxu0
        %v2812 = vadd.f32 %v1797, %v2811
        %v2813 = vpop.f32.mrb[0].mxu0
        %2814 = vmatprep.mubr.f32.mxu0 0.0
        %2815 = vmatmul.mubr.f32.gmra.mrb[0].mxu0 %v2110
        %v2816 = vpop.f32.mrb[0].mxu0
        %v2817 = vadd.f32 %v1797, %v2816
        %v2818 = vpop.f32.mrb[0].mxu0
        %2819 = vmatprep.mubr.f32.mxu0 0.0
        %2820 = vmatmul.mubr.f32.gmra.mrb[0].mxu0 %v2113
        %v2821 = vpop.f32.mrb[0].mxu0
        %v2822 = vadd.f32 %v1797, %v2821
        %v2823 = vpop.f32.mrb[0].mxu0
        %2824 = vmatprep.mubr.f32.mxu0 0.0
        %2825 = vmatmul.mubr.f32.gmra.mrb[0].mxu0 %v2116
        %v2826 = vpop.f32.mrb[0].mxu0
        %v2827 = vadd.f32 %v1797, %v2826
        %v2828 = vpop.f32.mrb[0].mxu0
        %2829 = vmatprep.mubr.f32.mxu0 0.0
        %2830 = vmatmul.mubr.f32.gmra.mrb[0].mxu0 %v2119
        %v2831 = vpop.f32.mrb[0].mxu0
        %v2832 = vadd.f32 %v1797, %v2831
        %v2833 = vpop.f32.mrb[0].mxu0
        %2834 = vmatprep.mubr.f32.mxu0 0.0
        %2835 = vmatmul.mubr.f32.gmra.mrb[0].mxu0 %v2122
        %v2836 = vpop.f32.mrb[0].mxu0
        %v2837 = vadd.f32 %v1797, %v2836
        %v2838 = vpop.f32.mrb[0].mxu0
        %2839 = vmatprep.mubr.f32.mxu0 0.0
        %2840 = vmatmul.mubr.f32.gmra.mrb[0].mxu0 %v2125
        %v2841 = vpop.f32.mrb[0].mxu0
        %v2842 = vadd.f32 %v1797, %v2841
        %v2843 = vpop.f32.mrb[0].mxu0
        %2844 = vmatprep.mubr.f32.mxu0 0.0
        %2845 = vmatmul.mubr.f32.gmra.mrb[0].mxu0 %v2128
        %v2846 = vpop.f32.mrb[0].mxu0
        %v2847 = vadd.f32 %v1797, %v2846
        %v2848 = vpop.f32.mrb[0].mxu0
        %2849 = vmatprep.mubr.f32.mxu0 0.0
        %2850 = vmatmul.mubr.f32.gmra.mrb[0].mxu0 %v2131
        %v2851 = vpop.f32.mrb[0].mxu0
        %v2852 = vadd.f32 %v1797, %v2851
        %v2853 = vpop.f32.mrb[0].mxu0
        %2854 = vmatprep.mubr.f32.mxu0 0.0
        %2855 = vmatmul.mubr.f32.gmra.mrb[0].mxu0 %v2134
        %v2856 = vpop.f32.mrb[0].mxu0
        %v2857 = vadd.f32 %v1797, %v2856
        %v2858 = vpop.f32.mrb[0].mxu0
        %2859 = vmatprep.mubr.f32.mxu0 0.0
        %2860 = vmatmul.mubr.f32.gmra.mrb[0].mxu0 %v2137
        %v2861 = vpop.f32.mrb[0].mxu0
        %v2862 = vadd.f32 %v1797, %v2861
        %v2863 = vpop.f32.mrb[0].mxu0
        %2864 = vmatprep.mubr.f32.mxu0 0.0
        %2865 = vmatmul.mubr.f32.gmra.mrb[0].mxu0 %v2140
        %v2866 = vpop.f32.mrb[0].mxu0
        %v2867 = vadd.f32 %v1797, %v2866
        %v2868 = vpop.f32.mrb[0].mxu0
        %2869 = vmatprep.mubr.f32.mxu0 0.0
        %2870 = vmatmul.mubr.f32.gmra.mrb[0].mxu0 %v2143
        %v2871 = vpop.f32.mrb[0].mxu0
        %v2872 = vadd.f32 %v1797, %v2871
        %v2873 = vpop.f32.mrb[0].mxu0
        %2874 = vmatprep.mubr.f32.mxu0 0.0
        %2875 = vmatmul.mubr.f32.gmra.mrb[0].mxu0 %v2146
        %v2876 = vpop.f32.mrb[0].mxu0
        %v2877 = vadd.f32 %v1797, %v2876
        %v2878 = vpop.f32.mrb[0].mxu0
        %2879 = vmatprep.mubr.f32.mxu0 0.0
        %2880 = vmatmul.mubr.f32.gmra.mrb[0].mxu0 %v2149
        %v2881 = vpop.f32.mrb[0].mxu0
        %v2882 = vadd.f32 %v1797, %v2881
        %v2883 = vpop.f32.mrb[0].mxu0
        %2884 = vmatprep.mubr.f32.mxu0 0.0
        %2885 = vmatmul.mubr.f32.gmra.mrb[0].mxu0 %v2152
        %v2886 = vpop.f32.mrb[0].mxu0
        %v2887 = vadd.f32 %v1797, %v2886
        %v2888 = vpop.f32.mrb[0].mxu0
        %2889 = vmatprep.mubr.f32.mxu0 0.0
        %2890 = vmatmul.mubr.f32.gmra.mrb[0].mxu0 %v2155
        %v2891 = vpop.f32.mrb[0].mxu0
        %v2892 = vadd.f32 %v1797, %v2891
        %v2893 = vpop.f32.mrb[0].mxu0
        %2894 = vmatprep.mubr.f32.mxu0 0.0
        %2895 = vmatmul.mubr.f32.gmra.mrb[0].mxu0 %v2158
        %v2896 = vpop.f32.mrb[0].mxu0
        %v2897 = vadd.f32 %v1797, %v2896
        %v2898 = vpop.f32.mrb[0].mxu0
        %2899 = vmatprep.mubr.f32.mxu0 0.0
        %2900 = vmatmul.mubr.f32.gmra.mrb[0].mxu0 %v2161
        %v2901 = vpop.f32.mrb[0].mxu0
        %v2902 = vadd.f32 %v1797, %v2901
        %v2903 = vpop.f32.mrb[0].mxu0
        %2904 = vmatprep.mubr.f32.mxu0 0.0
        %2905 = vmatmul.mubr.f32.gmra.mrb[0].mxu0 %v2164
        %v2906 = vpop.f32.mrb[0].mxu0
        %v2907 = vadd.f32 %v1797, %v2906
        %v2908 = vpop.f32.mrb[0].mxu0
        %2909 = vmatprep.mubr.f32.mxu0 0.0
        %2910 = vmatmul.mubr.f32.gmra.mrb[0].mxu0 %v2167
        %v2911 = vpop.f32.mrb[0].mxu0
        %v2912 = vadd.f32 %v1797, %v2911
        %v2913 = vpop.f32.mrb[0].mxu0
        %2914 = vmatprep.mubr.f32.mxu0 0.0
        %2915 = vmatmul.mubr.f32.gmra.mrb[0].mxu0 %v2170
        %v2916 = vpop.f32.mrb[0].mxu0
        %v2917 = vadd.f32 %v1797, %v2916
        %v2918 = vpop.f32.mrb[0].mxu0
        %2919 = vmatprep.mubr.f32.mxu0 0.0
        %2920 = vmatmul.mubr.f32.gmra.mrb[0].mxu0 %v2173
        %v2921 = vpop.f32.mrb[0].mxu0
        %v2922 = vadd.f32 %v1797, %v2921
        %v2923 = vpop.f32.mrb[0].mxu0
        %2924 = vmatprep.mubr.f32.mxu0 0.0
        %2925 = vmatmul.mubr.f32.gmra.mrb[0].mxu0 %v2176
        %v2926 = vpop.f32.mrb[0].mxu0
        %v2927 = vadd.f32 %v1797, %v2926
        %v2928 = vpop.f32.mrb[0].mxu0
        %2929 = vmatprep.mubr.f32.mxu0 0.0
        %2930 = vmatmul.mubr.f32.gmra.mrb[0].mxu0 %v2179
        %v2931 = vpop.f32.mrb[0].mxu0
        %v2932 = vadd.f32 %v1797, %v2931
        %v2933 = vpop.f32.mrb[0].mxu0
        %2934 = vmatprep.mubr.f32.mxu0 0.0
        %2935 = vmatmul.mubr.f32.gmra.mrb[0].mxu0 %v2182
        %v2936 = vpop.f32.mrb[0].mxu0
        %v2937 = vadd.f32 %v1797, %v2936
        %v2938 = vpop.f32.mrb[0].mxu0
        %2939 = vmatprep.mubr.f32.mxu0 0.0
        %2940 = vmatmul.mubr.f32.gmra.mrb[0].mxu0 %v2185
        %v2941 = vpop.f32.mrb[0].mxu0
        %v2942 = vadd.f32 %v1797, %v2941
        %v2943 = vpop.f32.mrb[0].mxu0
        %2944 = vmatprep.mubr.f32.mxu0 0.0
        %2945 = vmatmul.mubr.f32.gmra.mrb[0].mxu0 %v2188
        %v2946 = vpop.f32.mrb[0].mxu0
        %v2947 = vadd.f32 %v1797, %v2946
        %v2948 = vpop.f32.mrb[0].mxu0
        %2949 = vmatprep.mubr.f32.mxu0 0.0
        %2950 = vmatmul.mubr.f32.gmra.mrb[0].mxu0 %v2191
        %v2951 = vpop.f32.mrb[0].mxu0
        %v2952 = vadd.f32 %v1797, %v2951
        %v2953 = vpop.f32.mrb[0].mxu0
        %2954 = vmatprep.mubr.f32.mxu0 0.0
        %2955 = vmatmul.mubr.f32.gmra.mrb[0].mxu0 %v2194
        %v2956 = vpop.f32.mrb[0].mxu0
        %v2957 = vadd.f32 %v1797, %v2956
        %v2958 = vpop.f32.mrb[0].mxu0
        %2959 = vmatprep.mubr.f32.mxu0 0.0
        %2960 = vmatmul.mubr.f32.gmra.mrb[0].mxu0 %v2197
        %v2961 = vpop.f32.mrb[0].mxu0
        %v2962 = vadd.f32 %v1797, %v2961
        %v2963 = vpop.f32.mrb[0].mxu0
        %2964 = vmatprep.mubr.f32.mxu0 0.0
        %2965 = vmatmul.mubr.f32.gmra.mrb[0].mxu0 %v2200
        %v2966 = vpop.f32.mrb[0].mxu0
        %v2967 = vadd.f32 %v1797, %v2966
        %v2968 = vpop.f32.mrb[0].mxu0
        %2969 = vmatprep.mubr.f32.mxu0 0.0
        %2970 = vmatmul.mubr.f32.gmra.mrb[0].mxu0 %v2203
        %v2971 = vpop.f32.mrb[0].mxu0
        %v2972 = vadd.f32 %v1797, %v2971
        %v2973 = vpop.f32.mrb[0].mxu0
        %2974 = vmatprep.mubr.f32.mxu0 0.0
        %2975 = vmatmul.mubr.f32.gmra.mrb[0].mxu0 %v2206
        %v2976 = vpop.f32.mrb[0].mxu0
        %v2977 = vadd.f32 %v1797, %v2976
        %v2978 = vpop.f32.mrb[0].mxu0
        %2979 = vmatprep.mubr.f32.mxu0 0.0
        %2980 = vmatmul.mubr.f32.gmra.mrb[0].mxu0 %v2209
        %v2981 = vpop.f32.mrb[0].mxu0
        %v2982 = vadd.f32 %v1797, %v2981
        %v2983 = vpop.f32.mrb[0].mxu0
        %2984 = vmatprep.mubr.f32.mxu0 0.0
        %2985 = vmatmul.mubr.f32.gmra.mrb[0].mxu0 %v2212
        %v2986 = vpop.f32.mrb[0].mxu0
        %v2987 = vadd.f32 %v1797, %v2986
        %v2988 = vpop.f32.mrb[0].mxu0
        %2989 = vmatprep.mubr.f32.mxu0 0.0
        %2990 = vmatmul.mubr.f32.gmra.mrb[0].mxu0 %v2215
        %v2991 = vpop.f32.mrb[0].mxu0
        %v2992 = vadd.f32 %v1797, %v2991
        %v2993 = vpop.f32.mrb[0].mxu0
        %2994 = vmatprep.mubr.f32.mxu0 0.0
        %2995 = vmatmul.mubr.f32.gmra.mrb[0].mxu0 %v2218
        %v2996 = vpop.f32.mrb[0].mxu0
        %v2997 = vadd.f32 %v1797, %v2996
        %v2998 = vpop.f32.mrb[0].mxu0
        %2999 = vmatprep.mubr.f32.mxu0 0.0
        %3000 = vmatmul.mubr.f32.gmra.mrb[0].mxu0 %v2221
        %v3001 = vpop.f32.mrb[0].mxu0
        %v3002 = vadd.f32 %v1797, %v3001
        %v3003 = vpop.f32.mrb[0].mxu0
        %3004 = vmatprep.mubr.f32.mxu0 0.0
        %3005 = vmatmul.mubr.f32.gmra.mrb[0].mxu0 %v2224
        %v3006 = vpop.f32.mrb[0].mxu0
        %v3007 = vadd.f32 %v1797, %v3006
        %v3008 = vpop.f32.mrb[0].mxu0
        %3009 = vmatprep.mubr.f32.mxu0 0.0
        %3010 = vmatmul.mubr.f32.gmra.mrb[0].mxu0 %v2227
        %v3011 = vpop.f32.mrb[0].mxu0
        %v3012 = vadd.f32 %v1797, %v3011
        %v3013 = vpop.f32.mrb[0].mxu0
        %3014 = vmatprep.mubr.f32.mxu0 0.0
        %3015 = vmatmul.mubr.f32.gmra.mrb[0].mxu0 %v2230
        %v3016 = vpop.f32.mrb[0].mxu0
        %v3017 = vadd.f32 %v1797, %v3016
        %v3018 = vpop.f32.mrb[0].mxu0
        %3019 = vdwg.mxu0
        %vm3020 = vcmask 15360
        %3021 = vst.msk [vmem:[%s226] sm:$0xff] %vm3020, %v2302
        %3022 = vst.msk [vmem:[%s226 + $0x8] sm:$0xff] %vm3020, %v2307
        %3023 = vst.msk [vmem:[%s226 + $0x10] sm:$0xff] %vm3020, %v2312
        %3024 = vst.msk [vmem:[%s226 + $0x18] sm:$0xff] %vm3020, %v2317
        %3025 = vst.msk [vmem:[%s226 + $0x20] sm:$0xff] %vm3020, %v2322
        %3026 = vst.msk [vmem:[%s226 + $0x28] sm:$0xff] %vm3020, %v2327
        %3027 = vst.msk [vmem:[%s226 + $0x30] sm:$0xff] %vm3020, %v2332
        %3028 = vst.msk [vmem:[%s226 + $0x38] sm:$0xff] %vm3020, %v2337
        %3029 = vst.msk [vmem:[%s226 + $0x40] sm:$0xff] %vm3020, %v2342
        %3030 = vst.msk [vmem:[%s226 + $0x48] sm:$0xff] %vm3020, %v2347
        %3031 = vst.msk [vmem:[%s226 + $0x50] sm:$0xff] %vm3020, %v2352
        %3032 = vst.msk [vmem:[%s226 + $0x58] sm:$0xff] %vm3020, %v2357
        %3033 = vst.msk [vmem:[%s226 + $0x60] sm:$0xff] %vm3020, %v2362
        %3034 = vst.msk [vmem:[%s226 + $0x68] sm:$0xff] %vm3020, %v2367
        %3035 = vst.msk [vmem:[%s226 + $0x70] sm:$0xff] %vm3020, %v2372
        %3036 = vst.msk [vmem:[%s226 + $0x78] sm:$0xff] %vm3020, %v2377
        %3037 = vst.msk [vmem:[%s226 + $0x80] sm:$0xff] %vm3020, %v2382
        %3038 = vst.msk [vmem:[%s226 + $0x88] sm:$0xff] %vm3020, %v2387
        %3039 = vst.msk [vmem:[%s226 + $0x90] sm:$0xff] %vm3020, %v2392
        %3040 = vst.msk [vmem:[%s226 + $0x98] sm:$0xff] %vm3020, %v2397
        %3041 = vst.msk [vmem:[%s226 + $0xa0] sm:$0xff] %vm3020, %v2402
        %3042 = vst.msk [vmem:[%s226 + $0xa8] sm:$0xff] %vm3020, %v2407
        %3043 = vst.msk [vmem:[%s226 + $0xb0] sm:$0xff] %vm3020, %v2412
        %3044 = vst.msk [vmem:[%s226 + $0xb8] sm:$0xff] %vm3020, %v2417
        %3045 = vst.msk [vmem:[%s226 + $0xc0] sm:$0xff] %vm3020, %v2422
        %3046 = vst.msk [vmem:[%s226 + $0xc8] sm:$0xff] %vm3020, %v2427
        %3047 = vst.msk [vmem:[%s226 + $0xd0] sm:$0xff] %vm3020, %v2432
        %3048 = vst.msk [vmem:[%s226 + $0xd8] sm:$0xff] %vm3020, %v2437
        %3049 = vst.msk [vmem:[%s226 + $0xe0] sm:$0xff] %vm3020, %v2442
        %3050 = vst.msk [vmem:[%s226 + $0xe8] sm:$0xff] %vm3020, %v2447
        %3051 = vst.msk [vmem:[%s226 + $0xf0] sm:$0xff] %vm3020, %v2452
        %3052 = vst.msk [vmem:[%s226 + $0xf8] sm:$0xff] %vm3020, %v2457
        %3053 = vst.msk [vmem:[%s226 + $0x100] sm:$0xff] %vm3020, %v2462
        %3054 = vst.msk [vmem:[%s226 + $0x108] sm:$0xff] %vm3020, %v2467
        %3055 = vst.msk [vmem:[%s226 + $0x110] sm:$0xff] %vm3020, %v2472
        %3056 = vst.msk [vmem:[%s226 + $0x118] sm:$0xff] %vm3020, %v2477
        %3057 = vst.msk [vmem:[%s226 + $0x120] sm:$0xff] %vm3020, %v2482
        %3058 = vst.msk [vmem:[%s226 + $0x128] sm:$0xff] %vm3020, %v2487
        %3059 = vst.msk [vmem:[%s226 + $0x130] sm:$0xff] %vm3020, %v2492
        %3060 = vst.msk [vmem:[%s226 + $0x138] sm:$0xff] %vm3020, %v2497
        %3061 = vst.msk [vmem:[%s226 + $0x140] sm:$0xff] %vm3020, %v2502
        %3062 = vst.msk [vmem:[%s226 + $0x148] sm:$0xff] %vm3020, %v2507
        %3063 = vst.msk [vmem:[%s226 + $0x150] sm:$0xff] %vm3020, %v2512
        %3064 = vst.msk [vmem:[%s226 + $0x158] sm:$0xff] %vm3020, %v2517
        %3065 = vst.msk [vmem:[%s226 + $0x160] sm:$0xff] %vm3020, %v2522
        %3066 = vst.msk [vmem:[%s226 + $0x168] sm:$0xff] %vm3020, %v2527
        %3067 = vst.msk [vmem:[%s226 + $0x170] sm:$0xff] %vm3020, %v2532
        %3068 = vst.msk [vmem:[%s226 + $0x178] sm:$0xff] %vm3020, %v2537
        %3069 = vst.msk [vmem:[%s226 + $0x180] sm:$0xff] %vm3020, %v2542
        %3070 = vst.msk [vmem:[%s226 + $0x188] sm:$0xff] %vm3020, %v2547
        %3071 = vst.msk [vmem:[%s226 + $0x190] sm:$0xff] %vm3020, %v2552
        %3072 = vst.msk [vmem:[%s226 + $0x198] sm:$0xff] %vm3020, %v2557
        %3073 = vst.msk [vmem:[%s226 + $0x1a0] sm:$0xff] %vm3020, %v2562
        %3074 = vst.msk [vmem:[%s226 + $0x1a8] sm:$0xff] %vm3020, %v2567
        %3075 = vst.msk [vmem:[%s226 + $0x1b0] sm:$0xff] %vm3020, %v2572
        %3076 = vst.msk [vmem:[%s226 + $0x1b8] sm:$0xff] %vm3020, %v2577
        %3077 = vst.msk [vmem:[%s226 + $0x1c0] sm:$0xff] %vm3020, %v2582
        %3078 = vst.msk [vmem:[%s226 + $0x1c8] sm:$0xff] %vm3020, %v2587
        %3079 = vst.msk [vmem:[%s226 + $0x1d0] sm:$0xff] %vm3020, %v2592
        %3080 = vst.msk [vmem:[%s226 + $0x1d8] sm:$0xff] %vm3020, %v2597
        %3081 = vst.msk [vmem:[%s226 + $0x1e0] sm:$0xff] %vm3020, %v2602
        %3082 = vst.msk [vmem:[%s226 + $0x1e8] sm:$0xff] %vm3020, %v2607
        %3083 = vst.msk [vmem:[%s226 + $0x1f0] sm:$0xff] %vm3020, %v2612
        %3084 = vst.msk [vmem:[%s226 + $0x1f8] sm:$0xff] %vm3020, %v2617
        %3085 = vst.msk [vmem:[%s226 + $0x200] sm:$0xff] %vm3020, %v2622
        %3086 = vst.msk [vmem:[%s226 + $0x208] sm:$0xff] %vm3020, %v2627
        %3087 = vst.msk [vmem:[%s226 + $0x210] sm:$0xff] %vm3020, %v2632
        %3088 = vst.msk [vmem:[%s226 + $0x218] sm:$0xff] %vm3020, %v2637
        %3089 = vst.msk [vmem:[%s226 + $0x220] sm:$0xff] %vm3020, %v2642
        %3090 = vst.msk [vmem:[%s226 + $0x228] sm:$0xff] %vm3020, %v2647
        %3091 = vst.msk [vmem:[%s226 + $0x230] sm:$0xff] %vm3020, %v2652
        %3092 = vst.msk [vmem:[%s226 + $0x238] sm:$0xff] %vm3020, %v2657
        %3093 = vst.msk [vmem:[%s226 + $0x240] sm:$0xff] %vm3020, %v2662
        %3094 = vst.msk [vmem:[%s226 + $0x248] sm:$0xff] %vm3020, %v2667
        %3095 = vst.msk [vmem:[%s226 + $0x250] sm:$0xff] %vm3020, %v2672
        %3096 = vst.msk [vmem:[%s226 + $0x258] sm:$0xff] %vm3020, %v2677
        %3097 = vst.msk [vmem:[%s226 + $0x260] sm:$0xff] %vm3020, %v2682
        %3098 = vst.msk [vmem:[%s226 + $0x268] sm:$0xff] %vm3020, %v2687
        %3099 = vst.msk [vmem:[%s226 + $0x270] sm:$0xff] %vm3020, %v2692
        %3100 = vst.msk [vmem:[%s226 + $0x278] sm:$0xff] %vm3020, %v2697
        %3101 = vst.msk [vmem:[%s226 + $0x280] sm:$0xff] %vm3020, %v2702
        %3102 = vst.msk [vmem:[%s226 + $0x288] sm:$0xff] %vm3020, %v2707
        %3103 = vst.msk [vmem:[%s226 + $0x290] sm:$0xff] %vm3020, %v2712
        %3104 = vst.msk [vmem:[%s226 + $0x298] sm:$0xff] %vm3020, %v2717
        %3105 = vst.msk [vmem:[%s226 + $0x2a0] sm:$0xff] %vm3020, %v2722
        %3106 = vst.msk [vmem:[%s226 + $0x2a8] sm:$0xff] %vm3020, %v2727
        %3107 = vst.msk [vmem:[%s226 + $0x2b0] sm:$0xff] %vm3020, %v2732
        %3108 = vst.msk [vmem:[%s226 + $0x2b8] sm:$0xff] %vm3020, %v2737
        %3109 = vst.msk [vmem:[%s226 + $0x2c0] sm:$0xff] %vm3020, %v2742
        %3110 = vst.msk [vmem:[%s226 + $0x2c8] sm:$0xff] %vm3020, %v2747
        %3111 = vst.msk [vmem:[%s226 + $0x2d0] sm:$0xff] %vm3020, %v2752
        %3112 = vst.msk [vmem:[%s226 + $0x2d8] sm:$0xff] %vm3020, %v2757
        %3113 = vst.msk [vmem:[%s226 + $0x2e0] sm:$0xff] %vm3020, %v2762
        %3114 = vst.msk [vmem:[%s226 + $0x2e8] sm:$0xff] %vm3020, %v2767
        %3115 = vst.msk [vmem:[%s226 + $0x2f0] sm:$0xff] %vm3020, %v2772
        %3116 = vst.msk [vmem:[%s226 + $0x2f8] sm:$0xff] %vm3020, %v2777
        %3117 = vst.msk [vmem:[%s226 + $0x300] sm:$0xff] %vm3020, %v2782
        %3118 = vst.msk [vmem:[%s226 + $0x308] sm:$0xff] %vm3020, %v2787
        %3119 = vst.msk [vmem:[%s226 + $0x310] sm:$0xff] %vm3020, %v2792
        %3120 = vst.msk [vmem:[%s226 + $0x318] sm:$0xff] %vm3020, %v2797
        %3121 = vst.msk [vmem:[%s226 + $0x320] sm:$0xff] %vm3020, %v2802
        %3122 = vst.msk [vmem:[%s226 + $0x328] sm:$0xff] %vm3020, %v2807
        %3123 = vst.msk [vmem:[%s226 + $0x330] sm:$0xff] %vm3020, %v2812
        %3124 = vst.msk [vmem:[%s226 + $0x338] sm:$0xff] %vm3020, %v2817
        %3125 = vst.msk [vmem:[%s226 + $0x340] sm:$0xff] %vm3020, %v2822
        %3126 = vst.msk [vmem:[%s226 + $0x348] sm:$0xff] %vm3020, %v2827
        %3127 = vst.msk [vmem:[%s226 + $0x350] sm:$0xff] %vm3020, %v2832
        %3128 = vst.msk [vmem:[%s226 + $0x358] sm:$0xff] %vm3020, %v2837
        %3129 = vst.msk [vmem:[%s226 + $0x360] sm:$0xff] %vm3020, %v2842
        %3130 = vst.msk [vmem:[%s226 + $0x368] sm:$0xff] %vm3020, %v2847
        %3131 = vst.msk [vmem:[%s226 + $0x370] sm:$0xff] %vm3020, %v2852
        %3132 = vst.msk [vmem:[%s226 + $0x378] sm:$0xff] %vm3020, %v2857
        %3133 = vst.msk [vmem:[%s226 + $0x380] sm:$0xff] %vm3020, %v2862
        %3134 = vst.msk [vmem:[%s226 + $0x388] sm:$0xff] %vm3020, %v2867
        %3135 = vst.msk [vmem:[%s226 + $0x390] sm:$0xff] %vm3020, %v2872
        %3136 = vst.msk [vmem:[%s226 + $0x398] sm:$0xff] %vm3020, %v2877
        %3137 = vst.msk [vmem:[%s226 + $0x3a0] sm:$0xff] %vm3020, %v2882
        %3138 = vst.msk [vmem:[%s226 + $0x3a8] sm:$0xff] %vm3020, %v2887
        %3139 = vst.msk [vmem:[%s226 + $0x3b0] sm:$0xff] %vm3020, %v2892
        %3140 = vst.msk [vmem:[%s226 + $0x3b8] sm:$0xff] %vm3020, %v2897
        %3141 = vst.msk [vmem:[%s226 + $0x3c0] sm:$0xff] %vm3020, %v2902
        %3142 = vst.msk [vmem:[%s226 + $0x3c8] sm:$0xff] %vm3020, %v2907
        %3143 = vst.msk [vmem:[%s226 + $0x3d0] sm:$0xff] %vm3020, %v2912
        %3144 = vst.msk [vmem:[%s226 + $0x3d8] sm:$0xff] %vm3020, %v2917
        %3145 = vst.msk [vmem:[%s226 + $0x3e0] sm:$0xff] %vm3020, %v2922
        %3146 = vst.msk [vmem:[%s226 + $0x3e8] sm:$0xff] %vm3020, %v2927
        %3147 = vst.msk [vmem:[%s226 + $0x3f0] sm:$0xff] %vm3020, %v2932
        %3148 = vst.msk [vmem:[%s226 + $0x3f8] sm:$0xff] %vm3020, %v2937
        %3149 = vst.msk [vmem:[%s226 + $0x400] sm:$0xff] %vm3020, %v2942
        %3150 = vst.msk [vmem:[%s226 + $0x408] sm:$0xff] %vm3020, %v2947
        %3151 = vst.msk [vmem:[%s226 + $0x410] sm:$0xff] %vm3020, %v2952
        %3152 = vst.msk [vmem:[%s226 + $0x418] sm:$0xff] %vm3020, %v2957
        %3153 = vst.msk [vmem:[%s226 + $0x420] sm:$0xff] %vm3020, %v2962
        %3154 = vst.msk [vmem:[%s226 + $0x428] sm:$0xff] %vm3020, %v2967
        %3155 = vst.msk [vmem:[%s226 + $0x430] sm:$0xff] %vm3020, %v2972
        %3156 = vst.msk [vmem:[%s226 + $0x438] sm:$0xff] %vm3020, %v2977
        %3157 = vst.msk [vmem:[%s226 + $0x440] sm:$0xff] %vm3020, %v2982
        %3158 = vst.msk [vmem:[%s226 + $0x448] sm:$0xff] %vm3020, %v2987
        %3159 = vst.msk [vmem:[%s226 + $0x450] sm:$0xff] %vm3020, %v2992
        %3160 = vst.msk [vmem:[%s226 + $0x458] sm:$0xff] %vm3020, %v2997
        %3161 = vst.msk [vmem:[%s226 + $0x460] sm:$0xff] %vm3020, %v3002
        %3162 = vst.msk [vmem:[%s226 + $0x468] sm:$0xff] %vm3020, %v3007
        %3163 = vst.msk [vmem:[%s226 + $0x470] sm:$0xff] %vm3020, %v3012
        %3164 = vst.msk [vmem:[%s226 + $0x478] sm:$0xff] %vm3020, %v3017
        %s3165 = sand.u32 %s134, 1
        %s3166 = sand.u32 %s134, 1
        %s3167 = smul.addr %s3166, 1152
        %s3168 = scalar_lea.vmem [#allocation2], %s3167
        // Predicated region
        $region41: #{dqn_net_forward.1} parent=39 // pred_check
          %p3169 = pneg %p144
        $region42: #{dqn_net_forward.1} parent=39 // pred_check_branch
          %3171 = sbr.rel (%p3169) target = $region44
        $region43: #{dqn_net_forward.1} parent=39 // pred_region
          %s3172 = smul.u32 144, %s16
          %s3173 = ssub.s32 528, %s3172
          %p3174 = scmp.lt.s32.totalorder %s3173, 144
          %s3175 = scalar_select %p3174, %s3173, 144
          %s3176 = smul.u32 128, %s3175
          %p3177 = scmp.ne.s32.totalorder 0, %s3176
          %s3178 = smul.addr %s3172, 8
          %s3179 = scalar_lea.vmem %s5, %s3178
          // Predicated region
          $region45: #{dqn_net_forward.1} parent=43 // pred_check
            %p3180 = pneg %p3177
          $region46: #{dqn_net_forward.1} parent=43 // pred_check_branch
            %3182 = sbr.rel (%p3180) target = $region48
          $region47: #{dqn_net_forward.1} parent=43 // pred_region
            // Predicated region
            $region49: #{dqn_net_forward.1} parent=47 // pred_check
              _
            $region50: #{dqn_net_forward.1} parent=47 // pred_check_branch
              %3184 = sbr.rel (0) target = $region52
            $region51: #{dqn_net_forward.1} parent=47 // pred_region
              // Predicated region
              $region71: #{dqn_net_forward.1} parent=51 // pred_check
                _
              $region72: #{dqn_net_forward.1} parent=51 // pred_check_branch
                %3359 = sbr.rel (0) target = $region74
              $region73: #{dqn_net_forward.1} parent=51 // pred_region
                %s3360 = sshrl.u32 %s3175, 6
                // While loop
                $region75: #{dqn_net_forward.1} parent=73 // loop_pre_header
                  _
                $region76: #{dqn_net_forward.1} parent=73 // loop_header
                  %s3362 = sphi 0, %s3364
                  %p3363 = scmp.ge.s32.totalorder %s3362, %s3360
                  %s3367 = sphi 0, %s3500
                  %s3368 = sphi %s3168, %s3503
                  %s3369 = sphi %s3179, %s3504
                $region77: #{dqn_net_forward.1} parent=73 // loop_header_branch
                  %3366 = sbr.rel (%p3363) target = $region81
                $region78: #{dqn_net_forward.1} parent=73 // loop_body
                  %v3370 = vld [vmem:[%s3368] sm:$0xff]
                  %3371 = vst [vmem:[%s3369] sm:$0xff] %v3370
                  %v3372 = vld [vmem:[%s3368 + $0x8] sm:$0xff]
                  %3373 = vst [vmem:[%s3369 + $0x8] sm:$0xff] %v3372
                  %v3374 = vld [vmem:[%s3368 + $0x10] sm:$0xff]
                  %3375 = vst [vmem:[%s3369 + $0x10] sm:$0xff] %v3374
                  %v3376 = vld [vmem:[%s3368 + $0x18] sm:$0xff]
                  %3377 = vst [vmem:[%s3369 + $0x18] sm:$0xff] %v3376
                  %v3378 = vld [vmem:[%s3368 + $0x20] sm:$0xff]
                  %3379 = vst [vmem:[%s3369 + $0x20] sm:$0xff] %v3378
                  %v3380 = vld [vmem:[%s3368 + $0x28] sm:$0xff]
                  %3381 = vst [vmem:[%s3369 + $0x28] sm:$0xff] %v3380
                  %v3382 = vld [vmem:[%s3368 + $0x30] sm:$0xff]
                  %3383 = vst [vmem:[%s3369 + $0x30] sm:$0xff] %v3382
                  %v3384 = vld [vmem:[%s3368 + $0x38] sm:$0xff]
                  %3385 = vst [vmem:[%s3369 + $0x38] sm:$0xff] %v3384
                  %v3386 = vld [vmem:[%s3368 + $0x40] sm:$0xff]
                  %3387 = vst [vmem:[%s3369 + $0x40] sm:$0xff] %v3386
                  %v3388 = vld [vmem:[%s3368 + $0x48] sm:$0xff]
                  %3389 = vst [vmem:[%s3369 + $0x48] sm:$0xff] %v3388
                  %v3390 = vld [vmem:[%s3368 + $0x50] sm:$0xff]
                  %3391 = vst [vmem:[%s3369 + $0x50] sm:$0xff] %v3390
                  %v3392 = vld [vmem:[%s3368 + $0x58] sm:$0xff]
                  %3393 = vst [vmem:[%s3369 + $0x58] sm:$0xff] %v3392
                  %v3394 = vld [vmem:[%s3368 + $0x60] sm:$0xff]
                  %3395 = vst [vmem:[%s3369 + $0x60] sm:$0xff] %v3394
                  %v3396 = vld [vmem:[%s3368 + $0x68] sm:$0xff]
                  %3397 = vst [vmem:[%s3369 + $0x68] sm:$0xff] %v3396
                  %v3398 = vld [vmem:[%s3368 + $0x70] sm:$0xff]
                  %3399 = vst [vmem:[%s3369 + $0x70] sm:$0xff] %v3398
                  %v3400 = vld [vmem:[%s3368 + $0x78] sm:$0xff]
                  %3401 = vst [vmem:[%s3369 + $0x78] sm:$0xff] %v3400
                  %v3402 = vld [vmem:[%s3368 + $0x80] sm:$0xff]
                  %3403 = vst [vmem:[%s3369 + $0x80] sm:$0xff] %v3402
                  %v3404 = vld [vmem:[%s3368 + $0x88] sm:$0xff]
                  %3405 = vst [vmem:[%s3369 + $0x88] sm:$0xff] %v3404
                  %v3406 = vld [vmem:[%s3368 + $0x90] sm:$0xff]
                  %3407 = vst [vmem:[%s3369 + $0x90] sm:$0xff] %v3406
                  %v3408 = vld [vmem:[%s3368 + $0x98] sm:$0xff]
                  %3409 = vst [vmem:[%s3369 + $0x98] sm:$0xff] %v3408
                  %v3410 = vld [vmem:[%s3368 + $0xa0] sm:$0xff]
                  %3411 = vst [vmem:[%s3369 + $0xa0] sm:$0xff] %v3410
                  %v3412 = vld [vmem:[%s3368 + $0xa8] sm:$0xff]
                  %3413 = vst [vmem:[%s3369 + $0xa8] sm:$0xff] %v3412
                  %v3414 = vld [vmem:[%s3368 + $0xb0] sm:$0xff]
                  %3415 = vst [vmem:[%s3369 + $0xb0] sm:$0xff] %v3414
                  %v3416 = vld [vmem:[%s3368 + $0xb8] sm:$0xff]
                  %3417 = vst [vmem:[%s3369 + $0xb8] sm:$0xff] %v3416
                  %v3418 = vld [vmem:[%s3368 + $0xc0] sm:$0xff]
                  %3419 = vst [vmem:[%s3369 + $0xc0] sm:$0xff] %v3418
                  %v3420 = vld [vmem:[%s3368 + $0xc8] sm:$0xff]
                  %3421 = vst [vmem:[%s3369 + $0xc8] sm:$0xff] %v3420
                  %v3422 = vld [vmem:[%s3368 + $0xd0] sm:$0xff]
                  %3423 = vst [vmem:[%s3369 + $0xd0] sm:$0xff] %v3422
                  %v3424 = vld [vmem:[%s3368 + $0xd8] sm:$0xff]
                  %3425 = vst [vmem:[%s3369 + $0xd8] sm:$0xff] %v3424
                  %v3426 = vld [vmem:[%s3368 + $0xe0] sm:$0xff]
                  %3427 = vst [vmem:[%s3369 + $0xe0] sm:$0xff] %v3426
                  %v3428 = vld [vmem:[%s3368 + $0xe8] sm:$0xff]
                  %3429 = vst [vmem:[%s3369 + $0xe8] sm:$0xff] %v3428
                  %v3430 = vld [vmem:[%s3368 + $0xf0] sm:$0xff]
                  %3431 = vst [vmem:[%s3369 + $0xf0] sm:$0xff] %v3430
                  %v3432 = vld [vmem:[%s3368 + $0xf8] sm:$0xff]
                  %3433 = vst [vmem:[%s3369 + $0xf8] sm:$0xff] %v3432
                  %v3434 = vld [vmem:[%s3368 + $0x100] sm:$0xff]
                  %3435 = vst [vmem:[%s3369 + $0x100] sm:$0xff] %v3434
                  %v3436 = vld [vmem:[%s3368 + $0x108] sm:$0xff]
                  %3437 = vst [vmem:[%s3369 + $0x108] sm:$0xff] %v3436
                  %v3438 = vld [vmem:[%s3368 + $0x110] sm:$0xff]
                  %3439 = vst [vmem:[%s3369 + $0x110] sm:$0xff] %v3438
                  %v3440 = vld [vmem:[%s3368 + $0x118] sm:$0xff]
                  %3441 = vst [vmem:[%s3369 + $0x118] sm:$0xff] %v3440
                  %v3442 = vld [vmem:[%s3368 + $0x120] sm:$0xff]
                  %3443 = vst [vmem:[%s3369 + $0x120] sm:$0xff] %v3442
                  %v3444 = vld [vmem:[%s3368 + $0x128] sm:$0xff]
                  %3445 = vst [vmem:[%s3369 + $0x128] sm:$0xff] %v3444
                  %v3446 = vld [vmem:[%s3368 + $0x130] sm:$0xff]
                  %3447 = vst [vmem:[%s3369 + $0x130] sm:$0xff] %v3446
                  %v3448 = vld [vmem:[%s3368 + $0x138] sm:$0xff]
                  %3449 = vst [vmem:[%s3369 + $0x138] sm:$0xff] %v3448
                  %v3450 = vld [vmem:[%s3368 + $0x140] sm:$0xff]
                  %3451 = vst [vmem:[%s3369 + $0x140] sm:$0xff] %v3450
                  %v3452 = vld [vmem:[%s3368 + $0x148] sm:$0xff]
                  %3453 = vst [vmem:[%s3369 + $0x148] sm:$0xff] %v3452
                  %v3454 = vld [vmem:[%s3368 + $0x150] sm:$0xff]
                  %3455 = vst [vmem:[%s3369 + $0x150] sm:$0xff] %v3454
                  %v3456 = vld [vmem:[%s3368 + $0x158] sm:$0xff]
                  %3457 = vst [vmem:[%s3369 + $0x158] sm:$0xff] %v3456
                  %v3458 = vld [vmem:[%s3368 + $0x160] sm:$0xff]
                  %3459 = vst [vmem:[%s3369 + $0x160] sm:$0xff] %v3458
                  %v3460 = vld [vmem:[%s3368 + $0x168] sm:$0xff]
                  %3461 = vst [vmem:[%s3369 + $0x168] sm:$0xff] %v3460
                  %v3462 = vld [vmem:[%s3368 + $0x170] sm:$0xff]
                  %3463 = vst [vmem:[%s3369 + $0x170] sm:$0xff] %v3462
                  %v3464 = vld [vmem:[%s3368 + $0x178] sm:$0xff]
                  %3465 = vst [vmem:[%s3369 + $0x178] sm:$0xff] %v3464
                  %v3466 = vld [vmem:[%s3368 + $0x180] sm:$0xff]
                  %3467 = vst [vmem:[%s3369 + $0x180] sm:$0xff] %v3466
                  %v3468 = vld [vmem:[%s3368 + $0x188] sm:$0xff]
                  %3469 = vst [vmem:[%s3369 + $0x188] sm:$0xff] %v3468
                  %v3470 = vld [vmem:[%s3368 + $0x190] sm:$0xff]
                  %3471 = vst [vmem:[%s3369 + $0x190] sm:$0xff] %v3470
                  %v3472 = vld [vmem:[%s3368 + $0x198] sm:$0xff]
                  %3473 = vst [vmem:[%s3369 + $0x198] sm:$0xff] %v3472
                  %v3474 = vld [vmem:[%s3368 + $0x1a0] sm:$0xff]
                  %3475 = vst [vmem:[%s3369 + $0x1a0] sm:$0xff] %v3474
                  %v3476 = vld [vmem:[%s3368 + $0x1a8] sm:$0xff]
                  %3477 = vst [vmem:[%s3369 + $0x1a8] sm:$0xff] %v3476
                  %v3478 = vld [vmem:[%s3368 + $0x1b0] sm:$0xff]
                  %3479 = vst [vmem:[%s3369 + $0x1b0] sm:$0xff] %v3478
                  %v3480 = vld [vmem:[%s3368 + $0x1b8] sm:$0xff]
                  %3481 = vst [vmem:[%s3369 + $0x1b8] sm:$0xff] %v3480
                  %v3482 = vld [vmem:[%s3368 + $0x1c0] sm:$0xff]
                  %3483 = vst [vmem:[%s3369 + $0x1c0] sm:$0xff] %v3482
                  %v3484 = vld [vmem:[%s3368 + $0x1c8] sm:$0xff]
                  %3485 = vst [vmem:[%s3369 + $0x1c8] sm:$0xff] %v3484
                  %v3486 = vld [vmem:[%s3368 + $0x1d0] sm:$0xff]
                  %3487 = vst [vmem:[%s3369 + $0x1d0] sm:$0xff] %v3486
                  %v3488 = vld [vmem:[%s3368 + $0x1d8] sm:$0xff]
                  %3489 = vst [vmem:[%s3369 + $0x1d8] sm:$0xff] %v3488
                  %v3490 = vld [vmem:[%s3368 + $0x1e0] sm:$0xff]
                  %3491 = vst [vmem:[%s3369 + $0x1e0] sm:$0xff] %v3490
                  %v3492 = vld [vmem:[%s3368 + $0x1e8] sm:$0xff]
                  %3493 = vst [vmem:[%s3369 + $0x1e8] sm:$0xff] %v3492
                  %v3494 = vld [vmem:[%s3368 + $0x1f0] sm:$0xff]
                  %3495 = vst [vmem:[%s3369 + $0x1f0] sm:$0xff] %v3494
                  %v3496 = vld [vmem:[%s3368 + $0x1f8] sm:$0xff]
                  %3497 = vst [vmem:[%s3369 + $0x1f8] sm:$0xff] %v3496
                  %s3498 = sadd.s32 1, %s3367
                  %p3499 = scmp.ge.s32.totalorder %s3498, %s3360
                  %s3500 = scalar_select %p3499, 0, %s3498
                  %s3501 = smul.u32 %s3500, 512
                  %s3502 = smul.u32 %s3500, 512
                  %s3503 = scalar_lea.vmem %s3168, %s3501 [#allocation2]
                  %s3504 = scalar_lea.vmem %s3179, %s3502
                $region79: #{dqn_net_forward.1} parent=73 // loop_footer
                  %s3364 = sadd.s32 %s3362, 1
                $region80: #{dqn_net_forward.1} parent=73 // loop_footer_branch
                  %3361 = sbr.rel target = $region76
                $region81: #{dqn_net_forward.1} parent=73 // loop_exit
                  _
                %s3505 = sshrl.u32 %s3175, 6
                %s3506 = sand.u32 %s3175, 63
                %s3507 = smul.u32 %s3505, 64
                %s3508 = smul.u32 8, %s3507
                %s3509 = scalar_lea.vmem %s3168, %s3508 [#allocation2]
                %s3510 = smul.u32 8, %s3507
                %s3511 = scalar_lea.vmem %s3179, %s3510
                // While loop
                $region82: #{dqn_net_forward.1} parent=73 // loop_pre_header
                  _
                $region83: #{dqn_net_forward.1} parent=73 // loop_header
                  %s3513 = sphi 0, %s3515
                  %p3514 = scmp.ge.s32.totalorder %s3513, %s3506
                  %s3518 = sphi 0, %s3525
                  %s3519 = sphi %s3509, %s3528
                  %s3520 = sphi %s3511, %s3529
                $region84: #{dqn_net_forward.1} parent=73 // loop_header_branch
                  %3517 = sbr.rel (%p3514) target = $region88
                $region85: #{dqn_net_forward.1} parent=73 // loop_body
                  %v3521 = vld [vmem:[%s3519] sm:$0xff]
                  %3522 = vst [vmem:[%s3520] sm:$0xff] %v3521
                  %s3523 = sadd.s32 1, %s3518
                  %p3524 = scmp.ge.s32.totalorder %s3523, %s3506
                  %s3525 = scalar_select %p3524, 0, %s3523
                  %s3526 = smul.u32 %s3525, 8
                  %s3527 = smul.u32 %s3525, 8
                  %s3528 = scalar_lea.vmem %s3509, %s3526 [#allocation2]
                  %s3529 = scalar_lea.vmem %s3511, %s3527
                $region86: #{dqn_net_forward.1} parent=73 // loop_footer
                  %s3515 = sadd.s32 %s3513, 1
                $region87: #{dqn_net_forward.1} parent=73 // loop_footer_branch
                  %3512 = sbr.rel target = $region83
                $region88: #{dqn_net_forward.1} parent=73 // loop_exit
                  _
              $region74: #{dqn_net_forward.1} parent=51 // pred_fallthru
                _
              // Predicated region
              $region89: #{dqn_net_forward.1} parent=51 // pred_check
                _
              $region90: #{dqn_net_forward.1} parent=51 // pred_check_branch
                %3531 = sbr.rel target = $region92
              $region91: #{dqn_net_forward.1} parent=51 // pred_region
                _
              $region92: #{dqn_net_forward.1} parent=51 // pred_fallthru
                _
            $region52: #{dqn_net_forward.1} parent=47 // pred_fallthru
              _
            // Predicated region
            $region53: #{dqn_net_forward.1} parent=47 // pred_check
              _
            $region54: #{dqn_net_forward.1} parent=47 // pred_check_branch
              %3186 = sbr.rel target = $region56
            $region55: #{dqn_net_forward.1} parent=47 // pred_region
              %s3188 = sshrl.u32 %s3175, 6
              // While loop
              $region57: #{dqn_net_forward.1} parent=55 // loop_pre_header
                _
              $region58: #{dqn_net_forward.1} parent=55 // loop_header
                %s3190 = sphi 0, %s3192
                %p3191 = scmp.ge.s32.totalorder %s3190, %s3188
                %s3195 = sphi 0, %s3328
                %s3196 = sphi %s3168, %s3331
                %s3197 = sphi %s3179, %s3332
              $region59: #{dqn_net_forward.1} parent=55 // loop_header_branch
                %3194 = sbr.rel (%p3191) target = $region63
              $region60: #{dqn_net_forward.1} parent=55 // loop_body
                %v3198 = vld [vmem:[%s3196] sm:$0xff]
                %3199 = vst [vmem:[%s3197] sm:$0xff] %v3198
                %v3200 = vld [vmem:[%s3196 + $0x8] sm:$0xff]
                %3201 = vst [vmem:[%s3197 + $0x8] sm:$0xff] %v3200
                %v3202 = vld [vmem:[%s3196 + $0x10] sm:$0xff]
                %3203 = vst [vmem:[%s3197 + $0x10] sm:$0xff] %v3202
                %v3204 = vld [vmem:[%s3196 + $0x18] sm:$0xff]
                %3205 = vst [vmem:[%s3197 + $0x18] sm:$0xff] %v3204
                %v3206 = vld [vmem:[%s3196 + $0x20] sm:$0xff]
                %3207 = vst [vmem:[%s3197 + $0x20] sm:$0xff] %v3206
                %v3208 = vld [vmem:[%s3196 + $0x28] sm:$0xff]
                %3209 = vst [vmem:[%s3197 + $0x28] sm:$0xff] %v3208
                %v3210 = vld [vmem:[%s3196 + $0x30] sm:$0xff]
                %3211 = vst [vmem:[%s3197 + $0x30] sm:$0xff] %v3210
                %v3212 = vld [vmem:[%s3196 + $0x38] sm:$0xff]
                %3213 = vst [vmem:[%s3197 + $0x38] sm:$0xff] %v3212
                %v3214 = vld [vmem:[%s3196 + $0x40] sm:$0xff]
                %3215 = vst [vmem:[%s3197 + $0x40] sm:$0xff] %v3214
                %v3216 = vld [vmem:[%s3196 + $0x48] sm:$0xff]
                %3217 = vst [vmem:[%s3197 + $0x48] sm:$0xff] %v3216
                %v3218 = vld [vmem:[%s3196 + $0x50] sm:$0xff]
                %3219 = vst [vmem:[%s3197 + $0x50] sm:$0xff] %v3218
                %v3220 = vld [vmem:[%s3196 + $0x58] sm:$0xff]
                %3221 = vst [vmem:[%s3197 + $0x58] sm:$0xff] %v3220
                %v3222 = vld [vmem:[%s3196 + $0x60] sm:$0xff]
                %3223 = vst [vmem:[%s3197 + $0x60] sm:$0xff] %v3222
                %v3224 = vld [vmem:[%s3196 + $0x68] sm:$0xff]
                %3225 = vst [vmem:[%s3197 + $0x68] sm:$0xff] %v3224
                %v3226 = vld [vmem:[%s3196 + $0x70] sm:$0xff]
                %3227 = vst [vmem:[%s3197 + $0x70] sm:$0xff] %v3226
                %v3228 = vld [vmem:[%s3196 + $0x78] sm:$0xff]
                %3229 = vst [vmem:[%s3197 + $0x78] sm:$0xff] %v3228
                %v3230 = vld [vmem:[%s3196 + $0x80] sm:$0xff]
                %3231 = vst [vmem:[%s3197 + $0x80] sm:$0xff] %v3230
                %v3232 = vld [vmem:[%s3196 + $0x88] sm:$0xff]
                %3233 = vst [vmem:[%s3197 + $0x88] sm:$0xff] %v3232
                %v3234 = vld [vmem:[%s3196 + $0x90] sm:$0xff]
                %3235 = vst [vmem:[%s3197 + $0x90] sm:$0xff] %v3234
                %v3236 = vld [vmem:[%s3196 + $0x98] sm:$0xff]
                %3237 = vst [vmem:[%s3197 + $0x98] sm:$0xff] %v3236
                %v3238 = vld [vmem:[%s3196 + $0xa0] sm:$0xff]
                %3239 = vst [vmem:[%s3197 + $0xa0] sm:$0xff] %v3238
                %v3240 = vld [vmem:[%s3196 + $0xa8] sm:$0xff]
                %3241 = vst [vmem:[%s3197 + $0xa8] sm:$0xff] %v3240
                %v3242 = vld [vmem:[%s3196 + $0xb0] sm:$0xff]
                %3243 = vst [vmem:[%s3197 + $0xb0] sm:$0xff] %v3242
                %v3244 = vld [vmem:[%s3196 + $0xb8] sm:$0xff]
                %3245 = vst [vmem:[%s3197 + $0xb8] sm:$0xff] %v3244
                %v3246 = vld [vmem:[%s3196 + $0xc0] sm:$0xff]
                %3247 = vst [vmem:[%s3197 + $0xc0] sm:$0xff] %v3246
                %v3248 = vld [vmem:[%s3196 + $0xc8] sm:$0xff]
                %3249 = vst [vmem:[%s3197 + $0xc8] sm:$0xff] %v3248
                %v3250 = vld [vmem:[%s3196 + $0xd0] sm:$0xff]
                %3251 = vst [vmem:[%s3197 + $0xd0] sm:$0xff] %v3250
                %v3252 = vld [vmem:[%s3196 + $0xd8] sm:$0xff]
                %3253 = vst [vmem:[%s3197 + $0xd8] sm:$0xff] %v3252
                %v3254 = vld [vmem:[%s3196 + $0xe0] sm:$0xff]
                %3255 = vst [vmem:[%s3197 + $0xe0] sm:$0xff] %v3254
                %v3256 = vld [vmem:[%s3196 + $0xe8] sm:$0xff]
                %3257 = vst [vmem:[%s3197 + $0xe8] sm:$0xff] %v3256
                %v3258 = vld [vmem:[%s3196 + $0xf0] sm:$0xff]
                %3259 = vst [vmem:[%s3197 + $0xf0] sm:$0xff] %v3258
                %v3260 = vld [vmem:[%s3196 + $0xf8] sm:$0xff]
                %3261 = vst [vmem:[%s3197 + $0xf8] sm:$0xff] %v3260
                %v3262 = vld [vmem:[%s3196 + $0x100] sm:$0xff]
                %3263 = vst [vmem:[%s3197 + $0x100] sm:$0xff] %v3262
                %v3264 = vld [vmem:[%s3196 + $0x108] sm:$0xff]
                %3265 = vst [vmem:[%s3197 + $0x108] sm:$0xff] %v3264
                %v3266 = vld [vmem:[%s3196 + $0x110] sm:$0xff]
                %3267 = vst [vmem:[%s3197 + $0x110] sm:$0xff] %v3266
                %v3268 = vld [vmem:[%s3196 + $0x118] sm:$0xff]
                %3269 = vst [vmem:[%s3197 + $0x118] sm:$0xff] %v3268
                %v3270 = vld [vmem:[%s3196 + $0x120] sm:$0xff]
                %3271 = vst [vmem:[%s3197 + $0x120] sm:$0xff] %v3270
                %v3272 = vld [vmem:[%s3196 + $0x128] sm:$0xff]
                %3273 = vst [vmem:[%s3197 + $0x128] sm:$0xff] %v3272
                %v3274 = vld [vmem:[%s3196 + $0x130] sm:$0xff]
                %3275 = vst [vmem:[%s3197 + $0x130] sm:$0xff] %v3274
                %v3276 = vld [vmem:[%s3196 + $0x138] sm:$0xff]
                %3277 = vst [vmem:[%s3197 + $0x138] sm:$0xff] %v3276
                %v3278 = vld [vmem:[%s3196 + $0x140] sm:$0xff]
                %3279 = vst [vmem:[%s3197 + $0x140] sm:$0xff] %v3278
                %v3280 = vld [vmem:[%s3196 + $0x148] sm:$0xff]
                %3281 = vst [vmem:[%s3197 + $0x148] sm:$0xff] %v3280
                %v3282 = vld [vmem:[%s3196 + $0x150] sm:$0xff]
                %3283 = vst [vmem:[%s3197 + $0x150] sm:$0xff] %v3282
                %v3284 = vld [vmem:[%s3196 + $0x158] sm:$0xff]
                %3285 = vst [vmem:[%s3197 + $0x158] sm:$0xff] %v3284
                %v3286 = vld [vmem:[%s3196 + $0x160] sm:$0xff]
                %3287 = vst [vmem:[%s3197 + $0x160] sm:$0xff] %v3286
                %v3288 = vld [vmem:[%s3196 + $0x168] sm:$0xff]
                %3289 = vst [vmem:[%s3197 + $0x168] sm:$0xff] %v3288
                %v3290 = vld [vmem:[%s3196 + $0x170] sm:$0xff]
                %3291 = vst [vmem:[%s3197 + $0x170] sm:$0xff] %v3290
                %v3292 = vld [vmem:[%s3196 + $0x178] sm:$0xff]
                %3293 = vst [vmem:[%s3197 + $0x178] sm:$0xff] %v3292
                %v3294 = vld [vmem:[%s3196 + $0x180] sm:$0xff]
                %3295 = vst [vmem:[%s3197 + $0x180] sm:$0xff] %v3294
                %v3296 = vld [vmem:[%s3196 + $0x188] sm:$0xff]
                %3297 = vst [vmem:[%s3197 + $0x188] sm:$0xff] %v3296
                %v3298 = vld [vmem:[%s3196 + $0x190] sm:$0xff]
                %3299 = vst [vmem:[%s3197 + $0x190] sm:$0xff] %v3298
                %v3300 = vld [vmem:[%s3196 + $0x198] sm:$0xff]
                %3301 = vst [vmem:[%s3197 + $0x198] sm:$0xff] %v3300
                %v3302 = vld [vmem:[%s3196 + $0x1a0] sm:$0xff]
                %3303 = vst [vmem:[%s3197 + $0x1a0] sm:$0xff] %v3302
                %v3304 = vld [vmem:[%s3196 + $0x1a8] sm:$0xff]
                %3305 = vst [vmem:[%s3197 + $0x1a8] sm:$0xff] %v3304
                %v3306 = vld [vmem:[%s3196 + $0x1b0] sm:$0xff]
                %3307 = vst [vmem:[%s3197 + $0x1b0] sm:$0xff] %v3306
                %v3308 = vld [vmem:[%s3196 + $0x1b8] sm:$0xff]
                %3309 = vst [vmem:[%s3197 + $0x1b8] sm:$0xff] %v3308
                %v3310 = vld [vmem:[%s3196 + $0x1c0] sm:$0xff]
                %3311 = vst [vmem:[%s3197 + $0x1c0] sm:$0xff] %v3310
                %v3312 = vld [vmem:[%s3196 + $0x1c8] sm:$0xff]
                %3313 = vst [vmem:[%s3197 + $0x1c8] sm:$0xff] %v3312
                %v3314 = vld [vmem:[%s3196 + $0x1d0] sm:$0xff]
                %3315 = vst [vmem:[%s3197 + $0x1d0] sm:$0xff] %v3314
                %v3316 = vld [vmem:[%s3196 + $0x1d8] sm:$0xff]
                %3317 = vst [vmem:[%s3197 + $0x1d8] sm:$0xff] %v3316
                %v3318 = vld [vmem:[%s3196 + $0x1e0] sm:$0xff]
                %3319 = vst [vmem:[%s3197 + $0x1e0] sm:$0xff] %v3318
                %v3320 = vld [vmem:[%s3196 + $0x1e8] sm:$0xff]
                %3321 = vst [vmem:[%s3197 + $0x1e8] sm:$0xff] %v3320
                %v3322 = vld [vmem:[%s3196 + $0x1f0] sm:$0xff]
                %3323 = vst [vmem:[%s3197 + $0x1f0] sm:$0xff] %v3322
                %v3324 = vld [vmem:[%s3196 + $0x1f8] sm:$0xff]
                %3325 = vst [vmem:[%s3197 + $0x1f8] sm:$0xff] %v3324
                %s3326 = sadd.s32 1, %s3195
                %p3327 = scmp.ge.s32.totalorder %s3326, %s3188
                %s3328 = scalar_select %p3327, 0, %s3326
                %s3329 = smul.u32 %s3328, 512
                %s3330 = smul.u32 %s3328, 512
                %s3331 = scalar_lea.vmem %s3168, %s3329 [#allocation2]
                %s3332 = scalar_lea.vmem %s3179, %s3330
              $region61: #{dqn_net_forward.1} parent=55 // loop_footer
                %s3192 = sadd.s32 %s3190, 1
              $region62: #{dqn_net_forward.1} parent=55 // loop_footer_branch
                %3189 = sbr.rel target = $region58
              $region63: #{dqn_net_forward.1} parent=55 // loop_exit
                _
              %s3333 = sshrl.u32 %s3175, 6
              %s3334 = sand.u32 %s3175, 63
              %s3335 = smul.u32 %s3333, 64
              %s3336 = smul.u32 8, %s3335
              %s3337 = scalar_lea.vmem %s3168, %s3336 [#allocation2]
              %s3338 = smul.u32 8, %s3335
              %s3339 = scalar_lea.vmem %s3179, %s3338
              // While loop
              $region64: #{dqn_net_forward.1} parent=55 // loop_pre_header
                _
              $region65: #{dqn_net_forward.1} parent=55 // loop_header
                %s3341 = sphi 0, %s3343
                %p3342 = scmp.ge.s32.totalorder %s3341, %s3334
                %s3346 = sphi 0, %s3353
                %s3347 = sphi %s3337, %s3356
                %s3348 = sphi %s3339, %s3357
              $region66: #{dqn_net_forward.1} parent=55 // loop_header_branch
                %3345 = sbr.rel (%p3342) target = $region70
              $region67: #{dqn_net_forward.1} parent=55 // loop_body
                %v3349 = vld [vmem:[%s3347] sm:$0xff]
                %3350 = vst [vmem:[%s3348] sm:$0xff] %v3349
                %s3351 = sadd.s32 1, %s3346
                %p3352 = scmp.ge.s32.totalorder %s3351, %s3334
                %s3353 = scalar_select %p3352, 0, %s3351
                %s3354 = smul.u32 %s3353, 8
                %s3355 = smul.u32 %s3353, 8
                %s3356 = scalar_lea.vmem %s3337, %s3354 [#allocation2]
                %s3357 = scalar_lea.vmem %s3339, %s3355
              $region68: #{dqn_net_forward.1} parent=55 // loop_footer
                %s3343 = sadd.s32 %s3341, 1
              $region69: #{dqn_net_forward.1} parent=55 // loop_footer_branch
                %3340 = sbr.rel target = $region65
              $region70: #{dqn_net_forward.1} parent=55 // loop_exit
                _
            $region56: #{dqn_net_forward.1} parent=47 // pred_fallthru
              _
          $region48: #{dqn_net_forward.1} parent=43 // pred_fallthru
            _
          %3532 = vnop
        $region44: #{dqn_net_forward.1} parent=39 // pred_fallthru
          _
      $region40: #{dqn_net_forward.1} parent=5 // pred_fallthru
        _
      %p3533 = scmp.le.s32.totalorder 2, %s11
      // Predicated region
      $region93: #{dqn_net_forward.1} parent=5 // pred_check
        %p3534 = pneg %p3533
      $region94: #{dqn_net_forward.1} parent=5 // pred_check_branch
        %3536 = sbr.rel (%p3534) target = $region96
      $region95: #{dqn_net_forward.1} parent=5 // pred_region
        %s3537 = ssub.s32 %s11, 2
        // Predicated region
        $region97: #{dqn_net_forward.1} parent=95 // pred_check
          %p3538 = pneg %p150
        $region98: #{dqn_net_forward.1} parent=95 // pred_check_branch
          %3540 = sbr.rel (%p3538) target = $region100
        $region99: #{dqn_net_forward.1} parent=95 // pred_region
          %s3541 = sand.u32 %s135, 1
          %s3542 = sand.u32 %s135, 1
          %s3543 = smul.addr %s3542, 1152
          %s3544 = scalar_lea.vmem [#allocation2], %s3543
        $region100: #{dqn_net_forward.1} parent=95 // pred_fallthru
          _
      $region96: #{dqn_net_forward.1} parent=5 // pred_fallthru
        _
    $region6: #{dqn_net_forward.1} parent=1 // loop_footer
      %s15 = sadd.s32 1, %s11
    $region7: #{dqn_net_forward.1} parent=1 // loop_footer_branch
      %10 = sbr.rel target = $region3
    $region8: #{dqn_net_forward.1} parent=1 // loop_exit
      _

</llo_original>
